<compile_context>
chip_gen: v7x
topology: tpu7x:2x2x1
jax: 0.10.0
libtpu: 0.0.40
codegen_flags: <defaults>
</compile_context>

<pallas_src>
import functools

import jax
import jax.numpy as jnp
from jax import lax
from jax.experimental import pallas as pl
from jax.experimental.pallas import tpu as pltpu


# ----------------------------------------------------------------------------
# Fused kernel: wavefront LSTM stack -> decoder -> grouped log-softmax.
# refs layout (positional):
#   [0]            x_ref     : (S, B, F)   input sequence
#   [1 .. 3L]      per layer : wih_t (Din,4H), whh_t (H,4H), b (1,4H)
#   [1+3L]         w_dec_ref : (H, P*C)    decoder weight, transposed
#   [2+3L]         out_ref   : (B, P*C)    log-probs (lane-dense)
# ----------------------------------------------------------------------------
def _oracle_kernel(*refs, n_layers, seq_len, batch, d_hidden, n_products,
                   n_classes):
    S, B, H, P, C = seq_len, batch, d_hidden, n_products, n_classes
    L = n_layers

    x_ref = refs[0]
    layer_refs = refs[1:1 + 3 * L]
    w_dec_ref = refs[1 + 3 * L]
    out_ref = refs[2 + 3 * L]

    # Small per-layer weights, loaded once (reused every step).
    wih = [layer_refs[3 * l + 0][...] for l in range(L)]    # (Din, 4H)
    whh = [layer_refs[3 * l + 1][...] for l in range(L)]    # (H,   4H)
    bias = [layer_refs[3 * l + 2][...] for l in range(L)]   # (1,   4H)

    h = [jnp.zeros((B, H), jnp.float32) for _ in range(L)]
    c = [jnp.zeros((B, H), jnp.float32) for _ in range(L)]

    # Wavefront over the (layer, time) grid: wave w -> layer l does t = w - l.
    # After wave w, h[l]/c[l] hold layer l's state at step (w - l).
    for w in range(S + L - 1):
        prev_h = list(h)          # snapshot of states as of the end of wave w-1
        for l in range(L):
            t = w - l
            if t < 0 or t >= S:
                continue
            # Lower-layer input at step t: x_ref[t] (free leading-dim ref load)
            # for layer 0, or the previous wave's layer-(l-1) hidden state.
            x_in = x_ref[t] if l == 0 else prev_h[l - 1]     # (B, Din)

            # Input projection + bias: independent of h_{t-1} -> off the chain.
            gx = jnp.dot(x_in, wih[l],
                         preferred_element_type=jnp.float32) + bias[l]
            # Recurrent projection: the only matmul on the serial chain.
            gates = gx + jnp.dot(prev_h[l], whh[l],
                                 preferred_element_type=jnp.float32)  # (B, 4H)

            sg = jax.nn.sigmoid(gates)   # one EUP pass over the full gate vreg
            tg = jnp.tanh(gates)         # one EUP pass over the full gate vreg
            i_g = sg[:, 0 * H:1 * H]     # PyTorch gate order: i, f, g, o
            f_g = sg[:, 1 * H:2 * H]
            g_g = tg[:, 2 * H:3 * H]
            o_g = sg[:, 3 * H:4 * H]
            c[l] = f_g * c[l] + i_g * g_g
            h[l] = o_g * jnp.tanh(c[l])

    # ---- Epilogue: decoder + grouped log-softmax, single lane-dense store ----
    y = jnp.dot(h[L - 1], w_dec_ref[...],
                preferred_element_type=jnp.float32)          # (B, P*C)

    # Grouped log-softmax over each contiguous C-class chunk (matches torch:
    # y.view(P, B, C) then LogSoftmax(dim=-1) -- .view is a flat-order
    # reinterpretation, so the softmax groups are exactly the contiguous
    # C-element chunks of the flat (B, P*C) buffer).
    # Per-group maxima, broadcast back across their C lanes.
    m_full = jnp.concatenate(
        [jnp.broadcast_to(
            jnp.max(y[:, p * C:(p + 1) * C], axis=-1, keepdims=True), (B, C))
         for p in range(P)], axis=-1)                        # (B, P*C)
    z = y - m_full                                           # full-width VALU
    e = jnp.exp(z)                                           # ONE EUP exp pass
    # Per-group sums, broadcast back across their C lanes.
    s_full = jnp.concatenate(
        [jnp.broadcast_to(
            jnp.sum(e[:, p * C:(p + 1) * C], axis=-1, keepdims=True), (B, C))
         for p in range(P)], axis=-1)                        # (B, P*C)
    # One full-width log, one unmasked full-width store.
    out_ref[...] = z - jnp.log(s_full)


# ----------------------------------------------------------------------------
# Wrapper: single fused pallas_call, no grid (whole working set fits VMEM on
# v5e/v6e/v7x).  Reshapes outside the kernel are pure flat-order metadata ops
# (identical semantics to torch .view).
# TODO(synk): if the number of independent sequences scales, add a leading
# "parallel" grid axis over batch to use v7x's second TensorCore.
# ----------------------------------------------------------------------------
def oracle_forward(x, params, *, n_layers, n_products, n_classes):
    S, B, F = x.shape
    H = params["layers"][0][1].shape[0]
    P, C = n_products, n_classes

    flat_weights = []
    for wih_t, whh_t, b in params["layers"]:
        flat_weights += [wih_t, whh_t, b]

    kernel = functools.partial(
        _oracle_kernel, n_layers=n_layers, seq_len=S, batch=B,
        d_hidden=H, n_products=P, n_classes=C)

    out = pl.pallas_call(
        kernel,
        out_shape=jax.ShapeDtypeStruct((B, P * C), jnp.float32),
        in_specs=[pl.BlockSpec(memory_space=pltpu.MemorySpace.VMEM)]
        * (2 + 3 * n_layers),
        out_specs=pl.BlockSpec(memory_space=pltpu.MemorySpace.VMEM),
    )(x, *flat_weights, params["decoder_t"])

    # (B, P*C) -> (P, B, C): flat reinterpretation, same as torch .view.
    return jnp.reshape(out, (P, B, C))


# ----------------------------------------------------------------------------
# Pure-JAX reference (mirrors nn.LSTM + Linear(bias=False) + LogSoftmax).
# ----------------------------------------------------------------------------
def oracle_reference(x, params, *, n_products, n_classes):
    S, B, _ = x.shape
    hp = lax.Precision.HIGHEST
    seq = x
    for wih_t, whh_t, b in params["layers"]:
        H = whh_t.shape[0]
        h = jnp.zeros((B, H), jnp.float32)
        c = jnp.zeros((B, H), jnp.float32)
        hs = []
        for t in range(S):
            g = (jnp.dot(seq[t], wih_t, precision=hp)
                 + jnp.dot(h, whh_t, precision=hp) + b)
            i = jax.nn.sigmoid(g[:, 0 * H:1 * H])
            f = jax.nn.sigmoid(g[:, 1 * H:2 * H])
            gg = jnp.tanh(g[:, 2 * H:3 * H])
            o = jax.nn.sigmoid(g[:, 3 * H:4 * H])
            c = f * c + i * gg
            h = o * jnp.tanh(c)
            hs.append(h)
        seq = jnp.stack(hs, axis=0)
    y = jnp.dot(seq[-1], params["decoder_t"], precision=hp)   # (B, P*C)
    y = jnp.reshape(y, (n_products, B, n_classes))
    return jax.nn.log_softmax(y, axis=-1)


# ----------------------------------------------------------------------------
# Deterministic parameter construction (matches PyTorch module shapes).
# ----------------------------------------------------------------------------
def init_oracle_params(key, n_features, d_hidden, n_layers, n_products,
                       n_classes):
    H = d_hidden
    k = 1.0 / jnp.sqrt(jnp.float32(H))
    layers = []
    for l in range(n_layers):
        d_in = n_features if l == 0 else H
        key, k1, k2, k3, k4 = jax.random.split(key, 5)
        w_ih = jax.random.uniform(k1, (4 * H, d_in), jnp.float32, -k, k)
        w_hh = jax.random.uniform(k2, (4 * H, H), jnp.float32, -k, k)
        b_ih = jax.random.uniform(k3, (4 * H,), jnp.float32, -k, k)
        b_hh = jax.random.uniform(k4, (4 * H,), jnp.float32, -k, k)
        layers.append((w_ih.T, w_hh.T, (b_ih + b_hh).reshape(1, 4 * H)))
    key, kd = jax.random.split(key)
    w_dec = jax.random.uniform(
        kd, (n_products * n_classes, H), jnp.float32, -k, k
    )  # nn.Linear(H, P*C, bias=False).weight
    return {"layers": layers, "decoder_t": w_dec.T}


if __name__ == "__main__":
    n_features, d_hidden, n_layers = 16, 32, 2
    n_products, n_classes = 8, 16
    seq_len, batch = 8, 4

    key = jax.random.PRNGKey(0)
    key, kp, kx = jax.random.split(key, 3)
    params = init_oracle_params(
        kp, n_features, d_hidden, n_layers, n_products, n_classes)
    x = jax.random.normal(kx, (seq_len, batch, n_features), jnp.float32)

    fwd = jax.jit(functools.partial(
        oracle_forward, n_layers=n_layers, n_products=n_products,
        n_classes=n_classes))
    out = jax.block_until_ready(fwd(x, params))

    assert out.shape == (n_products, batch, n_classes)
    # log-softmax internal consistency: rows exponentiate-and-sum to ~1.
    assert jnp.allclose(jnp.sum(jnp.exp(out), axis=-1), 1.0, atol=1e-4)
    # Numerical check against pure-JAX reference (loose tol to absorb MXU
    # f32 matmul pass differences).
    ref = oracle_reference(x, params, n_products=n_products,
                           n_classes=n_classes)
    assert jnp.allclose(out, ref, atol=3e-2), float(jnp.max(jnp.abs(out - ref)))
    print("KERNEL_OK")
</pallas_src>

<mosaic_0001>
module attributes {stable_mosaic.version = 11 : i64} {
  func.func @_oracle_kernel(%arg0: memref<8x4x16xf32, #tpu.memory_space<vmem>>, %arg1: memref<16x128xf32, #tpu.memory_space<vmem>>, %arg2: memref<32x128xf32, #tpu.memory_space<vmem>>, %arg3: memref<1x128xf32, #tpu.memory_space<vmem>>, %arg4: memref<32x128xf32, #tpu.memory_space<vmem>>, %arg5: memref<32x128xf32, #tpu.memory_space<vmem>>, %arg6: memref<1x128xf32, #tpu.memory_space<vmem>>, %arg7: memref<32x128xf32, #tpu.memory_space<vmem>>, %arg8: memref<4x128xf32, #tpu.memory_space<vmem>>) attributes {dimension_semantics = [], scalar_prefetch = 0 : i64, scratch_operands = 0 : i64, tpu.core_type = #tpu.core_type<tc>} {
    %c0 = arith.constant 0 : index
    %c0_0 = arith.constant 0 : index
    %0 = vector.load %arg1[%c0, %c0_0] : memref<16x128xf32, #tpu.memory_space<vmem>>, vector<16x128xf32>
    %c0_1 = arith.constant 0 : index
    %c0_2 = arith.constant 0 : index
    %1 = vector.load %arg4[%c0_1, %c0_2] : memref<32x128xf32, #tpu.memory_space<vmem>>, vector<32x128xf32>
    %c0_3 = arith.constant 0 : index
    %c0_4 = arith.constant 0 : index
    %2 = vector.load %arg2[%c0_3, %c0_4] : memref<32x128xf32, #tpu.memory_space<vmem>>, vector<32x128xf32>
    %c0_5 = arith.constant 0 : index
    %c0_6 = arith.constant 0 : index
    %3 = vector.load %arg5[%c0_5, %c0_6] : memref<32x128xf32, #tpu.memory_space<vmem>>, vector<32x128xf32>
    %c0_7 = arith.constant 0 : index
    %c0_8 = arith.constant 0 : index
    %4 = vector.load %arg3[%c0_7, %c0_8] : memref<1x128xf32, #tpu.memory_space<vmem>>, vector<1x128xf32>
    %c0_9 = arith.constant 0 : index
    %c0_10 = arith.constant 0 : index
    %5 = vector.load %arg6[%c0_9, %c0_10] : memref<1x128xf32, #tpu.memory_space<vmem>>, vector<1x128xf32>
    %cst = arith.constant 0.000000e+00 : f32
    %6 = vector.broadcast %cst : f32 to vector<4x32xf32>
    %cst_11 = arith.constant 0.000000e+00 : f32
    %7 = vector.broadcast %cst_11 : f32 to vector<4x32xf32>
    %cst_12 = arith.constant 0.000000e+00 : f32
    %8 = vector.broadcast %cst_12 : f32 to vector<4x32xf32>
    %cst_13 = arith.constant 0.000000e+00 : f32
    %9 = vector.broadcast %cst_13 : f32 to vector<4x32xf32>
    %c0_14 = arith.constant 0 : index
    %c0_15 = arith.constant 0 : index
    %c0_16 = arith.constant 0 : index
    %10 = vector.load %arg0[%c0_14, %c0_15, %c0_16] : memref<8x4x16xf32, #tpu.memory_space<vmem>>, vector<1x4x16xf32>
    %11 = vector.shape_cast %10 : vector<1x4x16xf32> to vector<4x16xf32>
    %cst_17 = arith.constant dense<0.000000e+00> : vector<4x128xf32>
    %12 = tpu.matmul %11, %0, %cst_17 {dimension_numbers = #tpu.dot_dimension_numbers<[1], [0], [0], [1], [0, 0, 1, 1], [], []>} : vector<4x16xf32>, vector<16x128xf32>, vector<4x128xf32> -> vector<4x128xf32>
    %13 = vector.broadcast %4 : vector<1x128xf32> to vector<4x128xf32>
    %14 = arith.addf %12, %13 : vector<4x128xf32>
    %cst_18 = arith.constant dense<0.000000e+00> : vector<4x128xf32>
    %15 = tpu.matmul %6, %2, %cst_18 {dimension_numbers = #tpu.dot_dimension_numbers<[1], [0], [0], [1], [0, 0, 1, 1], [], []>} : vector<4x32xf32>, vector<32x128xf32>, vector<4x128xf32> -> vector<4x128xf32>
    %16 = arith.addf %14, %15 : vector<4x128xf32>
    %17 = arith.negf %16 : vector<4x128xf32>
    %18 = math.exp %17 : vector<4x128xf32>
    %cst_19 = arith.constant 1.000000e+00 : f32
    %19 = vector.broadcast %cst_19 : f32 to vector<4x128xf32>
    %20 = arith.addf %19, %18 : vector<4x128xf32>
    %21 = arith.divf %19, %20 : vector<4x128xf32>
    %22 = math.tanh %16 : vector<4x128xf32>
    %23 = vector.extract_strided_slice %21 {offsets = [0, 0], sizes = [4, 32], strides = [1, 1]} : vector<4x128xf32> to vector<4x32xf32>
    %24 = vector.extract_strided_slice %21 {offsets = [0, 32], sizes = [4, 32], strides = [1, 1]} : vector<4x128xf32> to vector<4x32xf32>
    %25 = vector.extract_strided_slice %22 {offsets = [0, 64], sizes = [4, 32], strides = [1, 1]} : vector<4x128xf32> to vector<4x32xf32>
    %26 = vector.extract_strided_slice %21 {offsets = [0, 96], sizes = [4, 32], strides = [1, 1]} : vector<4x128xf32> to vector<4x32xf32>
    %27 = arith.mulf %24, %8 : vector<4x32xf32>
    %28 = arith.mulf %23, %25 : vector<4x32xf32>
    %29 = arith.addf %27, %28 : vector<4x32xf32>
    %30 = math.tanh %29 : vector<4x32xf32>
    %31 = arith.mulf %26, %30 : vector<4x32xf32>
    %c1 = arith.constant 1 : index
    %c0_20 = arith.constant 0 : index
    %c0_21 = arith.constant 0 : index
    %32 = vector.load %arg0[%c1, %c0_20, %c0_21] : memref<8x4x16xf32, #tpu.memory_space<vmem>>, vector<1x4x16xf32>
    %33 = vector.shape_cast %32 : vector<1x4x16xf32> to vector<4x16xf32>
    %cst_22 = arith.constant dense<0.000000e+00> : vector<4x128xf32>
    %34 = tpu.matmul %33, %0, %cst_22 {dimension_numbers = #tpu.dot_dimension_numbers<[1], [0], [0], [1], [0, 0, 1, 1], [], []>} : vector<4x16xf32>, vector<16x128xf32>, vector<4x128xf32> -> vector<4x128xf32>
    %35 = vector.broadcast %4 : vector<1x128xf32> to vector<4x128xf32>
    %36 = arith.addf %34, %35 : vector<4x128xf32>
    %cst_23 = arith.constant dense<0.000000e+00> : vector<4x128xf32>
    %37 = tpu.matmul %31, %2, %cst_23 {dimension_numbers = #tpu.dot_dimension_numbers<[1], [0], [0], [1], [0, 0, 1, 1], [], []>} : vector<4x32xf32>, vector<32x128xf32>, vector<4x128xf32> -> vector<4x128xf32>
    %38 = arith.addf %36, %37 : vector<4x128xf32>
    %39 = arith.negf %38 : vector<4x128xf32>
    %40 = math.exp %39 : vector<4x128xf32>
    %cst_24 = arith.constant 1.000000e+00 : f32
    %41 = vector.broadcast %cst_24 : f32 to vector<4x128xf32>
    %42 = arith.addf %41, %40 : vector<4x128xf32>
    %43 = arith.divf %41, %42 : vector<4x128xf32>
    %44 = math.tanh %38 : vector<4x128xf32>
    %45 = vector.extract_strided_slice %43 {offsets = [0, 0], sizes = [4, 32], strides = [1, 1]} : vector<4x128xf32> to vector<4x32xf32>
    %46 = vector.extract_strided_slice %43 {offsets = [0, 32], sizes = [4, 32], strides = [1, 1]} : vector<4x128xf32> to vector<4x32xf32>
    %47 = vector.extract_strided_slice %44 {offsets = [0, 64], sizes = [4, 32], strides = [1, 1]} : vector<4x128xf32> to vector<4x32xf32>
    %48 = vector.extract_strided_slice %43 {offsets = [0, 96], sizes = [4, 32], strides = [1, 1]} : vector<4x128xf32> to vector<4x32xf32>
    %49 = arith.mulf %46, %29 : vector<4x32xf32>
    %50 = arith.mulf %45, %47 : vector<4x32xf32>
    %51 = arith.addf %49, %50 : vector<4x32xf32>
    %52 = math.tanh %51 : vector<4x32xf32>
    %53 = arith.mulf %48, %52 : vector<4x32xf32>
    %cst_25 = arith.constant dense<0.000000e+00> : vector<4x128xf32>
    %54 = tpu.matmul %31, %1, %cst_25 {dimension_numbers = #tpu.dot_dimension_numbers<[1], [0], [0], [1], [0, 0, 1, 1], [], []>} : vector<4x32xf32>, vector<32x128xf32>, vector<4x128xf32> -> vector<4x128xf32>
    %55 = vector.broadcast %5 : vector<1x128xf32> to vector<4x128xf32>
    %56 = arith.addf %54, %55 : vector<4x128xf32>
    %cst_26 = arith.constant dense<0.000000e+00> : vector<4x128xf32>
    %57 = tpu.matmul %7, %3, %cst_26 {dimension_numbers = #tpu.dot_dimension_numbers<[1], [0], [0], [1], [0, 0, 1, 1], [], []>} : vector<4x32xf32>, vector<32x128xf32>, vector<4x128xf32> -> vector<4x128xf32>
    %58 = arith.addf %56, %57 : vector<4x128xf32>
    %59 = arith.negf %58 : vector<4x128xf32>
    %60 = math.exp %59 : vector<4x128xf32>
    %cst_27 = arith.constant 1.000000e+00 : f32
    %61 = vector.broadcast %cst_27 : f32 to vector<4x128xf32>
    %62 = arith.addf %61, %60 : vector<4x128xf32>
    %63 = arith.divf %61, %62 : vector<4x128xf32>
    %64 = math.tanh %58 : vector<4x128xf32>
    %65 = vector.extract_strided_slice %63 {offsets = [0, 0], sizes = [4, 32], strides = [1, 1]} : vector<4x128xf32> to vector<4x32xf32>
    %66 = vector.extract_strided_slice %63 {offsets = [0, 32], sizes = [4, 32], strides = [1, 1]} : vector<4x128xf32> to vector<4x32xf32>
    %67 = vector.extract_strided_slice %64 {offsets = [0, 64], sizes = [4, 32], strides = [1, 1]} : vector<4x128xf32> to vector<4x32xf32>
    %68 = vector.extract_strided_slice %63 {offsets = [0, 96], sizes = [4, 32], strides = [1, 1]} : vector<4x128xf32> to vector<4x32xf32>
    %69 = arith.mulf %66, %9 : vector<4x32xf32>
    %70 = arith.mulf %65, %67 : vector<4x32xf32>
    %71 = arith.addf %69, %70 : vector<4x32xf32>
    %72 = math.tanh %71 : vector<4x32xf32>
    %73 = arith.mulf %68, %72 : vector<4x32xf32>
    %c2 = arith.constant 2 : index
    %c0_28 = arith.constant 0 : index
    %c0_29 = arith.constant 0 : index
    %74 = vector.load %arg0[%c2, %c0_28, %c0_29] : memref<8x4x16xf32, #tpu.memory_space<vmem>>, vector<1x4x16xf32>
    %75 = vector.shape_cast %74 : vector<1x4x16xf32> to vector<4x16xf32>
    %cst_30 = arith.constant dense<0.000000e+00> : vector<4x128xf32>
    %76 = tpu.matmul %75, %0, %cst_30 {dimension_numbers = #tpu.dot_dimension_numbers<[1], [0], [0], [1], [0, 0, 1, 1], [], []>} : vector<4x16xf32>, vector<16x128xf32>, vector<4x128xf32> -> vector<4x128xf32>
    %77 = vector.broadcast %4 : vector<1x128xf32> to vector<4x128xf32>
    %78 = arith.addf %76, %77 : vector<4x128xf32>
    %cst_31 = arith.constant dense<0.000000e+00> : vector<4x128xf32>
    %79 = tpu.matmul %53, %2, %cst_31 {dimension_numbers = #tpu.dot_dimension_numbers<[1], [0], [0], [1], [0, 0, 1, 1], [], []>} : vector<4x32xf32>, vector<32x128xf32>, vector<4x128xf32> -> vector<4x128xf32>
    %80 = arith.addf %78, %79 : vector<4x128xf32>
    %81 = arith.negf %80 : vector<4x128xf32>
    %82 = math.exp %81 : vector<4x128xf32>
    %cst_32 = arith.constant 1.000000e+00 : f32
    %83 = vector.broadcast %cst_32 : f32 to vector<4x128xf32>
    %84 = arith.addf %83, %82 : vector<4x128xf32>
    %85 = arith.divf %83, %84 : vector<4x128xf32>
    %86 = math.tanh %80 : vector<4x128xf32>
    %87 = vector.extract_strided_slice %85 {offsets = [0, 0], sizes = [4, 32], strides = [1, 1]} : vector<4x128xf32> to vector<4x32xf32>
    %88 = vector.extract_strided_slice %85 {offsets = [0, 32], sizes = [4, 32], strides = [1, 1]} : vector<4x128xf32> to vector<4x32xf32>
    %89 = vector.extract_strided_slice %86 {offsets = [0, 64], sizes = [4, 32], strides = [1, 1]} : vector<4x128xf32> to vector<4x32xf32>
    %90 = vector.extract_strided_slice %85 {offsets = [0, 96], sizes = [4, 32], strides = [1, 1]} : vector<4x128xf32> to vector<4x32xf32>
    %91 = arith.mulf %88, %51 : vector<4x32xf32>
    %92 = arith.mulf %87, %89 : vector<4x32xf32>
    %93 = arith.addf %91, %92 : vector<4x32xf32>
    %94 = math.tanh %93 : vector<4x32xf32>
    %95 = arith.mulf %90, %94 : vector<4x32xf32>
    %cst_33 = arith.constant dense<0.000000e+00> : vector<4x128xf32>
    %96 = tpu.matmul %53, %1, %cst_33 {dimension_numbers = #tpu.dot_dimension_numbers<[1], [0], [0], [1], [0, 0, 1, 1], [], []>} : vector<4x32xf32>, vector<32x128xf32>, vector<4x128xf32> -> vector<4x128xf32>
    %97 = vector.broadcast %5 : vector<1x128xf32> to vector<4x128xf32>
    %98 = arith.addf %96, %97 : vector<4x128xf32>
    %cst_34 = arith.constant dense<0.000000e+00> : vector<4x128xf32>
    %99 = tpu.matmul %73, %3, %cst_34 {dimension_numbers = #tpu.dot_dimension_numbers<[1], [0], [0], [1], [0, 0, 1, 1], [], []>} : vector<4x32xf32>, vector<32x128xf32>, vector<4x128xf32> -> vector<4x128xf32>
    %100 = arith.addf %98, %99 : vector<4x128xf32>
    %101 = arith.negf %100 : vector<4x128xf32>
    %102 = math.exp %101 : vector<4x128xf32>
    %cst_35 = arith.constant 1.000000e+00 : f32
    %103 = vector.broadcast %cst_35 : f32 to vector<4x128xf32>
    %104 = arith.addf %103, %102 : vector<4x128xf32>
    %105 = arith.divf %103, %104 : vector<4x128xf32>
    %106 = math.tanh %100 : vector<4x128xf32>
    %107 = vector.extract_strided_slice %105 {offsets = [0, 0], sizes = [4, 32], strides = [1, 1]} : vector<4x128xf32> to vector<4x32xf32>
    %108 = vector.extract_strided_slice %105 {offsets = [0, 32], sizes = [4, 32], strides = [1, 1]} : vector<4x128xf32> to vector<4x32xf32>
    %109 = vector.extract_strided_slice %106 {offsets = [0, 64], sizes = [4, 32], strides = [1, 1]} : vector<4x128xf32> to vector<4x32xf32>
    %110 = vector.extract_strided_slice %105 {offsets = [0, 96], sizes = [4, 32], strides = [1, 1]} : vector<4x128xf32> to vector<4x32xf32>
    %111 = arith.mulf %108, %71 : vector<4x32xf32>
    %112 = arith.mulf %107, %109 : vector<4x32xf32>
    %113 = arith.addf %111, %112 : vector<4x32xf32>
    %114 = math.tanh %113 : vector<4x32xf32>
    %115 = arith.mulf %110, %114 : vector<4x32xf32>
    %c3 = arith.constant 3 : index
    %c0_36 = arith.constant 0 : index
    %c0_37 = arith.constant 0 : index
    %116 = vector.load %arg0[%c3, %c0_36, %c0_37] : memref<8x4x16xf32, #tpu.memory_space<vmem>>, vector<1x4x16xf32>
    %117 = vector.shape_cast %116 : vector<1x4x16xf32> to vector<4x16xf32>
    %cst_38 = arith.constant dense<0.000000e+00> : vector<4x128xf32>
    %118 = tpu.matmul %117, %0, %cst_38 {dimension_numbers = #tpu.dot_dimension_numbers<[1], [0], [0], [1], [0, 0, 1, 1], [], []>} : vector<4x16xf32>, vector<16x128xf32>, vector<4x128xf32> -> vector<4x128xf32>
    %119 = vector.broadcast %4 : vector<1x128xf32> to vector<4x128xf32>
    %120 = arith.addf %118, %119 : vector<4x128xf32>
    %cst_39 = arith.constant dense<0.000000e+00> : vector<4x128xf32>
    %121 = tpu.matmul %95, %2, %cst_39 {dimension_numbers = #tpu.dot_dimension_numbers<[1], [0], [0], [1], [0, 0, 1, 1], [], []>} : vector<4x32xf32>, vector<32x128xf32>, vector<4x128xf32> -> vector<4x128xf32>
    %122 = arith.addf %120, %121 : vector<4x128xf32>
    %123 = arith.negf %122 : vector<4x128xf32>
    %124 = math.exp %123 : vector<4x128xf32>
    %cst_40 = arith.constant 1.000000e+00 : f32
    %125 = vector.broadcast %cst_40 : f32 to vector<4x128xf32>
    %126 = arith.addf %125, %124 : vector<4x128xf32>
    %127 = arith.divf %125, %126 : vector<4x128xf32>
    %128 = math.tanh %122 : vector<4x128xf32>
    %129 = vector.extract_strided_slice %127 {offsets = [0, 0], sizes = [4, 32], strides = [1, 1]} : vector<4x128xf32> to vector<4x32xf32>
    %130 = vector.extract_strided_slice %127 {offsets = [0, 32], sizes = [4, 32], strides = [1, 1]} : vector<4x128xf32> to vector<4x32xf32>
    %131 = vector.extract_strided_slice %128 {offsets = [0, 64], sizes = [4, 32], strides = [1, 1]} : vector<4x128xf32> to vector<4x32xf32>
    %132 = vector.extract_strided_slice %127 {offsets = [0, 96], sizes = [4, 32], strides = [1, 1]} : vector<4x128xf32> to vector<4x32xf32>
    %133 = arith.mulf %130, %93 : vector<4x32xf32>
    %134 = arith.mulf %129, %131 : vector<4x32xf32>
    %135 = arith.addf %133, %134 : vector<4x32xf32>
    %136 = math.tanh %135 : vector<4x32xf32>
    %137 = arith.mulf %132, %136 : vector<4x32xf32>
    %cst_41 = arith.constant dense<0.000000e+00> : vector<4x128xf32>
    %138 = tpu.matmul %95, %1, %cst_41 {dimension_numbers = #tpu.dot_dimension_numbers<[1], [0], [0], [1], [0, 0, 1, 1], [], []>} : vector<4x32xf32>, vector<32x128xf32>, vector<4x128xf32> -> vector<4x128xf32>
    %139 = vector.broadcast %5 : vector<1x128xf32> to vector<4x128xf32>
    %140 = arith.addf %138, %139 : vector<4x128xf32>
    %cst_42 = arith.constant dense<0.000000e+00> : vector<4x128xf32>
    %141 = tpu.matmul %115, %3, %cst_42 {dimension_numbers = #tpu.dot_dimension_numbers<[1], [0], [0], [1], [0, 0, 1, 1], [], []>} : vector<4x32xf32>, vector<32x128xf32>, vector<4x128xf32> -> vector<4x128xf32>
    %142 = arith.addf %140, %141 : vector<4x128xf32>
    %143 = arith.negf %142 : vector<4x128xf32>
    %144 = math.exp %143 : vector<4x128xf32>
    %cst_43 = arith.constant 1.000000e+00 : f32
    %145 = vector.broadcast %cst_43 : f32 to vector<4x128xf32>
    %146 = arith.addf %145, %144 : vector<4x128xf32>
    %147 = arith.divf %145, %146 : vector<4x128xf32>
    %148 = math.tanh %142 : vector<4x128xf32>
    %149 = vector.extract_strided_slice %147 {offsets = [0, 0], sizes = [4, 32], strides = [1, 1]} : vector<4x128xf32> to vector<4x32xf32>
    %150 = vector.extract_strided_slice %147 {offsets = [0, 32], sizes = [4, 32], strides = [1, 1]} : vector<4x128xf32> to vector<4x32xf32>
    %151 = vector.extract_strided_slice %148 {offsets = [0, 64], sizes = [4, 32], strides = [1, 1]} : vector<4x128xf32> to vector<4x32xf32>
    %152 = vector.extract_strided_slice %147 {offsets = [0, 96], sizes = [4, 32], strides = [1, 1]} : vector<4x128xf32> to vector<4x32xf32>
    %153 = arith.mulf %150, %113 : vector<4x32xf32>
    %154 = arith.mulf %149, %151 : vector<4x32xf32>
    %155 = arith.addf %153, %154 : vector<4x32xf32>
    %156 = math.tanh %155 : vector<4x32xf32>
    %157 = arith.mulf %152, %156 : vector<4x32xf32>
    %c4 = arith.constant 4 : index
    %c0_44 = arith.constant 0 : index
    %c0_45 = arith.constant 0 : index
    %158 = vector.load %arg0[%c4, %c0_44, %c0_45] : memref<8x4x16xf32, #tpu.memory_space<vmem>>, vector<1x4x16xf32>
    %159 = vector.shape_cast %158 : vector<1x4x16xf32> to vector<4x16xf32>
    %cst_46 = arith.constant dense<0.000000e+00> : vector<4x128xf32>
    %160 = tpu.matmul %159, %0, %cst_46 {dimension_numbers = #tpu.dot_dimension_numbers<[1], [0], [0], [1], [0, 0, 1, 1], [], []>} : vector<4x16xf32>, vector<16x128xf32>, vector<4x128xf32> -> vector<4x128xf32>
    %161 = vector.broadcast %4 : vector<1x128xf32> to vector<4x128xf32>
    %162 = arith.addf %160, %161 : vector<4x128xf32>
    %cst_47 = arith.constant dense<0.000000e+00> : vector<4x128xf32>
    %163 = tpu.matmul %137, %2, %cst_47 {dimension_numbers = #tpu.dot_dimension_numbers<[1], [0], [0], [1], [0, 0, 1, 1], [], []>} : vector<4x32xf32>, vector<32x128xf32>, vector<4x128xf32> -> vector<4x128xf32>
    %164 = arith.addf %162, %163 : vector<4x128xf32>
    %165 = arith.negf %164 : vector<4x128xf32>
    %166 = math.exp %165 : vector<4x128xf32>
    %cst_48 = arith.constant 1.000000e+00 : f32
    %167 = vector.broadcast %cst_48 : f32 to vector<4x128xf32>
    %168 = arith.addf %167, %166 : vector<4x128xf32>
    %169 = arith.divf %167, %168 : vector<4x128xf32>
    %170 = math.tanh %164 : vector<4x128xf32>
    %171 = vector.extract_strided_slice %169 {offsets = [0, 0], sizes = [4, 32], strides = [1, 1]} : vector<4x128xf32> to vector<4x32xf32>
    %172 = vector.extract_strided_slice %169 {offsets = [0, 32], sizes = [4, 32], strides = [1, 1]} : vector<4x128xf32> to vector<4x32xf32>
    %173 = vector.extract_strided_slice %170 {offsets = [0, 64], sizes = [4, 32], strides = [1, 1]} : vector<4x128xf32> to vector<4x32xf32>
    %174 = vector.extract_strided_slice %169 {offsets = [0, 96], sizes = [4, 32], strides = [1, 1]} : vector<4x128xf32> to vector<4x32xf32>
    %175 = arith.mulf %172, %135 : vector<4x32xf32>
    %176 = arith.mulf %171, %173 : vector<4x32xf32>
    %177 = arith.addf %175, %176 : vector<4x32xf32>
    %178 = math.tanh %177 : vector<4x32xf32>
    %179 = arith.mulf %174, %178 : vector<4x32xf32>
    %cst_49 = arith.constant dense<0.000000e+00> : vector<4x128xf32>
    %180 = tpu.matmul %137, %1, %cst_49 {dimension_numbers = #tpu.dot_dimension_numbers<[1], [0], [0], [1], [0, 0, 1, 1], [], []>} : vector<4x32xf32>, vector<32x128xf32>, vector<4x128xf32> -> vector<4x128xf32>
    %181 = vector.broadcast %5 : vector<1x128xf32> to vector<4x128xf32>
    %182 = arith.addf %180, %181 : vector<4x128xf32>
    %cst_50 = arith.constant dense<0.000000e+00> : vector<4x128xf32>
    %183 = tpu.matmul %157, %3, %cst_50 {dimension_numbers = #tpu.dot_dimension_numbers<[1], [0], [0], [1], [0, 0, 1, 1], [], []>} : vector<4x32xf32>, vector<32x128xf32>, vector<4x128xf32> -> vector<4x128xf32>
    %184 = arith.addf %182, %183 : vector<4x128xf32>
    %185 = arith.negf %184 : vector<4x128xf32>
    %186 = math.exp %185 : vector<4x128xf32>
    %cst_51 = arith.constant 1.000000e+00 : f32
    %187 = vector.broadcast %cst_51 : f32 to vector<4x128xf32>
    %188 = arith.addf %187, %186 : vector<4x128xf32>
    %189 = arith.divf %187, %188 : vector<4x128xf32>
    %190 = math.tanh %184 : vector<4x128xf32>
    %191 = vector.extract_strided_slice %189 {offsets = [0, 0], sizes = [4, 32], strides = [1, 1]} : vector<4x128xf32> to vector<4x32xf32>
    %192 = vector.extract_strided_slice %189 {offsets = [0, 32], sizes = [4, 32], strides = [1, 1]} : vector<4x128xf32> to vector<4x32xf32>
    %193 = vector.extract_strided_slice %190 {offsets = [0, 64], sizes = [4, 32], strides = [1, 1]} : vector<4x128xf32> to vector<4x32xf32>
    %194 = vector.extract_strided_slice %189 {offsets = [0, 96], sizes = [4, 32], strides = [1, 1]} : vector<4x128xf32> to vector<4x32xf32>
    %195 = arith.mulf %192, %155 : vector<4x32xf32>
    %196 = arith.mulf %191, %193 : vector<4x32xf32>
    %197 = arith.addf %195, %196 : vector<4x32xf32>
    %198 = math.tanh %197 : vector<4x32xf32>
    %199 = arith.mulf %194, %198 : vector<4x32xf32>
    %c5 = arith.constant 5 : index
    %c0_52 = arith.constant 0 : index
    %c0_53 = arith.constant 0 : index
    %200 = vector.load %arg0[%c5, %c0_52, %c0_53] : memref<8x4x16xf32, #tpu.memory_space<vmem>>, vector<1x4x16xf32>
    %201 = vector.shape_cast %200 : vector<1x4x16xf32> to vector<4x16xf32>
    %cst_54 = arith.constant dense<0.000000e+00> : vector<4x128xf32>
    %202 = tpu.matmul %201, %0, %cst_54 {dimension_numbers = #tpu.dot_dimension_numbers<[1], [0], [0], [1], [0, 0, 1, 1], [], []>} : vector<4x16xf32>, vector<16x128xf32>, vector<4x128xf32> -> vector<4x128xf32>
    %203 = vector.broadcast %4 : vector<1x128xf32> to vector<4x128xf32>
    %204 = arith.addf %202, %203 : vector<4x128xf32>
    %cst_55 = arith.constant dense<0.000000e+00> : vector<4x128xf32>
    %205 = tpu.matmul %179, %2, %cst_55 {dimension_numbers = #tpu.dot_dimension_numbers<[1], [0], [0], [1], [0, 0, 1, 1], [], []>} : vector<4x32xf32>, vector<32x128xf32>, vector<4x128xf32> -> vector<4x128xf32>
    %206 = arith.addf %204, %205 : vector<4x128xf32>
    %207 = arith.negf %206 : vector<4x128xf32>
    %208 = math.exp %207 : vector<4x128xf32>
    %cst_56 = arith.constant 1.000000e+00 : f32
    %209 = vector.broadcast %cst_56 : f32 to vector<4x128xf32>
    %210 = arith.addf %209, %208 : vector<4x128xf32>
    %211 = arith.divf %209, %210 : vector<4x128xf32>
    %212 = math.tanh %206 : vector<4x128xf32>
    %213 = vector.extract_strided_slice %211 {offsets = [0, 0], sizes = [4, 32], strides = [1, 1]} : vector<4x128xf32> to vector<4x32xf32>
    %214 = vector.extract_strided_slice %211 {offsets = [0, 32], sizes = [4, 32], strides = [1, 1]} : vector<4x128xf32> to vector<4x32xf32>
    %215 = vector.extract_strided_slice %212 {offsets = [0, 64], sizes = [4, 32], strides = [1, 1]} : vector<4x128xf32> to vector<4x32xf32>
    %216 = vector.extract_strided_slice %211 {offsets = [0, 96], sizes = [4, 32], strides = [1, 1]} : vector<4x128xf32> to vector<4x32xf32>
    %217 = arith.mulf %214, %177 : vector<4x32xf32>
    %218 = arith.mulf %213, %215 : vector<4x32xf32>
    %219 = arith.addf %217, %218 : vector<4x32xf32>
    %220 = math.tanh %219 : vector<4x32xf32>
    %221 = arith.mulf %216, %220 : vector<4x32xf32>
    %cst_57 = arith.constant dense<0.000000e+00> : vector<4x128xf32>
    %222 = tpu.matmul %179, %1, %cst_57 {dimension_numbers = #tpu.dot_dimension_numbers<[1], [0], [0], [1], [0, 0, 1, 1], [], []>} : vector<4x32xf32>, vector<32x128xf32>, vector<4x128xf32> -> vector<4x128xf32>
    %223 = vector.broadcast %5 : vector<1x128xf32> to vector<4x128xf32>
    %224 = arith.addf %222, %223 : vector<4x128xf32>
    %cst_58 = arith.constant dense<0.000000e+00> : vector<4x128xf32>
    %225 = tpu.matmul %199, %3, %cst_58 {dimension_numbers = #tpu.dot_dimension_numbers<[1], [0], [0], [1], [0, 0, 1, 1], [], []>} : vector<4x32xf32>, vector<32x128xf32>, vector<4x128xf32> -> vector<4x128xf32>
    %226 = arith.addf %224, %225 : vector<4x128xf32>
    %227 = arith.negf %226 : vector<4x128xf32>
    %228 = math.exp %227 : vector<4x128xf32>
    %cst_59 = arith.constant 1.000000e+00 : f32
    %229 = vector.broadcast %cst_59 : f32 to vector<4x128xf32>
    %230 = arith.addf %229, %228 : vector<4x128xf32>
    %231 = arith.divf %229, %230 : vector<4x128xf32>
    %232 = math.tanh %226 : vector<4x128xf32>
    %233 = vector.extract_strided_slice %231 {offsets = [0, 0], sizes = [4, 32], strides = [1, 1]} : vector<4x128xf32> to vector<4x32xf32>
    %234 = vector.extract_strided_slice %231 {offsets = [0, 32], sizes = [4, 32], strides = [1, 1]} : vector<4x128xf32> to vector<4x32xf32>
    %235 = vector.extract_strided_slice %232 {offsets = [0, 64], sizes = [4, 32], strides = [1, 1]} : vector<4x128xf32> to vector<4x32xf32>
    %236 = vector.extract_strided_slice %231 {offsets = [0, 96], sizes = [4, 32], strides = [1, 1]} : vector<4x128xf32> to vector<4x32xf32>
    %237 = arith.mulf %234, %197 : vector<4x32xf32>
    %238 = arith.mulf %233, %235 : vector<4x32xf32>
    %239 = arith.addf %237, %238 : vector<4x32xf32>
    %240 = math.tanh %239 : vector<4x32xf32>
    %241 = arith.mulf %236, %240 : vector<4x32xf32>
    %c6 = arith.constant 6 : index
    %c0_60 = arith.constant 0 : index
    %c0_61 = arith.constant 0 : index
    %242 = vector.load %arg0[%c6, %c0_60, %c0_61] : memref<8x4x16xf32, #tpu.memory_space<vmem>>, vector<1x4x16xf32>
    %243 = vector.shape_cast %242 : vector<1x4x16xf32> to vector<4x16xf32>
    %cst_62 = arith.constant dense<0.000000e+00> : vector<4x128xf32>
    %244 = tpu.matmul %243, %0, %cst_62 {dimension_numbers = #tpu.dot_dimension_numbers<[1], [0], [0], [1], [0, 0, 1, 1], [], []>} : vector<4x16xf32>, vector<16x128xf32>, vector<4x128xf32> -> vector<4x128xf32>
    %245 = vector.broadcast %4 : vector<1x128xf32> to vector<4x128xf32>
    %246 = arith.addf %244, %245 : vector<4x128xf32>
    %cst_63 = arith.constant dense<0.000000e+00> : vector<4x128xf32>
    %247 = tpu.matmul %221, %2, %cst_63 {dimension_numbers = #tpu.dot_dimension_numbers<[1], [0], [0], [1], [0, 0, 1, 1], [], []>} : vector<4x32xf32>, vector<32x128xf32>, vector<4x128xf32> -> vector<4x128xf32>
    %248 = arith.addf %246, %247 : vector<4x128xf32>
    %249 = arith.negf %248 : vector<4x128xf32>
    %250 = math.exp %249 : vector<4x128xf32>
    %cst_64 = arith.constant 1.000000e+00 : f32
    %251 = vector.broadcast %cst_64 : f32 to vector<4x128xf32>
    %252 = arith.addf %251, %250 : vector<4x128xf32>
    %253 = arith.divf %251, %252 : vector<4x128xf32>
    %254 = math.tanh %248 : vector<4x128xf32>
    %255 = vector.extract_strided_slice %253 {offsets = [0, 0], sizes = [4, 32], strides = [1, 1]} : vector<4x128xf32> to vector<4x32xf32>
    %256 = vector.extract_strided_slice %253 {offsets = [0, 32], sizes = [4, 32], strides = [1, 1]} : vector<4x128xf32> to vector<4x32xf32>
    %257 = vector.extract_strided_slice %254 {offsets = [0, 64], sizes = [4, 32], strides = [1, 1]} : vector<4x128xf32> to vector<4x32xf32>
    %258 = vector.extract_strided_slice %253 {offsets = [0, 96], sizes = [4, 32], strides = [1, 1]} : vector<4x128xf32> to vector<4x32xf32>
    %259 = arith.mulf %256, %219 : vector<4x32xf32>
    %260 = arith.mulf %255, %257 : vector<4x32xf32>
    %261 = arith.addf %259, %260 : vector<4x32xf32>
    %262 = math.tanh %261 : vector<4x32xf32>
    %263 = arith.mulf %258, %262 : vector<4x32xf32>
    %cst_65 = arith.constant dense<0.000000e+00> : vector<4x128xf32>
    %264 = tpu.matmul %221, %1, %cst_65 {dimension_numbers = #tpu.dot_dimension_numbers<[1], [0], [0], [1], [0, 0, 1, 1], [], []>} : vector<4x32xf32>, vector<32x128xf32>, vector<4x128xf32> -> vector<4x128xf32>
    %265 = vector.broadcast %5 : vector<1x128xf32> to vector<4x128xf32>
    %266 = arith.addf %264, %265 : vector<4x128xf32>
    %cst_66 = arith.constant dense<0.000000e+00> : vector<4x128xf32>
    %267 = tpu.matmul %241, %3, %cst_66 {dimension_numbers = #tpu.dot_dimension_numbers<[1], [0], [0], [1], [0, 0, 1, 1], [], []>} : vector<4x32xf32>, vector<32x128xf32>, vector<4x128xf32> -> vector<4x128xf32>
    %268 = arith.addf %266, %267 : vector<4x128xf32>
    %269 = arith.negf %268 : vector<4x128xf32>
    %270 = math.exp %269 : vector<4x128xf32>
    %cst_67 = arith.constant 1.000000e+00 : f32
    %271 = vector.broadcast %cst_67 : f32 to vector<4x128xf32>
    %272 = arith.addf %271, %270 : vector<4x128xf32>
    %273 = arith.divf %271, %272 : vector<4x128xf32>
    %274 = math.tanh %268 : vector<4x128xf32>
    %275 = vector.extract_strided_slice %273 {offsets = [0, 0], sizes = [4, 32], strides = [1, 1]} : vector<4x128xf32> to vector<4x32xf32>
    %276 = vector.extract_strided_slice %273 {offsets = [0, 32], sizes = [4, 32], strides = [1, 1]} : vector<4x128xf32> to vector<4x32xf32>
    %277 = vector.extract_strided_slice %274 {offsets = [0, 64], sizes = [4, 32], strides = [1, 1]} : vector<4x128xf32> to vector<4x32xf32>
    %278 = vector.extract_strided_slice %273 {offsets = [0, 96], sizes = [4, 32], strides = [1, 1]} : vector<4x128xf32> to vector<4x32xf32>
    %279 = arith.mulf %276, %239 : vector<4x32xf32>
    %280 = arith.mulf %275, %277 : vector<4x32xf32>
    %281 = arith.addf %279, %280 : vector<4x32xf32>
    %282 = math.tanh %281 : vector<4x32xf32>
    %283 = arith.mulf %278, %282 : vector<4x32xf32>
    %c7 = arith.constant 7 : index
    %c0_68 = arith.constant 0 : index
    %c0_69 = arith.constant 0 : index
    %284 = vector.load %arg0[%c7, %c0_68, %c0_69] : memref<8x4x16xf32, #tpu.memory_space<vmem>>, vector<1x4x16xf32>
    %285 = vector.shape_cast %284 : vector<1x4x16xf32> to vector<4x16xf32>
    %cst_70 = arith.constant dense<0.000000e+00> : vector<4x128xf32>
    %286 = tpu.matmul %285, %0, %cst_70 {dimension_numbers = #tpu.dot_dimension_numbers<[1], [0], [0], [1], [0, 0, 1, 1], [], []>} : vector<4x16xf32>, vector<16x128xf32>, vector<4x128xf32> -> vector<4x128xf32>
    %287 = vector.broadcast %4 : vector<1x128xf32> to vector<4x128xf32>
    %288 = arith.addf %286, %287 : vector<4x128xf32>
    %cst_71 = arith.constant dense<0.000000e+00> : vector<4x128xf32>
    %289 = tpu.matmul %263, %2, %cst_71 {dimension_numbers = #tpu.dot_dimension_numbers<[1], [0], [0], [1], [0, 0, 1, 1], [], []>} : vector<4x32xf32>, vector<32x128xf32>, vector<4x128xf32> -> vector<4x128xf32>
    %290 = arith.addf %288, %289 : vector<4x128xf32>
    %291 = arith.negf %290 : vector<4x128xf32>
    %292 = math.exp %291 : vector<4x128xf32>
    %cst_72 = arith.constant 1.000000e+00 : f32
    %293 = vector.broadcast %cst_72 : f32 to vector<4x128xf32>
    %294 = arith.addf %293, %292 : vector<4x128xf32>
    %295 = arith.divf %293, %294 : vector<4x128xf32>
    %296 = math.tanh %290 : vector<4x128xf32>
    %297 = vector.extract_strided_slice %295 {offsets = [0, 0], sizes = [4, 32], strides = [1, 1]} : vector<4x128xf32> to vector<4x32xf32>
    %298 = vector.extract_strided_slice %295 {offsets = [0, 32], sizes = [4, 32], strides = [1, 1]} : vector<4x128xf32> to vector<4x32xf32>
    %299 = vector.extract_strided_slice %296 {offsets = [0, 64], sizes = [4, 32], strides = [1, 1]} : vector<4x128xf32> to vector<4x32xf32>
    %300 = vector.extract_strided_slice %295 {offsets = [0, 96], sizes = [4, 32], strides = [1, 1]} : vector<4x128xf32> to vector<4x32xf32>
    %301 = arith.mulf %298, %261 : vector<4x32xf32>
    %302 = arith.mulf %297, %299 : vector<4x32xf32>
    %303 = arith.addf %301, %302 : vector<4x32xf32>
    %304 = math.tanh %303 : vector<4x32xf32>
    %305 = arith.mulf %300, %304 : vector<4x32xf32>
    %cst_73 = arith.constant dense<0.000000e+00> : vector<4x128xf32>
    %306 = tpu.matmul %263, %1, %cst_73 {dimension_numbers = #tpu.dot_dimension_numbers<[1], [0], [0], [1], [0, 0, 1, 1], [], []>} : vector<4x32xf32>, vector<32x128xf32>, vector<4x128xf32> -> vector<4x128xf32>
    %307 = vector.broadcast %5 : vector<1x128xf32> to vector<4x128xf32>
    %308 = arith.addf %306, %307 : vector<4x128xf32>
    %cst_74 = arith.constant dense<0.000000e+00> : vector<4x128xf32>
    %309 = tpu.matmul %283, %3, %cst_74 {dimension_numbers = #tpu.dot_dimension_numbers<[1], [0], [0], [1], [0, 0, 1, 1], [], []>} : vector<4x32xf32>, vector<32x128xf32>, vector<4x128xf32> -> vector<4x128xf32>
    %310 = arith.addf %308, %309 : vector<4x128xf32>
    %311 = arith.negf %310 : vector<4x128xf32>
    %312 = math.exp %311 : vector<4x128xf32>
    %cst_75 = arith.constant 1.000000e+00 : f32
    %313 = vector.broadcast %cst_75 : f32 to vector<4x128xf32>
    %314 = arith.addf %313, %312 : vector<4x128xf32>
    %315 = arith.divf %313, %314 : vector<4x128xf32>
    %316 = math.tanh %310 : vector<4x128xf32>
    %317 = vector.extract_strided_slice %315 {offsets = [0, 0], sizes = [4, 32], strides = [1, 1]} : vector<4x128xf32> to vector<4x32xf32>
    %318 = vector.extract_strided_slice %315 {offsets = [0, 32], sizes = [4, 32], strides = [1, 1]} : vector<4x128xf32> to vector<4x32xf32>
    %319 = vector.extract_strided_slice %316 {offsets = [0, 64], sizes = [4, 32], strides = [1, 1]} : vector<4x128xf32> to vector<4x32xf32>
    %320 = vector.extract_strided_slice %315 {offsets = [0, 96], sizes = [4, 32], strides = [1, 1]} : vector<4x128xf32> to vector<4x32xf32>
    %321 = arith.mulf %318, %281 : vector<4x32xf32>
    %322 = arith.mulf %317, %319 : vector<4x32xf32>
    %323 = arith.addf %321, %322 : vector<4x32xf32>
    %324 = math.tanh %323 : vector<4x32xf32>
    %325 = arith.mulf %320, %324 : vector<4x32xf32>
    %cst_76 = arith.constant dense<0.000000e+00> : vector<4x128xf32>
    %326 = tpu.matmul %305, %1, %cst_76 {dimension_numbers = #tpu.dot_dimension_numbers<[1], [0], [0], [1], [0, 0, 1, 1], [], []>} : vector<4x32xf32>, vector<32x128xf32>, vector<4x128xf32> -> vector<4x128xf32>
    %327 = vector.broadcast %5 : vector<1x128xf32> to vector<4x128xf32>
    %328 = arith.addf %326, %327 : vector<4x128xf32>
    %cst_77 = arith.constant dense<0.000000e+00> : vector<4x128xf32>
    %329 = tpu.matmul %325, %3, %cst_77 {dimension_numbers = #tpu.dot_dimension_numbers<[1], [0], [0], [1], [0, 0, 1, 1], [], []>} : vector<4x32xf32>, vector<32x128xf32>, vector<4x128xf32> -> vector<4x128xf32>
    %330 = arith.addf %328, %329 : vector<4x128xf32>
    %331 = arith.negf %330 : vector<4x128xf32>
    %332 = math.exp %331 : vector<4x128xf32>
    %cst_78 = arith.constant 1.000000e+00 : f32
    %333 = vector.broadcast %cst_78 : f32 to vector<4x128xf32>
    %334 = arith.addf %333, %332 : vector<4x128xf32>
    %335 = arith.divf %333, %334 : vector<4x128xf32>
    %336 = math.tanh %330 : vector<4x128xf32>
    %337 = vector.extract_strided_slice %335 {offsets = [0, 0], sizes = [4, 32], strides = [1, 1]} : vector<4x128xf32> to vector<4x32xf32>
    %338 = vector.extract_strided_slice %335 {offsets = [0, 32], sizes = [4, 32], strides = [1, 1]} : vector<4x128xf32> to vector<4x32xf32>
    %339 = vector.extract_strided_slice %336 {offsets = [0, 64], sizes = [4, 32], strides = [1, 1]} : vector<4x128xf32> to vector<4x32xf32>
    %340 = vector.extract_strided_slice %335 {offsets = [0, 96], sizes = [4, 32], strides = [1, 1]} : vector<4x128xf32> to vector<4x32xf32>
    %341 = arith.mulf %338, %323 : vector<4x32xf32>
    %342 = arith.mulf %337, %339 : vector<4x32xf32>
    %343 = arith.addf %341, %342 : vector<4x32xf32>
    %344 = math.tanh %343 : vector<4x32xf32>
    %345 = arith.mulf %340, %344 : vector<4x32xf32>
    %c0_79 = arith.constant 0 : index
    %c0_80 = arith.constant 0 : index
    %346 = vector.load %arg7[%c0_79, %c0_80] : memref<32x128xf32, #tpu.memory_space<vmem>>, vector<32x128xf32>
    %cst_81 = arith.constant dense<0.000000e+00> : vector<4x128xf32>
    %347 = tpu.matmul %345, %346, %cst_81 {dimension_numbers = #tpu.dot_dimension_numbers<[1], [0], [0], [1], [0, 0, 1, 1], [], []>} : vector<4x32xf32>, vector<32x128xf32>, vector<4x128xf32> -> vector<4x128xf32>
    %348 = vector.extract_strided_slice %347 {offsets = [0, 0], sizes = [4, 16], strides = [1, 1]} : vector<4x128xf32> to vector<4x16xf32>
    %cst_82 = arith.constant dense<0xFF800000> : vector<4xf32>
    %349 = vector.multi_reduction <maximumf>, %348, %cst_82 [1] : vector<4x16xf32> to vector<4xf32>
    %350 = vector.shape_cast %349 : vector<4xf32> to vector<4x1xf32>
    %351 = vector.shape_cast %350 : vector<4x1xf32> to vector<4x1xf32>
    %352 = vector.broadcast %351 : vector<4x1xf32> to vector<4x16xf32>
    %353 = vector.extract_strided_slice %347 {offsets = [0, 16], sizes = [4, 16], strides = [1, 1]} : vector<4x128xf32> to vector<4x16xf32>
    %cst_83 = arith.constant dense<0xFF800000> : vector<4xf32>
    %354 = vector.multi_reduction <maximumf>, %353, %cst_83 [1] : vector<4x16xf32> to vector<4xf32>
    %355 = vector.shape_cast %354 : vector<4xf32> to vector<4x1xf32>
    %356 = vector.shape_cast %355 : vector<4x1xf32> to vector<4x1xf32>
    %357 = vector.broadcast %356 : vector<4x1xf32> to vector<4x16xf32>
    %358 = vector.extract_strided_slice %347 {offsets = [0, 32], sizes = [4, 16], strides = [1, 1]} : vector<4x128xf32> to vector<4x16xf32>
    %cst_84 = arith.constant dense<0xFF800000> : vector<4xf32>
    %359 = vector.multi_reduction <maximumf>, %358, %cst_84 [1] : vector<4x16xf32> to vector<4xf32>
    %360 = vector.shape_cast %359 : vector<4xf32> to vector<4x1xf32>
    %361 = vector.shape_cast %360 : vector<4x1xf32> to vector<4x1xf32>
    %362 = vector.broadcast %361 : vector<4x1xf32> to vector<4x16xf32>
    %363 = vector.extract_strided_slice %347 {offsets = [0, 48], sizes = [4, 16], strides = [1, 1]} : vector<4x128xf32> to vector<4x16xf32>
    %cst_85 = arith.constant dense<0xFF800000> : vector<4xf32>
    %364 = vector.multi_reduction <maximumf>, %363, %cst_85 [1] : vector<4x16xf32> to vector<4xf32>
    %365 = vector.shape_cast %364 : vector<4xf32> to vector<4x1xf32>
    %366 = vector.shape_cast %365 : vector<4x1xf32> to vector<4x1xf32>
    %367 = vector.broadcast %366 : vector<4x1xf32> to vector<4x16xf32>
    %368 = vector.extract_strided_slice %347 {offsets = [0, 64], sizes = [4, 16], strides = [1, 1]} : vector<4x128xf32> to vector<4x16xf32>
    %cst_86 = arith.constant dense<0xFF800000> : vector<4xf32>
    %369 = vector.multi_reduction <maximumf>, %368, %cst_86 [1] : vector<4x16xf32> to vector<4xf32>
    %370 = vector.shape_cast %369 : vector<4xf32> to vector<4x1xf32>
    %371 = vector.shape_cast %370 : vector<4x1xf32> to vector<4x1xf32>
    %372 = vector.broadcast %371 : vector<4x1xf32> to vector<4x16xf32>
    %373 = vector.extract_strided_slice %347 {offsets = [0, 80], sizes = [4, 16], strides = [1, 1]} : vector<4x128xf32> to vector<4x16xf32>
    %cst_87 = arith.constant dense<0xFF800000> : vector<4xf32>
    %374 = vector.multi_reduction <maximumf>, %373, %cst_87 [1] : vector<4x16xf32> to vector<4xf32>
    %375 = vector.shape_cast %374 : vector<4xf32> to vector<4x1xf32>
    %376 = vector.shape_cast %375 : vector<4x1xf32> to vector<4x1xf32>
    %377 = vector.broadcast %376 : vector<4x1xf32> to vector<4x16xf32>
    %378 = vector.extract_strided_slice %347 {offsets = [0, 96], sizes = [4, 16], strides = [1, 1]} : vector<4x128xf32> to vector<4x16xf32>
    %cst_88 = arith.constant dense<0xFF800000> : vector<4xf32>
    %379 = vector.multi_reduction <maximumf>, %378, %cst_88 [1] : vector<4x16xf32> to vector<4xf32>
    %380 = vector.shape_cast %379 : vector<4xf32> to vector<4x1xf32>
    %381 = vector.shape_cast %380 : vector<4x1xf32> to vector<4x1xf32>
    %382 = vector.broadcast %381 : vector<4x1xf32> to vector<4x16xf32>
    %383 = vector.extract_strided_slice %347 {offsets = [0, 112], sizes = [4, 16], strides = [1, 1]} : vector<4x128xf32> to vector<4x16xf32>
    %cst_89 = arith.constant dense<0xFF800000> : vector<4xf32>
    %384 = vector.multi_reduction <maximumf>, %383, %cst_89 [1] : vector<4x16xf32> to vector<4xf32>
    %385 = vector.shape_cast %384 : vector<4xf32> to vector<4x1xf32>
    %386 = vector.shape_cast %385 : vector<4x1xf32> to vector<4x1xf32>
    %387 = vector.broadcast %386 : vector<4x1xf32> to vector<4x16xf32>
    %388 = tpu.concatenate %352, %357, %362, %367, %372, %377, %382, %387 in 1 : vector<4x16xf32>, vector<4x16xf32>, vector<4x16xf32>, vector<4x16xf32>, vector<4x16xf32>, vector<4x16xf32>, vector<4x16xf32>, vector<4x16xf32> -> vector<4x128xf32>
    %389 = arith.subf %347, %388 : vector<4x128xf32>
    %390 = math.exp %389 : vector<4x128xf32>
    %391 = vector.extract_strided_slice %390 {offsets = [0, 0], sizes = [4, 16], strides = [1, 1]} : vector<4x128xf32> to vector<4x16xf32>
    %cst_90 = arith.constant dense<0.000000e+00> : vector<4xf32>
    %392 = vector.multi_reduction <add>, %391, %cst_90 [1] : vector<4x16xf32> to vector<4xf32>
    %393 = vector.shape_cast %392 : vector<4xf32> to vector<4x1xf32>
    %394 = vector.shape_cast %393 : vector<4x1xf32> to vector<4x1xf32>
    %395 = vector.broadcast %394 : vector<4x1xf32> to vector<4x16xf32>
    %396 = vector.extract_strided_slice %390 {offsets = [0, 16], sizes = [4, 16], strides = [1, 1]} : vector<4x128xf32> to vector<4x16xf32>
    %cst_91 = arith.constant dense<0.000000e+00> : vector<4xf32>
    %397 = vector.multi_reduction <add>, %396, %cst_91 [1] : vector<4x16xf32> to vector<4xf32>
    %398 = vector.shape_cast %397 : vector<4xf32> to vector<4x1xf32>
    %399 = vector.shape_cast %398 : vector<4x1xf32> to vector<4x1xf32>
    %400 = vector.broadcast %399 : vector<4x1xf32> to vector<4x16xf32>
    %401 = vector.extract_strided_slice %390 {offsets = [0, 32], sizes = [4, 16], strides = [1, 1]} : vector<4x128xf32> to vector<4x16xf32>
    %cst_92 = arith.constant dense<0.000000e+00> : vector<4xf32>
    %402 = vector.multi_reduction <add>, %401, %cst_92 [1] : vector<4x16xf32> to vector<4xf32>
    %403 = vector.shape_cast %402 : vector<4xf32> to vector<4x1xf32>
    %404 = vector.shape_cast %403 : vector<4x1xf32> to vector<4x1xf32>
    %405 = vector.broadcast %404 : vector<4x1xf32> to vector<4x16xf32>
    %406 = vector.extract_strided_slice %390 {offsets = [0, 48], sizes = [4, 16], strides = [1, 1]} : vector<4x128xf32> to vector<4x16xf32>
    %cst_93 = arith.constant dense<0.000000e+00> : vector<4xf32>
    %407 = vector.multi_reduction <add>, %406, %cst_93 [1] : vector<4x16xf32> to vector<4xf32>
    %408 = vector.shape_cast %407 : vector<4xf32> to vector<4x1xf32>
    %409 = vector.shape_cast %408 : vector<4x1xf32> to vector<4x1xf32>
    %410 = vector.broadcast %409 : vector<4x1xf32> to vector<4x16xf32>
    %411 = vector.extract_strided_slice %390 {offsets = [0, 64], sizes = [4, 16], strides = [1, 1]} : vector<4x128xf32> to vector<4x16xf32>
    %cst_94 = arith.constant dense<0.000000e+00> : vector<4xf32>
    %412 = vector.multi_reduction <add>, %411, %cst_94 [1] : vector<4x16xf32> to vector<4xf32>
    %413 = vector.shape_cast %412 : vector<4xf32> to vector<4x1xf32>
    %414 = vector.shape_cast %413 : vector<4x1xf32> to vector<4x1xf32>
    %415 = vector.broadcast %414 : vector<4x1xf32> to vector<4x16xf32>
    %416 = vector.extract_strided_slice %390 {offsets = [0, 80], sizes = [4, 16], strides = [1, 1]} : vector<4x128xf32> to vector<4x16xf32>
    %cst_95 = arith.constant dense<0.000000e+00> : vector<4xf32>
    %417 = vector.multi_reduction <add>, %416, %cst_95 [1] : vector<4x16xf32> to vector<4xf32>
    %418 = vector.shape_cast %417 : vector<4xf32> to vector<4x1xf32>
    %419 = vector.shape_cast %418 : vector<4x1xf32> to vector<4x1xf32>
    %420 = vector.broadcast %419 : vector<4x1xf32> to vector<4x16xf32>
    %421 = vector.extract_strided_slice %390 {offsets = [0, 96], sizes = [4, 16], strides = [1, 1]} : vector<4x128xf32> to vector<4x16xf32>
    %cst_96 = arith.constant dense<0.000000e+00> : vector<4xf32>
    %422 = vector.multi_reduction <add>, %421, %cst_96 [1] : vector<4x16xf32> to vector<4xf32>
    %423 = vector.shape_cast %422 : vector<4xf32> to vector<4x1xf32>
    %424 = vector.shape_cast %423 : vector<4x1xf32> to vector<4x1xf32>
    %425 = vector.broadcast %424 : vector<4x1xf32> to vector<4x16xf32>
    %426 = vector.extract_strided_slice %390 {offsets = [0, 112], sizes = [4, 16], strides = [1, 1]} : vector<4x128xf32> to vector<4x16xf32>
    %cst_97 = arith.constant dense<0.000000e+00> : vector<4xf32>
    %427 = vector.multi_reduction <add>, %426, %cst_97 [1] : vector<4x16xf32> to vector<4xf32>
    %428 = vector.shape_cast %427 : vector<4xf32> to vector<4x1xf32>
    %429 = vector.shape_cast %428 : vector<4x1xf32> to vector<4x1xf32>
    %430 = vector.broadcast %429 : vector<4x1xf32> to vector<4x16xf32>
    %431 = tpu.concatenate %395, %400, %405, %410, %415, %420, %425, %430 in 1 : vector<4x16xf32>, vector<4x16xf32>, vector<4x16xf32>, vector<4x16xf32>, vector<4x16xf32>, vector<4x16xf32>, vector<4x16xf32>, vector<4x16xf32> -> vector<4x128xf32>
    %432 = math.log %431 : vector<4x128xf32>
    %433 = arith.subf %389, %432 : vector<4x128xf32>
    %c0_98 = arith.constant 0 : index
    %c0_99 = arith.constant 0 : index
    %434 = vector.load %arg8[%c0_98, %c0_99] : memref<4x128xf32, #tpu.memory_space<vmem>>, vector<4x128xf32>
    tpu.vector_store %arg8[%c0_98, %c0_99], %433 {strides = array<i32>} : memref<4x128xf32, #tpu.memory_space<vmem>>, vector<4x128xf32>,
    return
  }
}

</mosaic_0001>

<llo_original>
// kernel: oracle_forward.1
$region0: #{oracle_forward.1}
  #allocation0 [shape = 'u32[]', space=smem, size = 0x4, offset = 0x4, fixed_abs, tag = 'smem constant byte address 0x4 - core index']
  #allocation1 [shape = 'u32[144,128]{1,0:T(1,128)}', space=vmem, size = 0x12000, scoped, tag = 'internal scratch']
  %s0 = inlined_call_operand.hbm [shape: f32[8,4,16], index: 0, kind: input, shape index: {}]
  %s1 = inlined_call_operand.hbm [shape: f32[16,128], index: 1, kind: input, shape index: {}]
  %s2 = inlined_call_operand.hbm [shape: f32[32,128], index: 2, kind: input, shape index: {}]
  %s3 = inlined_call_operand.vmem [shape: f32[1,128], index: 3, kind: input, shape index: {}]
  %s4 = inlined_call_operand.hbm [shape: f32[32,128], index: 4, kind: input, shape index: {}]
  %s5 = inlined_call_operand.hbm [shape: f32[32,128], index: 5, kind: input, shape index: {}]
  %s6 = inlined_call_operand.vmem [shape: f32[1,128], index: 6, kind: input, shape index: {}]
  %s7 = inlined_call_operand.hbm [shape: f32[32,128], index: 7, kind: input, shape index: {}]
  %s8 = inlined_call_operand.vmem [shape: f32[4,128], index: 8, kind: output, shape index: {}]
  %s9 = sld [smem:[#allocation0]]
  $region66: #{oracle_forward.1} parent=0
    _
  %s11 = ssub.s32 1, %s9
  %s12 = scalar_select 0, %s11, %s9
  $region1: #{oracle_forward.1} parent=0
    #allocation2 [shape = 'u8[16384]{0}', space=vmem, size = 0x4000, scoped, tag = 'input window, operand 0, single buffered']
    #allocation3 [shape = 's32[1]{0}', space=sflag, size = 0x4, scoped, tag = 'scoped memory for oracle_forward.1']
    #allocation4 [shape = 'u8[8192]{0}', space=vmem, size = 0x2000, scoped, tag = 'input window, operand 1, single buffered']
    #allocation5 [shape = 's32[1]{0}', space=sflag, size = 0x4, scoped, tag = 'scoped memory for oracle_forward.1']
    #allocation6 [shape = 'u8[16384]{0}', space=vmem, size = 0x4000, scoped, tag = 'input window, operand 2, single buffered']
    #allocation7 [shape = 'u8[16384]{0}', space=vmem, size = 0x4000, scoped, tag = 'input window, operand 4, single buffered']
    #allocation8 [shape = 's32[1]{0}', space=sflag, size = 0x4, scoped, tag = 'scoped memory for oracle_forward.1']
    #allocation9 [shape = 'u8[16384]{0}', space=vmem, size = 0x4000, scoped, tag = 'input window, operand 5, single buffered']
    #allocation10 [shape = 'u8[16384]{0}', space=vmem, size = 0x4000, scoped, tag = 'input window, operand 7, single buffered']
    #allocation11 [shape = 's32[1]{0}', space=sflag, size = 0x4, scoped, tag = 'scoped memory for oracle_forward.1']
    %13 = vsyncpa [#allocation3], 0
    %14 = vsyncpa [#allocation5], 0
    %15 = vsyncpa [#allocation8], 0
    %16 = vsyncpa [#allocation11], 0
    // Predicated region
    $region2: #{oracle_forward.1} parent=1 // pred_check
      _
    $region3: #{oracle_forward.1} parent=1 // pred_check_branch
      %18 = sbr.rel (0) target = $region5
    $region4: #{oracle_forward.1} parent=1 // pred_region
      %s20 = ssub.s32 512, 512
      %21 = vsyncadd [#allocation3], %s20
      %s22 = sshll.u32 [#allocation2], 4
      %s23 = int_to_ptr.vmem [resolvable:$true] %s22
      %28 = dma.hbm_to_vmem [thread:$0]  %s0, 512, %s23, [#allocation3], 64, 64, 4
    $region5: #{oracle_forward.1} parent=1 // pred_fallthru
      _
    // Predicated region
    $region6: #{oracle_forward.1} parent=1 // pred_check
      _
    $region7: #{oracle_forward.1} parent=1 // pred_check_branch
      %30 = sbr.rel (0) target = $region9
    $region8: #{oracle_forward.1} parent=1 // pred_region
      %s32 = ssub.s32 256, 256
      %33 = vsyncadd [#allocation5], %s32
      %s34 = sshll.u32 [#allocation4], 4
      %s35 = int_to_ptr.vmem [resolvable:$true] %s34
      %40 = dma.hbm_to_vmem [thread:$0]  %s1, 256, %s35, [#allocation5], 128, 128, 8
    $region9: #{oracle_forward.1} parent=1 // pred_fallthru
      _
    // Predicated region
    $region10: #{oracle_forward.1} parent=1 // pred_check
      _
    $region11: #{oracle_forward.1} parent=1 // pred_check_branch
      %42 = sbr.rel (0) target = $region13
    $region12: #{oracle_forward.1} parent=1 // pred_region
      %s44 = ssub.s32 512, 512
      %45 = vsyncadd [#allocation5], %s44
      %s46 = sshll.u32 [#allocation6], 4
      %s47 = int_to_ptr.vmem [resolvable:$true] %s46
      %52 = dma.hbm_to_vmem [thread:$0]  %s2, 512, %s47, [#allocation5], 128, 128, 8
    $region13: #{oracle_forward.1} parent=1 // pred_fallthru
      _
    // Predicated region
    $region14: #{oracle_forward.1} parent=1 // pred_check
      _
    $region15: #{oracle_forward.1} parent=1 // pred_check_branch
      %54 = sbr.rel (0) target = $region17
    $region16: #{oracle_forward.1} parent=1 // pred_region
      _
    $region17: #{oracle_forward.1} parent=1 // pred_fallthru
      _
    // Predicated region
    $region18: #{oracle_forward.1} parent=1 // pred_check
      _
    $region19: #{oracle_forward.1} parent=1 // pred_check_branch
      %56 = sbr.rel (0) target = $region21
    $region20: #{oracle_forward.1} parent=1 // pred_region
      %s58 = ssub.s32 512, 512
      %59 = vsyncadd [#allocation8], %s58
      %s60 = sshll.u32 [#allocation7], 4
      %s61 = int_to_ptr.vmem [resolvable:$true] %s60
      %66 = dma.hbm_to_vmem [thread:$0]  %s4, 512, %s61, [#allocation8], 128, 128, 8
    $region21: #{oracle_forward.1} parent=1 // pred_fallthru
      _
    // Predicated region
    $region22: #{oracle_forward.1} parent=1 // pred_check
      _
    $region23: #{oracle_forward.1} parent=1 // pred_check_branch
      %68 = sbr.rel (0) target = $region25
    $region24: #{oracle_forward.1} parent=1 // pred_region
      %s70 = ssub.s32 512, 512
      %71 = vsyncadd [#allocation8], %s70
      %s72 = sshll.u32 [#allocation9], 4
      %s73 = int_to_ptr.vmem [resolvable:$true] %s72
      %78 = dma.hbm_to_vmem [thread:$0]  %s5, 512, %s73, [#allocation8], 128, 128, 8
    $region25: #{oracle_forward.1} parent=1 // pred_fallthru
      _
    // Predicated region
    $region26: #{oracle_forward.1} parent=1 // pred_check
      _
    $region27: #{oracle_forward.1} parent=1 // pred_check_branch
      %80 = sbr.rel (0) target = $region29
    $region28: #{oracle_forward.1} parent=1 // pred_region
      _
    $region29: #{oracle_forward.1} parent=1 // pred_fallthru
      _
    // Predicated region
    $region30: #{oracle_forward.1} parent=1 // pred_check
      _
    $region31: #{oracle_forward.1} parent=1 // pred_check_branch
      %82 = sbr.rel (0) target = $region33
    $region32: #{oracle_forward.1} parent=1 // pred_region
      %s84 = ssub.s32 512, 512
      %85 = vsyncadd [#allocation11], %s84
      %s86 = sshll.u32 [#allocation10], 4
      %s87 = int_to_ptr.vmem [resolvable:$true] %s86
      %92 = dma.hbm_to_vmem [thread:$0]  %s7, 512, %s87, [#allocation11], 128, 128, 8
    $region33: #{oracle_forward.1} parent=1 // pred_fallthru
      _
    // Predicated region
    $region34: #{oracle_forward.1} parent=1 // pred_check
      _
    $region35: #{oracle_forward.1} parent=1 // pred_check_branch
      %94 = sbr.rel (0) target = $region37
    $region36: #{oracle_forward.1} parent=1 // pred_region
      %95 = dma.done [#allocation3], 512
    $region37: #{oracle_forward.1} parent=1 // pred_fallthru
      _
    // Predicated region
    $region38: #{oracle_forward.1} parent=1 // pred_check
      _
    $region39: #{oracle_forward.1} parent=1 // pred_check_branch
      %97 = sbr.rel (0) target = $region41
    $region40: #{oracle_forward.1} parent=1 // pred_region
      %98 = dma.done [#allocation5], 256
    $region41: #{oracle_forward.1} parent=1 // pred_fallthru
      _
    // Predicated region
    $region42: #{oracle_forward.1} parent=1 // pred_check
      _
    $region43: #{oracle_forward.1} parent=1 // pred_check_branch
      %100 = sbr.rel (0) target = $region45
    $region44: #{oracle_forward.1} parent=1 // pred_region
      %101 = dma.done [#allocation5], 512
    $region45: #{oracle_forward.1} parent=1 // pred_fallthru
      _
    // Predicated region
    $region46: #{oracle_forward.1} parent=1 // pred_check
      _
    $region47: #{oracle_forward.1} parent=1 // pred_check_branch
      %103 = sbr.rel (0) target = $region49
    $region48: #{oracle_forward.1} parent=1 // pred_region
      %104 = dma.done [#allocation8], 512
    $region49: #{oracle_forward.1} parent=1 // pred_fallthru
      _
    // Predicated region
    $region50: #{oracle_forward.1} parent=1 // pred_check
      _
    $region51: #{oracle_forward.1} parent=1 // pred_check_branch
      %106 = sbr.rel (0) target = $region53
    $region52: #{oracle_forward.1} parent=1 // pred_region
      %107 = dma.done [#allocation8], 512
    $region53: #{oracle_forward.1} parent=1 // pred_fallthru
      _
    // Predicated region
    $region54: #{oracle_forward.1} parent=1 // pred_check
      _
    $region55: #{oracle_forward.1} parent=1 // pred_check_branch
      %109 = sbr.rel (0) target = $region57
    $region56: #{oracle_forward.1} parent=1 // pred_region
      %110 = dma.done [#allocation11], 512
    $region57: #{oracle_forward.1} parent=1 // pred_fallthru
      _
    %v111 = vld [vmem:[#allocation4] sm:$0xff]
    %v112 = vld [vmem:[#allocation4 + $0x8] sm:$0xff]
    %v113 = vld [vmem:[#allocation7] sm:$0xff]
    %v114 = vld [vmem:[#allocation7 + $0x8] sm:$0xff]
    %v115 = vld [vmem:[#allocation7 + $0x10] sm:$0xff]
    %v116 = vld [vmem:[#allocation7 + $0x18] sm:$0xff]
    %v117 = vld [vmem:[#allocation6] sm:$0xff]
    %v118 = vld [vmem:[#allocation6 + $0x8] sm:$0xff]
    %v119 = vld [vmem:[#allocation6 + $0x10] sm:$0xff]
    %v120 = vld [vmem:[#allocation6 + $0x18] sm:$0xff]
    %v121 = vld [vmem:[#allocation9] sm:$0xff]
    %v122 = vld [vmem:[#allocation9 + $0x8] sm:$0xff]
    %v123 = vld [vmem:[#allocation9 + $0x10] sm:$0xff]
    %v124 = vld [vmem:[#allocation9 + $0x18] sm:$0xff]
    %v125 = vld [vmem:[%s3] sm:$0x1]
    %v126 = vld [vmem:[%s6] sm:$0x1]
    %v127 = vld [vmem:[#allocation2] sm:$0xf]
    %v129 = vlaneseq
    %v130 = vshrl.u32 %v129, 7
    %v131 = vsub.s32 0, %v130
    %v132 = vrot.slane %v125, %v131
    %vm134 = vcmask 130048
    %v136 = vsel %vm134, %v127, 0
    %138 = vmatprep.subr.mxu0 0.0
    %139 = vmatpush1.msra.mxu0 %v111
    %140 = vmatprep.subr.mxu0 0.0
    %141 = vmatpush1.msra.mxu0 %v112
    %142 = vmatprep.subr.mxu0 0.0
    %143 = vmatpush1.msra.mxu0 0.0
    %144 = vmatprep.subr.mxu0 0.0
    %145 = vmatpush1.msra.mxu0 0.0
    %146 = vmatprep.subr.mxu0 0.0
    %147 = vmatpush1.msra.mxu0 0.0
    %148 = vmatprep.subr.mxu0 0.0
    %149 = vmatpush1.msra.mxu0 0.0
    %150 = vmatprep.subr.mxu0 0.0
    %151 = vmatpush1.msra.mxu0 0.0
    %152 = vmatprep.subr.mxu0 0.0
    %153 = vmatpush1.msra.mxu0 0.0
    %154 = vmatprep.subr.mxu0 0.0
    %155 = vmatpush1.msra.mxu0 0.0
    %156 = vmatprep.subr.mxu0 0.0
    %157 = vmatpush1.msra.mxu0 0.0
    %158 = vmatprep.subr.mxu0 0.0
    %159 = vmatpush1.msra.mxu0 0.0
    %160 = vmatprep.subr.mxu0 0.0
    %161 = vmatpush1.msra.mxu0 0.0
    %162 = vmatprep.subr.mxu0 0.0
    %163 = vmatpush1.msra.mxu0 0.0
    %164 = vmatprep.subr.mxu0 0.0
    %165 = vmatpush1.msra.mxu0 0.0
    %166 = vmatprep.subr.mxu0 0.0
    %167 = vmatpush1.msra.mxu0 0.0
    %168 = vmatprep.subr.mxu0 0.0
    %169 = vmatpush1.msra.mxu0 0.0
    %170 = vmatprep.subr.mxu0 0.0
    %171 = vmatpush1.msra.mxu0 0.0
    %172 = vmatprep.subr.mxu0 0.0
    %173 = vmatpush1.msra.mxu0 0.0
    %174 = vmatprep.subr.mxu0 0.0
    %175 = vmatpush1.msra.mxu0 0.0
    %176 = vmatprep.subr.mxu0 0.0
    %177 = vmatpush1.msra.mxu0 0.0
    %178 = vmatprep.subr.mxu0 0.0
    %179 = vmatpush1.msra.mxu0 0.0
    %180 = vmatprep.subr.mxu0 0.0
    %181 = vmatpush1.msra.mxu0 0.0
    %182 = vmatprep.subr.mxu0 0.0
    %183 = vmatpush1.msra.mxu0 0.0
    %184 = vmatprep.subr.mxu0 0.0
    %185 = vmatpush1.msra.mxu0 0.0
    %186 = vmatprep.subr.mxu0 0.0
    %187 = vmatpush1.msra.mxu0 0.0
    %188 = vmatprep.subr.mxu0 0.0
    %189 = vmatpush1.msra.mxu0 0.0
    %190 = vmatprep.subr.mxu0 0.0
    %191 = vmatpush1.msra.mxu0 0.0
    %192 = vmatprep.subr.mxu0 0.0
    %193 = vmatpush1.msra.mxu0 0.0
    %194 = vmatprep.subr.mxu0 0.0
    %195 = vmatpush1.msra.mxu0 0.0
    %196 = vmatprep.subr.mxu0 0.0
    %197 = vmatpush1.msra.mxu0 0.0
    %198 = vmatprep.subr.mxu0 0.0
    %199 = vmatpush1.msra.mxu0 0.0
    %200 = vmatprep.subr.mxu0 0.0
    %201 = vmatpush1.msra.mxu0 0.0
    %202 = vmatprep.mubr.f32.mxu0 0.0
    %203 = vmatmul.mubr.f32.gmra.mrb[0].mxu0 %v136
    %v204 = vpop.f32.mrb[0].mxu0
    %v205 = vadd.f32 %v132, %v204
    %v206 = vpop.f32.mrb[0].mxu0
    %207 = vdwg.mxu0
    %vm208 = vcmask 261120
    %v210 = vsel %vm208, 0.0, 0
    %212 = vmatprep.subr.mxu0 0.0
    %213 = vmatpush1.msra.mxu0 %v117
    %214 = vmatprep.subr.mxu0 0.0
    %215 = vmatpush1.msra.mxu0 %v118
    %216 = vmatprep.subr.mxu0 0.0
    %217 = vmatpush1.msra.mxu0 %v119
    %218 = vmatprep.subr.mxu0 0.0
    %219 = vmatpush1.msra.mxu0 %v120
    %220 = vmatprep.subr.mxu0 0.0
    %221 = vmatpush1.msra.mxu0 0.0
    %222 = vmatprep.subr.mxu0 0.0
    %223 = vmatpush1.msra.mxu0 0.0
    %224 = vmatprep.subr.mxu0 0.0
    %225 = vmatpush1.msra.mxu0 0.0
    %226 = vmatprep.subr.mxu0 0.0
    %227 = vmatpush1.msra.mxu0 0.0
    %228 = vmatprep.subr.mxu0 0.0
    %229 = vmatpush1.msra.mxu0 0.0
    %230 = vmatprep.subr.mxu0 0.0
    %231 = vmatpush1.msra.mxu0 0.0
    %232 = vmatprep.subr.mxu0 0.0
    %233 = vmatpush1.msra.mxu0 0.0
    %234 = vmatprep.subr.mxu0 0.0
    %235 = vmatpush1.msra.mxu0 0.0
    %236 = vmatprep.subr.mxu0 0.0
    %237 = vmatpush1.msra.mxu0 0.0
    %238 = vmatprep.subr.mxu0 0.0
    %239 = vmatpush1.msra.mxu0 0.0
    %240 = vmatprep.subr.mxu0 0.0
    %241 = vmatpush1.msra.mxu0 0.0
    %242 = vmatprep.subr.mxu0 0.0
    %243 = vmatpush1.msra.mxu0 0.0
    %244 = vmatprep.subr.mxu0 0.0
    %245 = vmatpush1.msra.mxu0 0.0
    %246 = vmatprep.subr.mxu0 0.0
    %247 = vmatpush1.msra.mxu0 0.0
    %248 = vmatprep.subr.mxu0 0.0
    %249 = vmatpush1.msra.mxu0 0.0
    %250 = vmatprep.subr.mxu0 0.0
    %251 = vmatpush1.msra.mxu0 0.0
    %252 = vmatprep.subr.mxu0 0.0
    %253 = vmatpush1.msra.mxu0 0.0
    %254 = vmatprep.subr.mxu0 0.0
    %255 = vmatpush1.msra.mxu0 0.0
    %256 = vmatprep.subr.mxu0 0.0
    %257 = vmatpush1.msra.mxu0 0.0
    %258 = vmatprep.subr.mxu0 0.0
    %259 = vmatpush1.msra.mxu0 0.0
    %260 = vmatprep.subr.mxu0 0.0
    %261 = vmatpush1.msra.mxu0 0.0
    %262 = vmatprep.subr.mxu0 0.0
    %263 = vmatpush1.msra.mxu0 0.0
    %264 = vmatprep.subr.mxu0 0.0
    %265 = vmatpush1.msra.mxu0 0.0
    %266 = vmatprep.subr.mxu0 0.0
    %267 = vmatpush1.msra.mxu0 0.0
    %268 = vmatprep.subr.mxu0 0.0
    %269 = vmatpush1.msra.mxu0 0.0
    %270 = vmatprep.subr.mxu0 0.0
    %271 = vmatpush1.msra.mxu0 0.0
    %272 = vmatprep.subr.mxu0 0.0
    %273 = vmatpush1.msra.mxu0 0.0
    %274 = vmatprep.subr.mxu0 0.0
    %275 = vmatpush1.msra.mxu0 0.0
    %276 = vmatprep.mubr.f32.mxu0 0.0
    %277 = vmatmul.mubr.f32.gmra.mrb[0].mxu0 %v210
    %v278 = vpop.f32.mrb[0].mxu0
    %v279 = vadd.f32 0.0, %v278
    %v280 = vpop.f32.mrb[0].mxu0
    %281 = vdwg.mxu0
    %v282 = vadd.f32 %v205, %v279
    %v283 = vxor.u32 %v282, 2147483648
    %v284 = vmul.f32 %v283, 1.442695
    %v285 = vpow.pop %v284
    %v286 = vadd.f32 %v285, 1.0
    %v287 = vrcp.pop %v286
    %v288 = vmul.f32 1.0, %v287
    %v289 = vtanh.pop %v282
    %v290 = vmul.f32 %v288, 0.0
    %292 = vrot.lane.b32.xlu0 %v289, 64
    %v293 = vpop.permute.xlu0 %292
    %v295 = vmul.f32 %v288, %v293
    %297 = vrot.lane.b32.xlu0 %v295, 32
    %v298 = vpop.permute.xlu0 %297
    %v300 = vadd.f32 %v290, %v298
    %v301 = vtanh.pop %v300
    %303 = vrot.lane.b32.xlu0 %v301, 64
    %v304 = vpop.permute.xlu0 %303
    %v306 = vmul.f32 %v288, %v304
    %s307 = scalar_lea.vmem [#allocation2], 4
    %v308 = vld [vmem:[%s307] sm:$0xf]
    %v310 = vsel %vm134, %v308, 0
    %312 = vmatprep.subr.mxu0 0.0
    %313 = vmatpush1.msra.mxu0 %v111
    %314 = vmatprep.subr.mxu0 0.0
    %315 = vmatpush1.msra.mxu0 %v112
    %316 = vmatprep.subr.mxu0 0.0
    %317 = vmatpush1.msra.mxu0 0.0
    %318 = vmatprep.subr.mxu0 0.0
    %319 = vmatpush1.msra.mxu0 0.0
    %320 = vmatprep.subr.mxu0 0.0
    %321 = vmatpush1.msra.mxu0 0.0
    %322 = vmatprep.subr.mxu0 0.0
    %323 = vmatpush1.msra.mxu0 0.0
    %324 = vmatprep.subr.mxu0 0.0
    %325 = vmatpush1.msra.mxu0 0.0
    %326 = vmatprep.subr.mxu0 0.0
    %327 = vmatpush1.msra.mxu0 0.0
    %328 = vmatprep.subr.mxu0 0.0
    %329 = vmatpush1.msra.mxu0 0.0
    %330 = vmatprep.subr.mxu0 0.0
    %331 = vmatpush1.msra.mxu0 0.0
    %332 = vmatprep.subr.mxu0 0.0
    %333 = vmatpush1.msra.mxu0 0.0
    %334 = vmatprep.subr.mxu0 0.0
    %335 = vmatpush1.msra.mxu0 0.0
    %336 = vmatprep.subr.mxu0 0.0
    %337 = vmatpush1.msra.mxu0 0.0
    %338 = vmatprep.subr.mxu0 0.0
    %339 = vmatpush1.msra.mxu0 0.0
    %340 = vmatprep.subr.mxu0 0.0
    %341 = vmatpush1.msra.mxu0 0.0
    %342 = vmatprep.subr.mxu0 0.0
    %343 = vmatpush1.msra.mxu0 0.0
    %344 = vmatprep.subr.mxu0 0.0
    %345 = vmatpush1.msra.mxu0 0.0
    %346 = vmatprep.subr.mxu0 0.0
    %347 = vmatpush1.msra.mxu0 0.0
    %348 = vmatprep.subr.mxu0 0.0
    %349 = vmatpush1.msra.mxu0 0.0
    %350 = vmatprep.subr.mxu0 0.0
    %351 = vmatpush1.msra.mxu0 0.0
    %352 = vmatprep.subr.mxu0 0.0
    %353 = vmatpush1.msra.mxu0 0.0
    %354 = vmatprep.subr.mxu0 0.0
    %355 = vmatpush1.msra.mxu0 0.0
    %356 = vmatprep.subr.mxu0 0.0
    %357 = vmatpush1.msra.mxu0 0.0
    %358 = vmatprep.subr.mxu0 0.0
    %359 = vmatpush1.msra.mxu0 0.0
    %360 = vmatprep.subr.mxu0 0.0
    %361 = vmatpush1.msra.mxu0 0.0
    %362 = vmatprep.subr.mxu0 0.0
    %363 = vmatpush1.msra.mxu0 0.0
    %364 = vmatprep.subr.mxu0 0.0
    %365 = vmatpush1.msra.mxu0 0.0
    %366 = vmatprep.subr.mxu0 0.0
    %367 = vmatpush1.msra.mxu0 0.0
    %368 = vmatprep.subr.mxu0 0.0
    %369 = vmatpush1.msra.mxu0 0.0
    %370 = vmatprep.subr.mxu0 0.0
    %371 = vmatpush1.msra.mxu0 0.0
    %372 = vmatprep.subr.mxu0 0.0
    %373 = vmatpush1.msra.mxu0 0.0
    %374 = vmatprep.subr.mxu0 0.0
    %375 = vmatpush1.msra.mxu0 0.0
    %376 = vmatprep.mubr.f32.mxu0 0.0
    %377 = vmatmul.mubr.f32.gmra.mrb[0].mxu0 %v310
    %v378 = vpop.f32.mrb[0].mxu0
    %v379 = vadd.f32 %v132, %v378
    %v380 = vpop.f32.mrb[0].mxu0
    %381 = vdwg.mxu0
    %383 = vrot.lane.b32.xlu0 %v306, 32
    %v384 = vpop.permute.xlu0 %383
    %v385 = vsel %vm208, %v384, 0
    %387 = vmatprep.subr.mxu0 0.0
    %388 = vmatpush1.msra.mxu0 %v117
    %389 = vmatprep.subr.mxu0 0.0
    %390 = vmatpush1.msra.mxu0 %v118
    %391 = vmatprep.subr.mxu0 0.0
    %392 = vmatpush1.msra.mxu0 %v119
    %393 = vmatprep.subr.mxu0 0.0
    %394 = vmatpush1.msra.mxu0 %v120
    %395 = vmatprep.subr.mxu0 0.0
    %396 = vmatpush1.msra.mxu0 0.0
    %397 = vmatprep.subr.mxu0 0.0
    %398 = vmatpush1.msra.mxu0 0.0
    %399 = vmatprep.subr.mxu0 0.0
    %400 = vmatpush1.msra.mxu0 0.0
    %401 = vmatprep.subr.mxu0 0.0
    %402 = vmatpush1.msra.mxu0 0.0
    %403 = vmatprep.subr.mxu0 0.0
    %404 = vmatpush1.msra.mxu0 0.0
    %405 = vmatprep.subr.mxu0 0.0
    %406 = vmatpush1.msra.mxu0 0.0
    %407 = vmatprep.subr.mxu0 0.0
    %408 = vmatpush1.msra.mxu0 0.0
    %409 = vmatprep.subr.mxu0 0.0
    %410 = vmatpush1.msra.mxu0 0.0
    %411 = vmatprep.subr.mxu0 0.0
    %412 = vmatpush1.msra.mxu0 0.0
    %413 = vmatprep.subr.mxu0 0.0
    %414 = vmatpush1.msra.mxu0 0.0
    %415 = vmatprep.subr.mxu0 0.0
    %416 = vmatpush1.msra.mxu0 0.0
    %417 = vmatprep.subr.mxu0 0.0
    %418 = vmatpush1.msra.mxu0 0.0
    %419 = vmatprep.subr.mxu0 0.0
    %420 = vmatpush1.msra.mxu0 0.0
    %421 = vmatprep.subr.mxu0 0.0
    %422 = vmatpush1.msra.mxu0 0.0
    %423 = vmatprep.subr.mxu0 0.0
    %424 = vmatpush1.msra.mxu0 0.0
    %425 = vmatprep.subr.mxu0 0.0
    %426 = vmatpush1.msra.mxu0 0.0
    %427 = vmatprep.subr.mxu0 0.0
    %428 = vmatpush1.msra.mxu0 0.0
    %429 = vmatprep.subr.mxu0 0.0
    %430 = vmatpush1.msra.mxu0 0.0
    %431 = vmatprep.subr.mxu0 0.0
    %432 = vmatpush1.msra.mxu0 0.0
    %433 = vmatprep.subr.mxu0 0.0
    %434 = vmatpush1.msra.mxu0 0.0
    %435 = vmatprep.subr.mxu0 0.0
    %436 = vmatpush1.msra.mxu0 0.0
    %437 = vmatprep.subr.mxu0 0.0
    %438 = vmatpush1.msra.mxu0 0.0
    %439 = vmatprep.subr.mxu0 0.0
    %440 = vmatpush1.msra.mxu0 0.0
    %441 = vmatprep.subr.mxu0 0.0
    %442 = vmatpush1.msra.mxu0 0.0
    %443 = vmatprep.subr.mxu0 0.0
    %444 = vmatpush1.msra.mxu0 0.0
    %445 = vmatprep.subr.mxu0 0.0
    %446 = vmatpush1.msra.mxu0 0.0
    %447 = vmatprep.subr.mxu0 0.0
    %448 = vmatpush1.msra.mxu0 0.0
    %449 = vmatprep.subr.mxu0 0.0
    %450 = vmatpush1.msra.mxu0 0.0
    %451 = vmatprep.mubr.f32.mxu0 0.0
    %452 = vmatmul.mubr.f32.gmra.mrb[0].mxu0 %v385
    %v453 = vpop.f32.mrb[0].mxu0
    %v454 = vadd.f32 0.0, %v453
    %v455 = vpop.f32.mrb[0].mxu0
    %456 = vdwg.mxu0
    %v457 = vadd.f32 %v379, %v454
    %v458 = vxor.u32 %v457, 2147483648
    %v459 = vmul.f32 %v458, 1.442695
    %v460 = vpow.pop %v459
    %v461 = vadd.f32 %v460, 1.0
    %v462 = vrcp.pop %v461
    %v463 = vmul.f32 1.0, %v462
    %v464 = vtanh.pop %v457
    %v465 = vmul.f32 %v463, %v300
    %467 = vrot.lane.b32.xlu0 %v464, 64
    %v468 = vpop.permute.xlu0 %467
    %v470 = vmul.f32 %v463, %v468
    %472 = vrot.lane.b32.xlu0 %v470, 32
    %v473 = vpop.permute.xlu0 %472
    %v475 = vadd.f32 %v465, %v473
    %v476 = vtanh.pop %v475
    %478 = vrot.lane.b32.xlu0 %v476, 64
    %v479 = vpop.permute.xlu0 %478
    %v481 = vmul.f32 %v463, %v479
    %v483 = vlaneseq
    %v484 = vshrl.u32 %v483, 7
    %v485 = vsub.s32 0, %v484
    %v486 = vrot.slane %v126, %v485
    %488 = vmatprep.subr.mxu0 0.0
    %489 = vmatpush1.msra.mxu0 %v113
    %490 = vmatprep.subr.mxu0 0.0
    %491 = vmatpush1.msra.mxu0 %v114
    %492 = vmatprep.subr.mxu0 0.0
    %493 = vmatpush1.msra.mxu0 %v115
    %494 = vmatprep.subr.mxu0 0.0
    %495 = vmatpush1.msra.mxu0 %v116
    %496 = vmatprep.subr.mxu0 0.0
    %497 = vmatpush1.msra.mxu0 0.0
    %498 = vmatprep.subr.mxu0 0.0
    %499 = vmatpush1.msra.mxu0 0.0
    %500 = vmatprep.subr.mxu0 0.0
    %501 = vmatpush1.msra.mxu0 0.0
    %502 = vmatprep.subr.mxu0 0.0
    %503 = vmatpush1.msra.mxu0 0.0
    %504 = vmatprep.subr.mxu0 0.0
    %505 = vmatpush1.msra.mxu0 0.0
    %506 = vmatprep.subr.mxu0 0.0
    %507 = vmatpush1.msra.mxu0 0.0
    %508 = vmatprep.subr.mxu0 0.0
    %509 = vmatpush1.msra.mxu0 0.0
    %510 = vmatprep.subr.mxu0 0.0
    %511 = vmatpush1.msra.mxu0 0.0
    %512 = vmatprep.subr.mxu0 0.0
    %513 = vmatpush1.msra.mxu0 0.0
    %514 = vmatprep.subr.mxu0 0.0
    %515 = vmatpush1.msra.mxu0 0.0
    %516 = vmatprep.subr.mxu0 0.0
    %517 = vmatpush1.msra.mxu0 0.0
    %518 = vmatprep.subr.mxu0 0.0
    %519 = vmatpush1.msra.mxu0 0.0
    %520 = vmatprep.subr.mxu0 0.0
    %521 = vmatpush1.msra.mxu0 0.0
    %522 = vmatprep.subr.mxu0 0.0
    %523 = vmatpush1.msra.mxu0 0.0
    %524 = vmatprep.subr.mxu0 0.0
    %525 = vmatpush1.msra.mxu0 0.0
    %526 = vmatprep.subr.mxu0 0.0
    %527 = vmatpush1.msra.mxu0 0.0
    %528 = vmatprep.subr.mxu0 0.0
    %529 = vmatpush1.msra.mxu0 0.0
    %530 = vmatprep.subr.mxu0 0.0
    %531 = vmatpush1.msra.mxu0 0.0
    %532 = vmatprep.subr.mxu0 0.0
    %533 = vmatpush1.msra.mxu0 0.0
    %534 = vmatprep.subr.mxu0 0.0
    %535 = vmatpush1.msra.mxu0 0.0
    %536 = vmatprep.subr.mxu0 0.0
    %537 = vmatpush1.msra.mxu0 0.0
    %538 = vmatprep.subr.mxu0 0.0
    %539 = vmatpush1.msra.mxu0 0.0
    %540 = vmatprep.subr.mxu0 0.0
    %541 = vmatpush1.msra.mxu0 0.0
    %542 = vmatprep.subr.mxu0 0.0
    %543 = vmatpush1.msra.mxu0 0.0
    %544 = vmatprep.subr.mxu0 0.0
    %545 = vmatpush1.msra.mxu0 0.0
    %546 = vmatprep.subr.mxu0 0.0
    %547 = vmatpush1.msra.mxu0 0.0
    %548 = vmatprep.subr.mxu0 0.0
    %549 = vmatpush1.msra.mxu0 0.0
    %550 = vmatprep.subr.mxu0 0.0
    %551 = vmatpush1.msra.mxu0 0.0
    %552 = vmatprep.mubr.f32.mxu0 0.0
    %553 = vmatmul.mubr.f32.gmra.mrb[0].mxu0 %v385
    %v554 = vpop.f32.mrb[0].mxu0
    %v555 = vadd.f32 %v486, %v554
    %v556 = vpop.f32.mrb[0].mxu0
    %557 = vdwg.mxu0
    %558 = vmatprep.subr.mxu0 0.0
    %559 = vmatpush1.msra.mxu0 %v121
    %560 = vmatprep.subr.mxu0 0.0
    %561 = vmatpush1.msra.mxu0 %v122
    %562 = vmatprep.subr.mxu0 0.0
    %563 = vmatpush1.msra.mxu0 %v123
    %564 = vmatprep.subr.mxu0 0.0
    %565 = vmatpush1.msra.mxu0 %v124
    %566 = vmatprep.subr.mxu0 0.0
    %567 = vmatpush1.msra.mxu0 0.0
    %568 = vmatprep.subr.mxu0 0.0
    %569 = vmatpush1.msra.mxu0 0.0
    %570 = vmatprep.subr.mxu0 0.0
    %571 = vmatpush1.msra.mxu0 0.0
    %572 = vmatprep.subr.mxu0 0.0
    %573 = vmatpush1.msra.mxu0 0.0
    %574 = vmatprep.subr.mxu0 0.0
    %575 = vmatpush1.msra.mxu0 0.0
    %576 = vmatprep.subr.mxu0 0.0
    %577 = vmatpush1.msra.mxu0 0.0
    %578 = vmatprep.subr.mxu0 0.0
    %579 = vmatpush1.msra.mxu0 0.0
    %580 = vmatprep.subr.mxu0 0.0
    %581 = vmatpush1.msra.mxu0 0.0
    %582 = vmatprep.subr.mxu0 0.0
    %583 = vmatpush1.msra.mxu0 0.0
    %584 = vmatprep.subr.mxu0 0.0
    %585 = vmatpush1.msra.mxu0 0.0
    %586 = vmatprep.subr.mxu0 0.0
    %587 = vmatpush1.msra.mxu0 0.0
    %588 = vmatprep.subr.mxu0 0.0
    %589 = vmatpush1.msra.mxu0 0.0
    %590 = vmatprep.subr.mxu0 0.0
    %591 = vmatpush1.msra.mxu0 0.0
    %592 = vmatprep.subr.mxu0 0.0
    %593 = vmatpush1.msra.mxu0 0.0
    %594 = vmatprep.subr.mxu0 0.0
    %595 = vmatpush1.msra.mxu0 0.0
    %596 = vmatprep.subr.mxu0 0.0
    %597 = vmatpush1.msra.mxu0 0.0
    %598 = vmatprep.subr.mxu0 0.0
    %599 = vmatpush1.msra.mxu0 0.0
    %600 = vmatprep.subr.mxu0 0.0
    %601 = vmatpush1.msra.mxu0 0.0
    %602 = vmatprep.subr.mxu0 0.0
    %603 = vmatpush1.msra.mxu0 0.0
    %604 = vmatprep.subr.mxu0 0.0
    %605 = vmatpush1.msra.mxu0 0.0
    %606 = vmatprep.subr.mxu0 0.0
    %607 = vmatpush1.msra.mxu0 0.0
    %608 = vmatprep.subr.mxu0 0.0
    %609 = vmatpush1.msra.mxu0 0.0
    %610 = vmatprep.subr.mxu0 0.0
    %611 = vmatpush1.msra.mxu0 0.0
    %612 = vmatprep.subr.mxu0 0.0
    %613 = vmatpush1.msra.mxu0 0.0
    %614 = vmatprep.subr.mxu0 0.0
    %615 = vmatpush1.msra.mxu0 0.0
    %616 = vmatprep.subr.mxu0 0.0
    %617 = vmatpush1.msra.mxu0 0.0
    %618 = vmatprep.subr.mxu0 0.0
    %619 = vmatpush1.msra.mxu0 0.0
    %620 = vmatprep.subr.mxu0 0.0
    %621 = vmatpush1.msra.mxu0 0.0
    %622 = vmatprep.mubr.f32.mxu0 0.0
    %623 = vmatmul.mubr.f32.gmra.mrb[0].mxu0 %v210
    %v624 = vpop.f32.mrb[0].mxu0
    %v625 = vadd.f32 0.0, %v624
    %v626 = vpop.f32.mrb[0].mxu0
    %627 = vdwg.mxu0
    %v628 = vadd.f32 %v555, %v625
    %v629 = vxor.u32 %v628, 2147483648
    %v630 = vmul.f32 %v629, 1.442695
    %v631 = vpow.pop %v630
    %v632 = vadd.f32 %v631, 1.0
    %v633 = vrcp.pop %v632
    %v634 = vmul.f32 1.0, %v633
    %v635 = vtanh.pop %v628
    %v636 = vmul.f32 %v634, 0.0
    %638 = vrot.lane.b32.xlu0 %v635, 64
    %v639 = vpop.permute.xlu0 %638
    %v641 = vmul.f32 %v634, %v639
    %643 = vrot.lane.b32.xlu0 %v641, 32
    %v644 = vpop.permute.xlu0 %643
    %v646 = vadd.f32 %v636, %v644
    %v647 = vtanh.pop %v646
    %649 = vrot.lane.b32.xlu0 %v647, 64
    %v650 = vpop.permute.xlu0 %649
    %v652 = vmul.f32 %v634, %v650
    %s653 = scalar_lea.vmem [#allocation2], 8
    %v654 = vld [vmem:[%s653] sm:$0xf]
    %v656 = vsel %vm134, %v654, 0
    %658 = vmatprep.subr.mxu0 0.0
    %659 = vmatpush1.msra.mxu0 %v111
    %660 = vmatprep.subr.mxu0 0.0
    %661 = vmatpush1.msra.mxu0 %v112
    %662 = vmatprep.subr.mxu0 0.0
    %663 = vmatpush1.msra.mxu0 0.0
    %664 = vmatprep.subr.mxu0 0.0
    %665 = vmatpush1.msra.mxu0 0.0
    %666 = vmatprep.subr.mxu0 0.0
    %667 = vmatpush1.msra.mxu0 0.0
    %668 = vmatprep.subr.mxu0 0.0
    %669 = vmatpush1.msra.mxu0 0.0
    %670 = vmatprep.subr.mxu0 0.0
    %671 = vmatpush1.msra.mxu0 0.0
    %672 = vmatprep.subr.mxu0 0.0
    %673 = vmatpush1.msra.mxu0 0.0
    %674 = vmatprep.subr.mxu0 0.0
    %675 = vmatpush1.msra.mxu0 0.0
    %676 = vmatprep.subr.mxu0 0.0
    %677 = vmatpush1.msra.mxu0 0.0
    %678 = vmatprep.subr.mxu0 0.0
    %679 = vmatpush1.msra.mxu0 0.0
    %680 = vmatprep.subr.mxu0 0.0
    %681 = vmatpush1.msra.mxu0 0.0
    %682 = vmatprep.subr.mxu0 0.0
    %683 = vmatpush1.msra.mxu0 0.0
    %684 = vmatprep.subr.mxu0 0.0
    %685 = vmatpush1.msra.mxu0 0.0
    %686 = vmatprep.subr.mxu0 0.0
    %687 = vmatpush1.msra.mxu0 0.0
    %688 = vmatprep.subr.mxu0 0.0
    %689 = vmatpush1.msra.mxu0 0.0
    %690 = vmatprep.subr.mxu0 0.0
    %691 = vmatpush1.msra.mxu0 0.0
    %692 = vmatprep.subr.mxu0 0.0
    %693 = vmatpush1.msra.mxu0 0.0
    %694 = vmatprep.subr.mxu0 0.0
    %695 = vmatpush1.msra.mxu0 0.0
    %696 = vmatprep.subr.mxu0 0.0
    %697 = vmatpush1.msra.mxu0 0.0
    %698 = vmatprep.subr.mxu0 0.0
    %699 = vmatpush1.msra.mxu0 0.0
    %700 = vmatprep.subr.mxu0 0.0
    %701 = vmatpush1.msra.mxu0 0.0
    %702 = vmatprep.subr.mxu0 0.0
    %703 = vmatpush1.msra.mxu0 0.0
    %704 = vmatprep.subr.mxu0 0.0
    %705 = vmatpush1.msra.mxu0 0.0
    %706 = vmatprep.subr.mxu0 0.0
    %707 = vmatpush1.msra.mxu0 0.0
    %708 = vmatprep.subr.mxu0 0.0
    %709 = vmatpush1.msra.mxu0 0.0
    %710 = vmatprep.subr.mxu0 0.0
    %711 = vmatpush1.msra.mxu0 0.0
    %712 = vmatprep.subr.mxu0 0.0
    %713 = vmatpush1.msra.mxu0 0.0
    %714 = vmatprep.subr.mxu0 0.0
    %715 = vmatpush1.msra.mxu0 0.0
    %716 = vmatprep.subr.mxu0 0.0
    %717 = vmatpush1.msra.mxu0 0.0
    %718 = vmatprep.subr.mxu0 0.0
    %719 = vmatpush1.msra.mxu0 0.0
    %720 = vmatprep.subr.mxu0 0.0
    %721 = vmatpush1.msra.mxu0 0.0
    %722 = vmatprep.mubr.f32.mxu0 0.0
    %723 = vmatmul.mubr.f32.gmra.mrb[0].mxu0 %v656
    %v724 = vpop.f32.mrb[0].mxu0
    %v725 = vadd.f32 %v132, %v724
    %v726 = vpop.f32.mrb[0].mxu0
    %727 = vdwg.mxu0
    %729 = vrot.lane.b32.xlu0 %v481, 32
    %v730 = vpop.permute.xlu0 %729
    %v731 = vsel %vm208, %v730, 0
    %733 = vmatprep.subr.mxu0 0.0
    %734 = vmatpush1.msra.mxu0 %v117
    %735 = vmatprep.subr.mxu0 0.0
    %736 = vmatpush1.msra.mxu0 %v118
    %737 = vmatprep.subr.mxu0 0.0
    %738 = vmatpush1.msra.mxu0 %v119
    %739 = vmatprep.subr.mxu0 0.0
    %740 = vmatpush1.msra.mxu0 %v120
    %741 = vmatprep.subr.mxu0 0.0
    %742 = vmatpush1.msra.mxu0 0.0
    %743 = vmatprep.subr.mxu0 0.0
    %744 = vmatpush1.msra.mxu0 0.0
    %745 = vmatprep.subr.mxu0 0.0
    %746 = vmatpush1.msra.mxu0 0.0
    %747 = vmatprep.subr.mxu0 0.0
    %748 = vmatpush1.msra.mxu0 0.0
    %749 = vmatprep.subr.mxu0 0.0
    %750 = vmatpush1.msra.mxu0 0.0
    %751 = vmatprep.subr.mxu0 0.0
    %752 = vmatpush1.msra.mxu0 0.0
    %753 = vmatprep.subr.mxu0 0.0
    %754 = vmatpush1.msra.mxu0 0.0
    %755 = vmatprep.subr.mxu0 0.0
    %756 = vmatpush1.msra.mxu0 0.0
    %757 = vmatprep.subr.mxu0 0.0
    %758 = vmatpush1.msra.mxu0 0.0
    %759 = vmatprep.subr.mxu0 0.0
    %760 = vmatpush1.msra.mxu0 0.0
    %761 = vmatprep.subr.mxu0 0.0
    %762 = vmatpush1.msra.mxu0 0.0
    %763 = vmatprep.subr.mxu0 0.0
    %764 = vmatpush1.msra.mxu0 0.0
    %765 = vmatprep.subr.mxu0 0.0
    %766 = vmatpush1.msra.mxu0 0.0
    %767 = vmatprep.subr.mxu0 0.0
    %768 = vmatpush1.msra.mxu0 0.0
    %769 = vmatprep.subr.mxu0 0.0
    %770 = vmatpush1.msra.mxu0 0.0
    %771 = vmatprep.subr.mxu0 0.0
    %772 = vmatpush1.msra.mxu0 0.0
    %773 = vmatprep.subr.mxu0 0.0
    %774 = vmatpush1.msra.mxu0 0.0
    %775 = vmatprep.subr.mxu0 0.0
    %776 = vmatpush1.msra.mxu0 0.0
    %777 = vmatprep.subr.mxu0 0.0
    %778 = vmatpush1.msra.mxu0 0.0
    %779 = vmatprep.subr.mxu0 0.0
    %780 = vmatpush1.msra.mxu0 0.0
    %781 = vmatprep.subr.mxu0 0.0
    %782 = vmatpush1.msra.mxu0 0.0
    %783 = vmatprep.subr.mxu0 0.0
    %784 = vmatpush1.msra.mxu0 0.0
    %785 = vmatprep.subr.mxu0 0.0
    %786 = vmatpush1.msra.mxu0 0.0
    %787 = vmatprep.subr.mxu0 0.0
    %788 = vmatpush1.msra.mxu0 0.0
    %789 = vmatprep.subr.mxu0 0.0
    %790 = vmatpush1.msra.mxu0 0.0
    %791 = vmatprep.subr.mxu0 0.0
    %792 = vmatpush1.msra.mxu0 0.0
    %793 = vmatprep.subr.mxu0 0.0
    %794 = vmatpush1.msra.mxu0 0.0
    %795 = vmatprep.subr.mxu0 0.0
    %796 = vmatpush1.msra.mxu0 0.0
    %797 = vmatprep.mubr.f32.mxu0 0.0
    %798 = vmatmul.mubr.f32.gmra.mrb[0].mxu0 %v731
    %v799 = vpop.f32.mrb[0].mxu0
    %v800 = vadd.f32 0.0, %v799
    %v801 = vpop.f32.mrb[0].mxu0
    %802 = vdwg.mxu0
    %v803 = vadd.f32 %v725, %v800
    %v804 = vxor.u32 %v803, 2147483648
    %v805 = vmul.f32 %v804, 1.442695
    %v806 = vpow.pop %v805
    %v807 = vadd.f32 %v806, 1.0
    %v808 = vrcp.pop %v807
    %v809 = vmul.f32 1.0, %v808
    %v810 = vtanh.pop %v803
    %v811 = vmul.f32 %v809, %v475
    %813 = vrot.lane.b32.xlu0 %v810, 64
    %v814 = vpop.permute.xlu0 %813
    %v816 = vmul.f32 %v809, %v814
    %818 = vrot.lane.b32.xlu0 %v816, 32
    %v819 = vpop.permute.xlu0 %818
    %v821 = vadd.f32 %v811, %v819
    %v822 = vtanh.pop %v821
    %824 = vrot.lane.b32.xlu0 %v822, 64
    %v825 = vpop.permute.xlu0 %824
    %v827 = vmul.f32 %v809, %v825
    %828 = vmatprep.subr.mxu0 0.0
    %829 = vmatpush1.msra.mxu0 %v113
    %830 = vmatprep.subr.mxu0 0.0
    %831 = vmatpush1.msra.mxu0 %v114
    %832 = vmatprep.subr.mxu0 0.0
    %833 = vmatpush1.msra.mxu0 %v115
    %834 = vmatprep.subr.mxu0 0.0
    %835 = vmatpush1.msra.mxu0 %v116
    %836 = vmatprep.subr.mxu0 0.0
    %837 = vmatpush1.msra.mxu0 0.0
    %838 = vmatprep.subr.mxu0 0.0
    %839 = vmatpush1.msra.mxu0 0.0
    %840 = vmatprep.subr.mxu0 0.0
    %841 = vmatpush1.msra.mxu0 0.0
    %842 = vmatprep.subr.mxu0 0.0
    %843 = vmatpush1.msra.mxu0 0.0
    %844 = vmatprep.subr.mxu0 0.0
    %845 = vmatpush1.msra.mxu0 0.0
    %846 = vmatprep.subr.mxu0 0.0
    %847 = vmatpush1.msra.mxu0 0.0
    %848 = vmatprep.subr.mxu0 0.0
    %849 = vmatpush1.msra.mxu0 0.0
    %850 = vmatprep.subr.mxu0 0.0
    %851 = vmatpush1.msra.mxu0 0.0
    %852 = vmatprep.subr.mxu0 0.0
    %853 = vmatpush1.msra.mxu0 0.0
    %854 = vmatprep.subr.mxu0 0.0
    %855 = vmatpush1.msra.mxu0 0.0
    %856 = vmatprep.subr.mxu0 0.0
    %857 = vmatpush1.msra.mxu0 0.0
    %858 = vmatprep.subr.mxu0 0.0
    %859 = vmatpush1.msra.mxu0 0.0
    %860 = vmatprep.subr.mxu0 0.0
    %861 = vmatpush1.msra.mxu0 0.0
    %862 = vmatprep.subr.mxu0 0.0
    %863 = vmatpush1.msra.mxu0 0.0
    %864 = vmatprep.subr.mxu0 0.0
    %865 = vmatpush1.msra.mxu0 0.0
    %866 = vmatprep.subr.mxu0 0.0
    %867 = vmatpush1.msra.mxu0 0.0
    %868 = vmatprep.subr.mxu0 0.0
    %869 = vmatpush1.msra.mxu0 0.0
    %870 = vmatprep.subr.mxu0 0.0
    %871 = vmatpush1.msra.mxu0 0.0
    %872 = vmatprep.subr.mxu0 0.0
    %873 = vmatpush1.msra.mxu0 0.0
    %874 = vmatprep.subr.mxu0 0.0
    %875 = vmatpush1.msra.mxu0 0.0
    %876 = vmatprep.subr.mxu0 0.0
    %877 = vmatpush1.msra.mxu0 0.0
    %878 = vmatprep.subr.mxu0 0.0
    %879 = vmatpush1.msra.mxu0 0.0
    %880 = vmatprep.subr.mxu0 0.0
    %881 = vmatpush1.msra.mxu0 0.0
    %882 = vmatprep.subr.mxu0 0.0
    %883 = vmatpush1.msra.mxu0 0.0
    %884 = vmatprep.subr.mxu0 0.0
    %885 = vmatpush1.msra.mxu0 0.0
    %886 = vmatprep.subr.mxu0 0.0
    %887 = vmatpush1.msra.mxu0 0.0
    %888 = vmatprep.subr.mxu0 0.0
    %889 = vmatpush1.msra.mxu0 0.0
    %890 = vmatprep.subr.mxu0 0.0
    %891 = vmatpush1.msra.mxu0 0.0
    %892 = vmatprep.mubr.f32.mxu0 0.0
    %893 = vmatmul.mubr.f32.gmra.mrb[0].mxu0 %v731
    %v894 = vpop.f32.mrb[0].mxu0
    %v895 = vadd.f32 %v486, %v894
    %v896 = vpop.f32.mrb[0].mxu0
    %897 = vdwg.mxu0
    %899 = vrot.lane.b32.xlu0 %v652, 32
    %v900 = vpop.permute.xlu0 %899
    %v901 = vsel %vm208, %v900, 0
    %903 = vmatprep.subr.mxu0 0.0
    %904 = vmatpush1.msra.mxu0 %v121
    %905 = vmatprep.subr.mxu0 0.0
    %906 = vmatpush1.msra.mxu0 %v122
    %907 = vmatprep.subr.mxu0 0.0
    %908 = vmatpush1.msra.mxu0 %v123
    %909 = vmatprep.subr.mxu0 0.0
    %910 = vmatpush1.msra.mxu0 %v124
    %911 = vmatprep.subr.mxu0 0.0
    %912 = vmatpush1.msra.mxu0 0.0
    %913 = vmatprep.subr.mxu0 0.0
    %914 = vmatpush1.msra.mxu0 0.0
    %915 = vmatprep.subr.mxu0 0.0
    %916 = vmatpush1.msra.mxu0 0.0
    %917 = vmatprep.subr.mxu0 0.0
    %918 = vmatpush1.msra.mxu0 0.0
    %919 = vmatprep.subr.mxu0 0.0
    %920 = vmatpush1.msra.mxu0 0.0
    %921 = vmatprep.subr.mxu0 0.0
    %922 = vmatpush1.msra.mxu0 0.0
    %923 = vmatprep.subr.mxu0 0.0
    %924 = vmatpush1.msra.mxu0 0.0
    %925 = vmatprep.subr.mxu0 0.0
    %926 = vmatpush1.msra.mxu0 0.0
    %927 = vmatprep.subr.mxu0 0.0
    %928 = vmatpush1.msra.mxu0 0.0
    %929 = vmatprep.subr.mxu0 0.0
    %930 = vmatpush1.msra.mxu0 0.0
    %931 = vmatprep.subr.mxu0 0.0
    %932 = vmatpush1.msra.mxu0 0.0
    %933 = vmatprep.subr.mxu0 0.0
    %934 = vmatpush1.msra.mxu0 0.0
    %935 = vmatprep.subr.mxu0 0.0
    %936 = vmatpush1.msra.mxu0 0.0
    %937 = vmatprep.subr.mxu0 0.0
    %938 = vmatpush1.msra.mxu0 0.0
    %939 = vmatprep.subr.mxu0 0.0
    %940 = vmatpush1.msra.mxu0 0.0
    %941 = vmatprep.subr.mxu0 0.0
    %942 = vmatpush1.msra.mxu0 0.0
    %943 = vmatprep.subr.mxu0 0.0
    %944 = vmatpush1.msra.mxu0 0.0
    %945 = vmatprep.subr.mxu0 0.0
    %946 = vmatpush1.msra.mxu0 0.0
    %947 = vmatprep.subr.mxu0 0.0
    %948 = vmatpush1.msra.mxu0 0.0
    %949 = vmatprep.subr.mxu0 0.0
    %950 = vmatpush1.msra.mxu0 0.0
    %951 = vmatprep.subr.mxu0 0.0
    %952 = vmatpush1.msra.mxu0 0.0
    %953 = vmatprep.subr.mxu0 0.0
    %954 = vmatpush1.msra.mxu0 0.0
    %955 = vmatprep.subr.mxu0 0.0
    %956 = vmatpush1.msra.mxu0 0.0
    %957 = vmatprep.subr.mxu0 0.0
    %958 = vmatpush1.msra.mxu0 0.0
    %959 = vmatprep.subr.mxu0 0.0
    %960 = vmatpush1.msra.mxu0 0.0
    %961 = vmatprep.subr.mxu0 0.0
    %962 = vmatpush1.msra.mxu0 0.0
    %963 = vmatprep.subr.mxu0 0.0
    %964 = vmatpush1.msra.mxu0 0.0
    %965 = vmatprep.subr.mxu0 0.0
    %966 = vmatpush1.msra.mxu0 0.0
    %967 = vmatprep.mubr.f32.mxu0 0.0
    %968 = vmatmul.mubr.f32.gmra.mrb[0].mxu0 %v901
    %v969 = vpop.f32.mrb[0].mxu0
    %v970 = vadd.f32 0.0, %v969
    %v971 = vpop.f32.mrb[0].mxu0
    %972 = vdwg.mxu0
    %v973 = vadd.f32 %v895, %v970
    %v974 = vxor.u32 %v973, 2147483648
    %v975 = vmul.f32 %v974, 1.442695
    %v976 = vpow.pop %v975
    %v977 = vadd.f32 %v976, 1.0
    %v978 = vrcp.pop %v977
    %v979 = vmul.f32 1.0, %v978
    %v980 = vtanh.pop %v973
    %v981 = vmul.f32 %v979, %v646
    %983 = vrot.lane.b32.xlu0 %v980, 64
    %v984 = vpop.permute.xlu0 %983
    %v986 = vmul.f32 %v979, %v984
    %988 = vrot.lane.b32.xlu0 %v986, 32
    %v989 = vpop.permute.xlu0 %988
    %v991 = vadd.f32 %v981, %v989
    %v992 = vtanh.pop %v991
    %994 = vrot.lane.b32.xlu0 %v992, 64
    %v995 = vpop.permute.xlu0 %994
    %v997 = vmul.f32 %v979, %v995
    %s998 = scalar_lea.vmem [#allocation2], 12
    %v999 = vld [vmem:[%s998] sm:$0xf]
    %v1001 = vsel %vm134, %v999, 0
    %1003 = vmatprep.subr.mxu0 0.0
    %1004 = vmatpush1.msra.mxu0 %v111
    %1005 = vmatprep.subr.mxu0 0.0
    %1006 = vmatpush1.msra.mxu0 %v112
    %1007 = vmatprep.subr.mxu0 0.0
    %1008 = vmatpush1.msra.mxu0 0.0
    %1009 = vmatprep.subr.mxu0 0.0
    %1010 = vmatpush1.msra.mxu0 0.0
    %1011 = vmatprep.subr.mxu0 0.0
    %1012 = vmatpush1.msra.mxu0 0.0
    %1013 = vmatprep.subr.mxu0 0.0
    %1014 = vmatpush1.msra.mxu0 0.0
    %1015 = vmatprep.subr.mxu0 0.0
    %1016 = vmatpush1.msra.mxu0 0.0
    %1017 = vmatprep.subr.mxu0 0.0
    %1018 = vmatpush1.msra.mxu0 0.0
    %1019 = vmatprep.subr.mxu0 0.0
    %1020 = vmatpush1.msra.mxu0 0.0
    %1021 = vmatprep.subr.mxu0 0.0
    %1022 = vmatpush1.msra.mxu0 0.0
    %1023 = vmatprep.subr.mxu0 0.0
    %1024 = vmatpush1.msra.mxu0 0.0
    %1025 = vmatprep.subr.mxu0 0.0
    %1026 = vmatpush1.msra.mxu0 0.0
    %1027 = vmatprep.subr.mxu0 0.0
    %1028 = vmatpush1.msra.mxu0 0.0
    %1029 = vmatprep.subr.mxu0 0.0
    %1030 = vmatpush1.msra.mxu0 0.0
    %1031 = vmatprep.subr.mxu0 0.0
    %1032 = vmatpush1.msra.mxu0 0.0
    %1033 = vmatprep.subr.mxu0 0.0
    %1034 = vmatpush1.msra.mxu0 0.0
    %1035 = vmatprep.subr.mxu0 0.0
    %1036 = vmatpush1.msra.mxu0 0.0
    %1037 = vmatprep.subr.mxu0 0.0
    %1038 = vmatpush1.msra.mxu0 0.0
    %1039 = vmatprep.subr.mxu0 0.0
    %1040 = vmatpush1.msra.mxu0 0.0
    %1041 = vmatprep.subr.mxu0 0.0
    %1042 = vmatpush1.msra.mxu0 0.0
    %1043 = vmatprep.subr.mxu0 0.0
    %1044 = vmatpush1.msra.mxu0 0.0
    %1045 = vmatprep.subr.mxu0 0.0
    %1046 = vmatpush1.msra.mxu0 0.0
    %1047 = vmatprep.subr.mxu0 0.0
    %1048 = vmatpush1.msra.mxu0 0.0
    %1049 = vmatprep.subr.mxu0 0.0
    %1050 = vmatpush1.msra.mxu0 0.0
    %1051 = vmatprep.subr.mxu0 0.0
    %1052 = vmatpush1.msra.mxu0 0.0
    %1053 = vmatprep.subr.mxu0 0.0
    %1054 = vmatpush1.msra.mxu0 0.0
    %1055 = vmatprep.subr.mxu0 0.0
    %1056 = vmatpush1.msra.mxu0 0.0
    %1057 = vmatprep.subr.mxu0 0.0
    %1058 = vmatpush1.msra.mxu0 0.0
    %1059 = vmatprep.subr.mxu0 0.0
    %1060 = vmatpush1.msra.mxu0 0.0
    %1061 = vmatprep.subr.mxu0 0.0
    %1062 = vmatpush1.msra.mxu0 0.0
    %1063 = vmatprep.subr.mxu0 0.0
    %1064 = vmatpush1.msra.mxu0 0.0
    %1065 = vmatprep.subr.mxu0 0.0
    %1066 = vmatpush1.msra.mxu0 0.0
    %1067 = vmatprep.mubr.f32.mxu0 0.0
    %1068 = vmatmul.mubr.f32.gmra.mrb[0].mxu0 %v1001
    %v1069 = vpop.f32.mrb[0].mxu0
    %v1070 = vadd.f32 %v132, %v1069
    %v1071 = vpop.f32.mrb[0].mxu0
    %1072 = vdwg.mxu0
    %1074 = vrot.lane.b32.xlu0 %v827, 32
    %v1075 = vpop.permute.xlu0 %1074
    %v1076 = vsel %vm208, %v1075, 0
    %1078 = vmatprep.subr.mxu0 0.0
    %1079 = vmatpush1.msra.mxu0 %v117
    %1080 = vmatprep.subr.mxu0 0.0
    %1081 = vmatpush1.msra.mxu0 %v118
    %1082 = vmatprep.subr.mxu0 0.0
    %1083 = vmatpush1.msra.mxu0 %v119
    %1084 = vmatprep.subr.mxu0 0.0
    %1085 = vmatpush1.msra.mxu0 %v120
    %1086 = vmatprep.subr.mxu0 0.0
    %1087 = vmatpush1.msra.mxu0 0.0
    %1088 = vmatprep.subr.mxu0 0.0
    %1089 = vmatpush1.msra.mxu0 0.0
    %1090 = vmatprep.subr.mxu0 0.0
    %1091 = vmatpush1.msra.mxu0 0.0
    %1092 = vmatprep.subr.mxu0 0.0
    %1093 = vmatpush1.msra.mxu0 0.0
    %1094 = vmatprep.subr.mxu0 0.0
    %1095 = vmatpush1.msra.mxu0 0.0
    %1096 = vmatprep.subr.mxu0 0.0
    %1097 = vmatpush1.msra.mxu0 0.0
    %1098 = vmatprep.subr.mxu0 0.0
    %1099 = vmatpush1.msra.mxu0 0.0
    %1100 = vmatprep.subr.mxu0 0.0
    %1101 = vmatpush1.msra.mxu0 0.0
    %1102 = vmatprep.subr.mxu0 0.0
    %1103 = vmatpush1.msra.mxu0 0.0
    %1104 = vmatprep.subr.mxu0 0.0
    %1105 = vmatpush1.msra.mxu0 0.0
    %1106 = vmatprep.subr.mxu0 0.0
    %1107 = vmatpush1.msra.mxu0 0.0
    %1108 = vmatprep.subr.mxu0 0.0
    %1109 = vmatpush1.msra.mxu0 0.0
    %1110 = vmatprep.subr.mxu0 0.0
    %1111 = vmatpush1.msra.mxu0 0.0
    %1112 = vmatprep.subr.mxu0 0.0
    %1113 = vmatpush1.msra.mxu0 0.0
    %1114 = vmatprep.subr.mxu0 0.0
    %1115 = vmatpush1.msra.mxu0 0.0
    %1116 = vmatprep.subr.mxu0 0.0
    %1117 = vmatpush1.msra.mxu0 0.0
    %1118 = vmatprep.subr.mxu0 0.0
    %1119 = vmatpush1.msra.mxu0 0.0
    %1120 = vmatprep.subr.mxu0 0.0
    %1121 = vmatpush1.msra.mxu0 0.0
    %1122 = vmatprep.subr.mxu0 0.0
    %1123 = vmatpush1.msra.mxu0 0.0
    %1124 = vmatprep.subr.mxu0 0.0
    %1125 = vmatpush1.msra.mxu0 0.0
    %1126 = vmatprep.subr.mxu0 0.0
    %1127 = vmatpush1.msra.mxu0 0.0
    %1128 = vmatprep.subr.mxu0 0.0
    %1129 = vmatpush1.msra.mxu0 0.0
    %1130 = vmatprep.subr.mxu0 0.0
    %1131 = vmatpush1.msra.mxu0 0.0
    %1132 = vmatprep.subr.mxu0 0.0
    %1133 = vmatpush1.msra.mxu0 0.0
    %1134 = vmatprep.subr.mxu0 0.0
    %1135 = vmatpush1.msra.mxu0 0.0
    %1136 = vmatprep.subr.mxu0 0.0
    %1137 = vmatpush1.msra.mxu0 0.0
    %1138 = vmatprep.subr.mxu0 0.0
    %1139 = vmatpush1.msra.mxu0 0.0
    %1140 = vmatprep.subr.mxu0 0.0
    %1141 = vmatpush1.msra.mxu0 0.0
    %1142 = vmatprep.mubr.f32.mxu0 0.0
    %1143 = vmatmul.mubr.f32.gmra.mrb[0].mxu0 %v1076
    %v1144 = vpop.f32.mrb[0].mxu0
    %v1145 = vadd.f32 0.0, %v1144
    %v1146 = vpop.f32.mrb[0].mxu0
    %1147 = vdwg.mxu0
    %v1148 = vadd.f32 %v1070, %v1145
    %v1149 = vxor.u32 %v1148, 2147483648
    %v1150 = vmul.f32 %v1149, 1.442695
    %v1151 = vpow.pop %v1150
    %v1152 = vadd.f32 %v1151, 1.0
    %v1153 = vrcp.pop %v1152
    %v1154 = vmul.f32 1.0, %v1153
    %v1155 = vtanh.pop %v1148
    %v1156 = vmul.f32 %v1154, %v821
    %1158 = vrot.lane.b32.xlu0 %v1155, 64
    %v1159 = vpop.permute.xlu0 %1158
    %v1161 = vmul.f32 %v1154, %v1159
    %1163 = vrot.lane.b32.xlu0 %v1161, 32
    %v1164 = vpop.permute.xlu0 %1163
    %v1166 = vadd.f32 %v1156, %v1164
    %v1167 = vtanh.pop %v1166
    %1169 = vrot.lane.b32.xlu0 %v1167, 64
    %v1170 = vpop.permute.xlu0 %1169
    %v1172 = vmul.f32 %v1154, %v1170
    %1173 = vmatprep.subr.mxu0 0.0
    %1174 = vmatpush1.msra.mxu0 %v113
    %1175 = vmatprep.subr.mxu0 0.0
    %1176 = vmatpush1.msra.mxu0 %v114
    %1177 = vmatprep.subr.mxu0 0.0
    %1178 = vmatpush1.msra.mxu0 %v115
    %1179 = vmatprep.subr.mxu0 0.0
    %1180 = vmatpush1.msra.mxu0 %v116
    %1181 = vmatprep.subr.mxu0 0.0
    %1182 = vmatpush1.msra.mxu0 0.0
    %1183 = vmatprep.subr.mxu0 0.0
    %1184 = vmatpush1.msra.mxu0 0.0
    %1185 = vmatprep.subr.mxu0 0.0
    %1186 = vmatpush1.msra.mxu0 0.0
    %1187 = vmatprep.subr.mxu0 0.0
    %1188 = vmatpush1.msra.mxu0 0.0
    %1189 = vmatprep.subr.mxu0 0.0
    %1190 = vmatpush1.msra.mxu0 0.0
    %1191 = vmatprep.subr.mxu0 0.0
    %1192 = vmatpush1.msra.mxu0 0.0
    %1193 = vmatprep.subr.mxu0 0.0
    %1194 = vmatpush1.msra.mxu0 0.0
    %1195 = vmatprep.subr.mxu0 0.0
    %1196 = vmatpush1.msra.mxu0 0.0
    %1197 = vmatprep.subr.mxu0 0.0
    %1198 = vmatpush1.msra.mxu0 0.0
    %1199 = vmatprep.subr.mxu0 0.0
    %1200 = vmatpush1.msra.mxu0 0.0
    %1201 = vmatprep.subr.mxu0 0.0
    %1202 = vmatpush1.msra.mxu0 0.0
    %1203 = vmatprep.subr.mxu0 0.0
    %1204 = vmatpush1.msra.mxu0 0.0
    %1205 = vmatprep.subr.mxu0 0.0
    %1206 = vmatpush1.msra.mxu0 0.0
    %1207 = vmatprep.subr.mxu0 0.0
    %1208 = vmatpush1.msra.mxu0 0.0
    %1209 = vmatprep.subr.mxu0 0.0
    %1210 = vmatpush1.msra.mxu0 0.0
    %1211 = vmatprep.subr.mxu0 0.0
    %1212 = vmatpush1.msra.mxu0 0.0
    %1213 = vmatprep.subr.mxu0 0.0
    %1214 = vmatpush1.msra.mxu0 0.0
    %1215 = vmatprep.subr.mxu0 0.0
    %1216 = vmatpush1.msra.mxu0 0.0
    %1217 = vmatprep.subr.mxu0 0.0
    %1218 = vmatpush1.msra.mxu0 0.0
    %1219 = vmatprep.subr.mxu0 0.0
    %1220 = vmatpush1.msra.mxu0 0.0
    %1221 = vmatprep.subr.mxu0 0.0
    %1222 = vmatpush1.msra.mxu0 0.0
    %1223 = vmatprep.subr.mxu0 0.0
    %1224 = vmatpush1.msra.mxu0 0.0
    %1225 = vmatprep.subr.mxu0 0.0
    %1226 = vmatpush1.msra.mxu0 0.0
    %1227 = vmatprep.subr.mxu0 0.0
    %1228 = vmatpush1.msra.mxu0 0.0
    %1229 = vmatprep.subr.mxu0 0.0
    %1230 = vmatpush1.msra.mxu0 0.0
    %1231 = vmatprep.subr.mxu0 0.0
    %1232 = vmatpush1.msra.mxu0 0.0
    %1233 = vmatprep.subr.mxu0 0.0
    %1234 = vmatpush1.msra.mxu0 0.0
    %1235 = vmatprep.subr.mxu0 0.0
    %1236 = vmatpush1.msra.mxu0 0.0
    %1237 = vmatprep.mubr.f32.mxu0 0.0
    %1238 = vmatmul.mubr.f32.gmra.mrb[0].mxu0 %v1076
    %v1239 = vpop.f32.mrb[0].mxu0
    %v1240 = vadd.f32 %v486, %v1239
    %v1241 = vpop.f32.mrb[0].mxu0
    %1242 = vdwg.mxu0
    %1244 = vrot.lane.b32.xlu0 %v997, 32
    %v1245 = vpop.permute.xlu0 %1244
    %v1246 = vsel %vm208, %v1245, 0
    %1248 = vmatprep.subr.mxu0 0.0
    %1249 = vmatpush1.msra.mxu0 %v121
    %1250 = vmatprep.subr.mxu0 0.0
    %1251 = vmatpush1.msra.mxu0 %v122
    %1252 = vmatprep.subr.mxu0 0.0
    %1253 = vmatpush1.msra.mxu0 %v123
    %1254 = vmatprep.subr.mxu0 0.0
    %1255 = vmatpush1.msra.mxu0 %v124
    %1256 = vmatprep.subr.mxu0 0.0
    %1257 = vmatpush1.msra.mxu0 0.0
    %1258 = vmatprep.subr.mxu0 0.0
    %1259 = vmatpush1.msra.mxu0 0.0
    %1260 = vmatprep.subr.mxu0 0.0
    %1261 = vmatpush1.msra.mxu0 0.0
    %1262 = vmatprep.subr.mxu0 0.0
    %1263 = vmatpush1.msra.mxu0 0.0
    %1264 = vmatprep.subr.mxu0 0.0
    %1265 = vmatpush1.msra.mxu0 0.0
    %1266 = vmatprep.subr.mxu0 0.0
    %1267 = vmatpush1.msra.mxu0 0.0
    %1268 = vmatprep.subr.mxu0 0.0
    %1269 = vmatpush1.msra.mxu0 0.0
    %1270 = vmatprep.subr.mxu0 0.0
    %1271 = vmatpush1.msra.mxu0 0.0
    %1272 = vmatprep.subr.mxu0 0.0
    %1273 = vmatpush1.msra.mxu0 0.0
    %1274 = vmatprep.subr.mxu0 0.0
    %1275 = vmatpush1.msra.mxu0 0.0
    %1276 = vmatprep.subr.mxu0 0.0
    %1277 = vmatpush1.msra.mxu0 0.0
    %1278 = vmatprep.subr.mxu0 0.0
    %1279 = vmatpush1.msra.mxu0 0.0
    %1280 = vmatprep.subr.mxu0 0.0
    %1281 = vmatpush1.msra.mxu0 0.0
    %1282 = vmatprep.subr.mxu0 0.0
    %1283 = vmatpush1.msra.mxu0 0.0
    %1284 = vmatprep.subr.mxu0 0.0
    %1285 = vmatpush1.msra.mxu0 0.0
    %1286 = vmatprep.subr.mxu0 0.0
    %1287 = vmatpush1.msra.mxu0 0.0
    %1288 = vmatprep.subr.mxu0 0.0
    %1289 = vmatpush1.msra.mxu0 0.0
    %1290 = vmatprep.subr.mxu0 0.0
    %1291 = vmatpush1.msra.mxu0 0.0
    %1292 = vmatprep.subr.mxu0 0.0
    %1293 = vmatpush1.msra.mxu0 0.0
    %1294 = vmatprep.subr.mxu0 0.0
    %1295 = vmatpush1.msra.mxu0 0.0
    %1296 = vmatprep.subr.mxu0 0.0
    %1297 = vmatpush1.msra.mxu0 0.0
    %1298 = vmatprep.subr.mxu0 0.0
    %1299 = vmatpush1.msra.mxu0 0.0
    %1300 = vmatprep.subr.mxu0 0.0
    %1301 = vmatpush1.msra.mxu0 0.0
    %1302 = vmatprep.subr.mxu0 0.0
    %1303 = vmatpush1.msra.mxu0 0.0
    %1304 = vmatprep.subr.mxu0 0.0
    %1305 = vmatpush1.msra.mxu0 0.0
    %1306 = vmatprep.subr.mxu0 0.0
    %1307 = vmatpush1.msra.mxu0 0.0
    %1308 = vmatprep.subr.mxu0 0.0
    %1309 = vmatpush1.msra.mxu0 0.0
    %1310 = vmatprep.subr.mxu0 0.0
    %1311 = vmatpush1.msra.mxu0 0.0
    %1312 = vmatprep.mubr.f32.mxu0 0.0
    %1313 = vmatmul.mubr.f32.gmra.mrb[0].mxu0 %v1246
    %v1314 = vpop.f32.mrb[0].mxu0
    %v1315 = vadd.f32 0.0, %v1314
    %v1316 = vpop.f32.mrb[0].mxu0
    %1317 = vdwg.mxu0
    %v1318 = vadd.f32 %v1240, %v1315
    %v1319 = vxor.u32 %v1318, 2147483648
    %v1320 = vmul.f32 %v1319, 1.442695
    %v1321 = vpow.pop %v1320
    %v1322 = vadd.f32 %v1321, 1.0
    %v1323 = vrcp.pop %v1322
    %v1324 = vmul.f32 1.0, %v1323
    %v1325 = vtanh.pop %v1318
    %v1326 = vmul.f32 %v1324, %v991
    %1328 = vrot.lane.b32.xlu0 %v1325, 64
    %v1329 = vpop.permute.xlu0 %1328
    %v1331 = vmul.f32 %v1324, %v1329
    %1333 = vrot.lane.b32.xlu0 %v1331, 32
    %v1334 = vpop.permute.xlu0 %1333
    %v1336 = vadd.f32 %v1326, %v1334
    %v1337 = vtanh.pop %v1336
    %1339 = vrot.lane.b32.xlu0 %v1337, 64
    %v1340 = vpop.permute.xlu0 %1339
    %v1342 = vmul.f32 %v1324, %v1340
    %s1343 = scalar_lea.vmem [#allocation2], 16
    %v1344 = vld [vmem:[%s1343] sm:$0xf]
    %v1346 = vsel %vm134, %v1344, 0
    %1348 = vmatprep.subr.mxu0 0.0
    %1349 = vmatpush1.msra.mxu0 %v111
    %1350 = vmatprep.subr.mxu0 0.0
    %1351 = vmatpush1.msra.mxu0 %v112
    %1352 = vmatprep.subr.mxu0 0.0
    %1353 = vmatpush1.msra.mxu0 0.0
    %1354 = vmatprep.subr.mxu0 0.0
    %1355 = vmatpush1.msra.mxu0 0.0
    %1356 = vmatprep.subr.mxu0 0.0
    %1357 = vmatpush1.msra.mxu0 0.0
    %1358 = vmatprep.subr.mxu0 0.0
    %1359 = vmatpush1.msra.mxu0 0.0
    %1360 = vmatprep.subr.mxu0 0.0
    %1361 = vmatpush1.msra.mxu0 0.0
    %1362 = vmatprep.subr.mxu0 0.0
    %1363 = vmatpush1.msra.mxu0 0.0
    %1364 = vmatprep.subr.mxu0 0.0
    %1365 = vmatpush1.msra.mxu0 0.0
    %1366 = vmatprep.subr.mxu0 0.0
    %1367 = vmatpush1.msra.mxu0 0.0
    %1368 = vmatprep.subr.mxu0 0.0
    %1369 = vmatpush1.msra.mxu0 0.0
    %1370 = vmatprep.subr.mxu0 0.0
    %1371 = vmatpush1.msra.mxu0 0.0
    %1372 = vmatprep.subr.mxu0 0.0
    %1373 = vmatpush1.msra.mxu0 0.0
    %1374 = vmatprep.subr.mxu0 0.0
    %1375 = vmatpush1.msra.mxu0 0.0
    %1376 = vmatprep.subr.mxu0 0.0
    %1377 = vmatpush1.msra.mxu0 0.0
    %1378 = vmatprep.subr.mxu0 0.0
    %1379 = vmatpush1.msra.mxu0 0.0
    %1380 = vmatprep.subr.mxu0 0.0
    %1381 = vmatpush1.msra.mxu0 0.0
    %1382 = vmatprep.subr.mxu0 0.0
    %1383 = vmatpush1.msra.mxu0 0.0
    %1384 = vmatprep.subr.mxu0 0.0
    %1385 = vmatpush1.msra.mxu0 0.0
    %1386 = vmatprep.subr.mxu0 0.0
    %1387 = vmatpush1.msra.mxu0 0.0
    %1388 = vmatprep.subr.mxu0 0.0
    %1389 = vmatpush1.msra.mxu0 0.0
    %1390 = vmatprep.subr.mxu0 0.0
    %1391 = vmatpush1.msra.mxu0 0.0
    %1392 = vmatprep.subr.mxu0 0.0
    %1393 = vmatpush1.msra.mxu0 0.0
    %1394 = vmatprep.subr.mxu0 0.0
    %1395 = vmatpush1.msra.mxu0 0.0
    %1396 = vmatprep.subr.mxu0 0.0
    %1397 = vmatpush1.msra.mxu0 0.0
    %1398 = vmatprep.subr.mxu0 0.0
    %1399 = vmatpush1.msra.mxu0 0.0
    %1400 = vmatprep.subr.mxu0 0.0
    %1401 = vmatpush1.msra.mxu0 0.0
    %1402 = vmatprep.subr.mxu0 0.0
    %1403 = vmatpush1.msra.mxu0 0.0
    %1404 = vmatprep.subr.mxu0 0.0
    %1405 = vmatpush1.msra.mxu0 0.0
    %1406 = vmatprep.subr.mxu0 0.0
    %1407 = vmatpush1.msra.mxu0 0.0
    %1408 = vmatprep.subr.mxu0 0.0
    %1409 = vmatpush1.msra.mxu0 0.0
    %1410 = vmatprep.subr.mxu0 0.0
    %1411 = vmatpush1.msra.mxu0 0.0
    %1412 = vmatprep.mubr.f32.mxu0 0.0
    %1413 = vmatmul.mubr.f32.gmra.mrb[0].mxu0 %v1346
    %v1414 = vpop.f32.mrb[0].mxu0
    %v1415 = vadd.f32 %v132, %v1414
    %v1416 = vpop.f32.mrb[0].mxu0
    %1417 = vdwg.mxu0
    %1419 = vrot.lane.b32.xlu0 %v1172, 32
    %v1420 = vpop.permute.xlu0 %1419
    %v1421 = vsel %vm208, %v1420, 0
    %1423 = vmatprep.subr.mxu0 0.0
    %1424 = vmatpush1.msra.mxu0 %v117
    %1425 = vmatprep.subr.mxu0 0.0
    %1426 = vmatpush1.msra.mxu0 %v118
    %1427 = vmatprep.subr.mxu0 0.0
    %1428 = vmatpush1.msra.mxu0 %v119
    %1429 = vmatprep.subr.mxu0 0.0
    %1430 = vmatpush1.msra.mxu0 %v120
    %1431 = vmatprep.subr.mxu0 0.0
    %1432 = vmatpush1.msra.mxu0 0.0
    %1433 = vmatprep.subr.mxu0 0.0
    %1434 = vmatpush1.msra.mxu0 0.0
    %1435 = vmatprep.subr.mxu0 0.0
    %1436 = vmatpush1.msra.mxu0 0.0
    %1437 = vmatprep.subr.mxu0 0.0
    %1438 = vmatpush1.msra.mxu0 0.0
    %1439 = vmatprep.subr.mxu0 0.0
    %1440 = vmatpush1.msra.mxu0 0.0
    %1441 = vmatprep.subr.mxu0 0.0
    %1442 = vmatpush1.msra.mxu0 0.0
    %1443 = vmatprep.subr.mxu0 0.0
    %1444 = vmatpush1.msra.mxu0 0.0
    %1445 = vmatprep.subr.mxu0 0.0
    %1446 = vmatpush1.msra.mxu0 0.0
    %1447 = vmatprep.subr.mxu0 0.0
    %1448 = vmatpush1.msra.mxu0 0.0
    %1449 = vmatprep.subr.mxu0 0.0
    %1450 = vmatpush1.msra.mxu0 0.0
    %1451 = vmatprep.subr.mxu0 0.0
    %1452 = vmatpush1.msra.mxu0 0.0
    %1453 = vmatprep.subr.mxu0 0.0
    %1454 = vmatpush1.msra.mxu0 0.0
    %1455 = vmatprep.subr.mxu0 0.0
    %1456 = vmatpush1.msra.mxu0 0.0
    %1457 = vmatprep.subr.mxu0 0.0
    %1458 = vmatpush1.msra.mxu0 0.0
    %1459 = vmatprep.subr.mxu0 0.0
    %1460 = vmatpush1.msra.mxu0 0.0
    %1461 = vmatprep.subr.mxu0 0.0
    %1462 = vmatpush1.msra.mxu0 0.0
    %1463 = vmatprep.subr.mxu0 0.0
    %1464 = vmatpush1.msra.mxu0 0.0
    %1465 = vmatprep.subr.mxu0 0.0
    %1466 = vmatpush1.msra.mxu0 0.0
    %1467 = vmatprep.subr.mxu0 0.0
    %1468 = vmatpush1.msra.mxu0 0.0
    %1469 = vmatprep.subr.mxu0 0.0
    %1470 = vmatpush1.msra.mxu0 0.0
    %1471 = vmatprep.subr.mxu0 0.0
    %1472 = vmatpush1.msra.mxu0 0.0
    %1473 = vmatprep.subr.mxu0 0.0
    %1474 = vmatpush1.msra.mxu0 0.0
    %1475 = vmatprep.subr.mxu0 0.0
    %1476 = vmatpush1.msra.mxu0 0.0
    %1477 = vmatprep.subr.mxu0 0.0
    %1478 = vmatpush1.msra.mxu0 0.0
    %1479 = vmatprep.subr.mxu0 0.0
    %1480 = vmatpush1.msra.mxu0 0.0
    %1481 = vmatprep.subr.mxu0 0.0
    %1482 = vmatpush1.msra.mxu0 0.0
    %1483 = vmatprep.subr.mxu0 0.0
    %1484 = vmatpush1.msra.mxu0 0.0
    %1485 = vmatprep.subr.mxu0 0.0
    %1486 = vmatpush1.msra.mxu0 0.0
    %1487 = vmatprep.mubr.f32.mxu0 0.0
    %1488 = vmatmul.mubr.f32.gmra.mrb[0].mxu0 %v1421
    %v1489 = vpop.f32.mrb[0].mxu0
    %v1490 = vadd.f32 0.0, %v1489
    %v1491 = vpop.f32.mrb[0].mxu0
    %1492 = vdwg.mxu0
    %v1493 = vadd.f32 %v1415, %v1490
    %v1494 = vxor.u32 %v1493, 2147483648
    %v1495 = vmul.f32 %v1494, 1.442695
    %v1496 = vpow.pop %v1495
    %v1497 = vadd.f32 %v1496, 1.0
    %v1498 = vrcp.pop %v1497
    %v1499 = vmul.f32 1.0, %v1498
    %v1500 = vtanh.pop %v1493
    %v1501 = vmul.f32 %v1499, %v1166
    %1503 = vrot.lane.b32.xlu0 %v1500, 64
    %v1504 = vpop.permute.xlu0 %1503
    %v1506 = vmul.f32 %v1499, %v1504
    %1508 = vrot.lane.b32.xlu0 %v1506, 32
    %v1509 = vpop.permute.xlu0 %1508
    %v1511 = vadd.f32 %v1501, %v1509
    %v1512 = vtanh.pop %v1511
    %1514 = vrot.lane.b32.xlu0 %v1512, 64
    %v1515 = vpop.permute.xlu0 %1514
    %v1517 = vmul.f32 %v1499, %v1515
    %1518 = vmatprep.subr.mxu0 0.0
    %1519 = vmatpush1.msra.mxu0 %v113
    %1520 = vmatprep.subr.mxu0 0.0
    %1521 = vmatpush1.msra.mxu0 %v114
    %1522 = vmatprep.subr.mxu0 0.0
    %1523 = vmatpush1.msra.mxu0 %v115
    %1524 = vmatprep.subr.mxu0 0.0
    %1525 = vmatpush1.msra.mxu0 %v116
    %1526 = vmatprep.subr.mxu0 0.0
    %1527 = vmatpush1.msra.mxu0 0.0
    %1528 = vmatprep.subr.mxu0 0.0
    %1529 = vmatpush1.msra.mxu0 0.0
    %1530 = vmatprep.subr.mxu0 0.0
    %1531 = vmatpush1.msra.mxu0 0.0
    %1532 = vmatprep.subr.mxu0 0.0
    %1533 = vmatpush1.msra.mxu0 0.0
    %1534 = vmatprep.subr.mxu0 0.0
    %1535 = vmatpush1.msra.mxu0 0.0
    %1536 = vmatprep.subr.mxu0 0.0
    %1537 = vmatpush1.msra.mxu0 0.0
    %1538 = vmatprep.subr.mxu0 0.0
    %1539 = vmatpush1.msra.mxu0 0.0
    %1540 = vmatprep.subr.mxu0 0.0
    %1541 = vmatpush1.msra.mxu0 0.0
    %1542 = vmatprep.subr.mxu0 0.0
    %1543 = vmatpush1.msra.mxu0 0.0
    %1544 = vmatprep.subr.mxu0 0.0
    %1545 = vmatpush1.msra.mxu0 0.0
    %1546 = vmatprep.subr.mxu0 0.0
    %1547 = vmatpush1.msra.mxu0 0.0
    %1548 = vmatprep.subr.mxu0 0.0
    %1549 = vmatpush1.msra.mxu0 0.0
    %1550 = vmatprep.subr.mxu0 0.0
    %1551 = vmatpush1.msra.mxu0 0.0
    %1552 = vmatprep.subr.mxu0 0.0
    %1553 = vmatpush1.msra.mxu0 0.0
    %1554 = vmatprep.subr.mxu0 0.0
    %1555 = vmatpush1.msra.mxu0 0.0
    %1556 = vmatprep.subr.mxu0 0.0
    %1557 = vmatpush1.msra.mxu0 0.0
    %1558 = vmatprep.subr.mxu0 0.0
    %1559 = vmatpush1.msra.mxu0 0.0
    %1560 = vmatprep.subr.mxu0 0.0
    %1561 = vmatpush1.msra.mxu0 0.0
    %1562 = vmatprep.subr.mxu0 0.0
    %1563 = vmatpush1.msra.mxu0 0.0
    %1564 = vmatprep.subr.mxu0 0.0
    %1565 = vmatpush1.msra.mxu0 0.0
    %1566 = vmatprep.subr.mxu0 0.0
    %1567 = vmatpush1.msra.mxu0 0.0
    %1568 = vmatprep.subr.mxu0 0.0
    %1569 = vmatpush1.msra.mxu0 0.0
    %1570 = vmatprep.subr.mxu0 0.0
    %1571 = vmatpush1.msra.mxu0 0.0
    %1572 = vmatprep.subr.mxu0 0.0
    %1573 = vmatpush1.msra.mxu0 0.0
    %1574 = vmatprep.subr.mxu0 0.0
    %1575 = vmatpush1.msra.mxu0 0.0
    %1576 = vmatprep.subr.mxu0 0.0
    %1577 = vmatpush1.msra.mxu0 0.0
    %1578 = vmatprep.subr.mxu0 0.0
    %1579 = vmatpush1.msra.mxu0 0.0
    %1580 = vmatprep.subr.mxu0 0.0
    %1581 = vmatpush1.msra.mxu0 0.0
    %1582 = vmatprep.mubr.f32.mxu0 0.0
    %1583 = vmatmul.mubr.f32.gmra.mrb[0].mxu0 %v1421
    %v1584 = vpop.f32.mrb[0].mxu0
    %v1585 = vadd.f32 %v486, %v1584
    %v1586 = vpop.f32.mrb[0].mxu0
    %1587 = vdwg.mxu0
    %1589 = vrot.lane.b32.xlu0 %v1342, 32
    %v1590 = vpop.permute.xlu0 %1589
    %v1591 = vsel %vm208, %v1590, 0
    %1593 = vmatprep.subr.mxu0 0.0
    %1594 = vmatpush1.msra.mxu0 %v121
    %1595 = vmatprep.subr.mxu0 0.0
    %1596 = vmatpush1.msra.mxu0 %v122
    %1597 = vmatprep.subr.mxu0 0.0
    %1598 = vmatpush1.msra.mxu0 %v123
    %1599 = vmatprep.subr.mxu0 0.0
    %1600 = vmatpush1.msra.mxu0 %v124
    %1601 = vmatprep.subr.mxu0 0.0
    %1602 = vmatpush1.msra.mxu0 0.0
    %1603 = vmatprep.subr.mxu0 0.0
    %1604 = vmatpush1.msra.mxu0 0.0
    %1605 = vmatprep.subr.mxu0 0.0
    %1606 = vmatpush1.msra.mxu0 0.0
    %1607 = vmatprep.subr.mxu0 0.0
    %1608 = vmatpush1.msra.mxu0 0.0
    %1609 = vmatprep.subr.mxu0 0.0
    %1610 = vmatpush1.msra.mxu0 0.0
    %1611 = vmatprep.subr.mxu0 0.0
    %1612 = vmatpush1.msra.mxu0 0.0
    %1613 = vmatprep.subr.mxu0 0.0
    %1614 = vmatpush1.msra.mxu0 0.0
    %1615 = vmatprep.subr.mxu0 0.0
    %1616 = vmatpush1.msra.mxu0 0.0
    %1617 = vmatprep.subr.mxu0 0.0
    %1618 = vmatpush1.msra.mxu0 0.0
    %1619 = vmatprep.subr.mxu0 0.0
    %1620 = vmatpush1.msra.mxu0 0.0
    %1621 = vmatprep.subr.mxu0 0.0
    %1622 = vmatpush1.msra.mxu0 0.0
    %1623 = vmatprep.subr.mxu0 0.0
    %1624 = vmatpush1.msra.mxu0 0.0
    %1625 = vmatprep.subr.mxu0 0.0
    %1626 = vmatpush1.msra.mxu0 0.0
    %1627 = vmatprep.subr.mxu0 0.0
    %1628 = vmatpush1.msra.mxu0 0.0
    %1629 = vmatprep.subr.mxu0 0.0
    %1630 = vmatpush1.msra.mxu0 0.0
    %1631 = vmatprep.subr.mxu0 0.0
    %1632 = vmatpush1.msra.mxu0 0.0
    %1633 = vmatprep.subr.mxu0 0.0
    %1634 = vmatpush1.msra.mxu0 0.0
    %1635 = vmatprep.subr.mxu0 0.0
    %1636 = vmatpush1.msra.mxu0 0.0
    %1637 = vmatprep.subr.mxu0 0.0
    %1638 = vmatpush1.msra.mxu0 0.0
    %1639 = vmatprep.subr.mxu0 0.0
    %1640 = vmatpush1.msra.mxu0 0.0
    %1641 = vmatprep.subr.mxu0 0.0
    %1642 = vmatpush1.msra.mxu0 0.0
    %1643 = vmatprep.subr.mxu0 0.0
    %1644 = vmatpush1.msra.mxu0 0.0
    %1645 = vmatprep.subr.mxu0 0.0
    %1646 = vmatpush1.msra.mxu0 0.0
    %1647 = vmatprep.subr.mxu0 0.0
    %1648 = vmatpush1.msra.mxu0 0.0
    %1649 = vmatprep.subr.mxu0 0.0
    %1650 = vmatpush1.msra.mxu0 0.0
    %1651 = vmatprep.subr.mxu0 0.0
    %1652 = vmatpush1.msra.mxu0 0.0
    %1653 = vmatprep.subr.mxu0 0.0
    %1654 = vmatpush1.msra.mxu0 0.0
    %1655 = vmatprep.subr.mxu0 0.0
    %1656 = vmatpush1.msra.mxu0 0.0
    %1657 = vmatprep.mubr.f32.mxu0 0.0
    %1658 = vmatmul.mubr.f32.gmra.mrb[0].mxu0 %v1591
    %v1659 = vpop.f32.mrb[0].mxu0
    %v1660 = vadd.f32 0.0, %v1659
    %v1661 = vpop.f32.mrb[0].mxu0
    %1662 = vdwg.mxu0
    %v1663 = vadd.f32 %v1585, %v1660
    %v1664 = vxor.u32 %v1663, 2147483648
    %v1665 = vmul.f32 %v1664, 1.442695
    %v1666 = vpow.pop %v1665
    %v1667 = vadd.f32 %v1666, 1.0
    %v1668 = vrcp.pop %v1667
    %v1669 = vmul.f32 1.0, %v1668
    %v1670 = vtanh.pop %v1663
    %v1671 = vmul.f32 %v1669, %v1336
    %1673 = vrot.lane.b32.xlu0 %v1670, 64
    %v1674 = vpop.permute.xlu0 %1673
    %v1676 = vmul.f32 %v1669, %v1674
    %1678 = vrot.lane.b32.xlu0 %v1676, 32
    %v1679 = vpop.permute.xlu0 %1678
    %v1681 = vadd.f32 %v1671, %v1679
    %v1682 = vtanh.pop %v1681
    %1684 = vrot.lane.b32.xlu0 %v1682, 64
    %v1685 = vpop.permute.xlu0 %1684
    %v1687 = vmul.f32 %v1669, %v1685
    %s1688 = scalar_lea.vmem [#allocation2], 20
    %v1689 = vld [vmem:[%s1688] sm:$0xf]
    %v1691 = vsel %vm134, %v1689, 0
    %1693 = vmatprep.subr.mxu0 0.0
    %1694 = vmatpush1.msra.mxu0 %v111
    %1695 = vmatprep.subr.mxu0 0.0
    %1696 = vmatpush1.msra.mxu0 %v112
    %1697 = vmatprep.subr.mxu0 0.0
    %1698 = vmatpush1.msra.mxu0 0.0
    %1699 = vmatprep.subr.mxu0 0.0
    %1700 = vmatpush1.msra.mxu0 0.0
    %1701 = vmatprep.subr.mxu0 0.0
    %1702 = vmatpush1.msra.mxu0 0.0
    %1703 = vmatprep.subr.mxu0 0.0
    %1704 = vmatpush1.msra.mxu0 0.0
    %1705 = vmatprep.subr.mxu0 0.0
    %1706 = vmatpush1.msra.mxu0 0.0
    %1707 = vmatprep.subr.mxu0 0.0
    %1708 = vmatpush1.msra.mxu0 0.0
    %1709 = vmatprep.subr.mxu0 0.0
    %1710 = vmatpush1.msra.mxu0 0.0
    %1711 = vmatprep.subr.mxu0 0.0
    %1712 = vmatpush1.msra.mxu0 0.0
    %1713 = vmatprep.subr.mxu0 0.0
    %1714 = vmatpush1.msra.mxu0 0.0
    %1715 = vmatprep.subr.mxu0 0.0
    %1716 = vmatpush1.msra.mxu0 0.0
    %1717 = vmatprep.subr.mxu0 0.0
    %1718 = vmatpush1.msra.mxu0 0.0
    %1719 = vmatprep.subr.mxu0 0.0
    %1720 = vmatpush1.msra.mxu0 0.0
    %1721 = vmatprep.subr.mxu0 0.0
    %1722 = vmatpush1.msra.mxu0 0.0
    %1723 = vmatprep.subr.mxu0 0.0
    %1724 = vmatpush1.msra.mxu0 0.0
    %1725 = vmatprep.subr.mxu0 0.0
    %1726 = vmatpush1.msra.mxu0 0.0
    %1727 = vmatprep.subr.mxu0 0.0
    %1728 = vmatpush1.msra.mxu0 0.0
    %1729 = vmatprep.subr.mxu0 0.0
    %1730 = vmatpush1.msra.mxu0 0.0
    %1731 = vmatprep.subr.mxu0 0.0
    %1732 = vmatpush1.msra.mxu0 0.0
    %1733 = vmatprep.subr.mxu0 0.0
    %1734 = vmatpush1.msra.mxu0 0.0
    %1735 = vmatprep.subr.mxu0 0.0
    %1736 = vmatpush1.msra.mxu0 0.0
    %1737 = vmatprep.subr.mxu0 0.0
    %1738 = vmatpush1.msra.mxu0 0.0
    %1739 = vmatprep.subr.mxu0 0.0
    %1740 = vmatpush1.msra.mxu0 0.0
    %1741 = vmatprep.subr.mxu0 0.0
    %1742 = vmatpush1.msra.mxu0 0.0
    %1743 = vmatprep.subr.mxu0 0.0
    %1744 = vmatpush1.msra.mxu0 0.0
    %1745 = vmatprep.subr.mxu0 0.0
    %1746 = vmatpush1.msra.mxu0 0.0
    %1747 = vmatprep.subr.mxu0 0.0
    %1748 = vmatpush1.msra.mxu0 0.0
    %1749 = vmatprep.subr.mxu0 0.0
    %1750 = vmatpush1.msra.mxu0 0.0
    %1751 = vmatprep.subr.mxu0 0.0
    %1752 = vmatpush1.msra.mxu0 0.0
    %1753 = vmatprep.subr.mxu0 0.0
    %1754 = vmatpush1.msra.mxu0 0.0
    %1755 = vmatprep.subr.mxu0 0.0
    %1756 = vmatpush1.msra.mxu0 0.0
    %1757 = vmatprep.mubr.f32.mxu0 0.0
    %1758 = vmatmul.mubr.f32.gmra.mrb[0].mxu0 %v1691
    %v1759 = vpop.f32.mrb[0].mxu0
    %v1760 = vadd.f32 %v132, %v1759
    %v1761 = vpop.f32.mrb[0].mxu0
    %1762 = vdwg.mxu0
    %1764 = vrot.lane.b32.xlu0 %v1517, 32
    %v1765 = vpop.permute.xlu0 %1764
    %v1766 = vsel %vm208, %v1765, 0
    %1768 = vmatprep.subr.mxu0 0.0
    %1769 = vmatpush1.msra.mxu0 %v117
    %1770 = vmatprep.subr.mxu0 0.0
    %1771 = vmatpush1.msra.mxu0 %v118
    %1772 = vmatprep.subr.mxu0 0.0
    %1773 = vmatpush1.msra.mxu0 %v119
    %1774 = vmatprep.subr.mxu0 0.0
    %1775 = vmatpush1.msra.mxu0 %v120
    %1776 = vmatprep.subr.mxu0 0.0
    %1777 = vmatpush1.msra.mxu0 0.0
    %1778 = vmatprep.subr.mxu0 0.0
    %1779 = vmatpush1.msra.mxu0 0.0
    %1780 = vmatprep.subr.mxu0 0.0
    %1781 = vmatpush1.msra.mxu0 0.0
    %1782 = vmatprep.subr.mxu0 0.0
    %1783 = vmatpush1.msra.mxu0 0.0
    %1784 = vmatprep.subr.mxu0 0.0
    %1785 = vmatpush1.msra.mxu0 0.0
    %1786 = vmatprep.subr.mxu0 0.0
    %1787 = vmatpush1.msra.mxu0 0.0
    %1788 = vmatprep.subr.mxu0 0.0
    %1789 = vmatpush1.msra.mxu0 0.0
    %1790 = vmatprep.subr.mxu0 0.0
    %1791 = vmatpush1.msra.mxu0 0.0
    %1792 = vmatprep.subr.mxu0 0.0
    %1793 = vmatpush1.msra.mxu0 0.0
    %1794 = vmatprep.subr.mxu0 0.0
    %1795 = vmatpush1.msra.mxu0 0.0
    %1796 = vmatprep.subr.mxu0 0.0
    %1797 = vmatpush1.msra.mxu0 0.0
    %1798 = vmatprep.subr.mxu0 0.0
    %1799 = vmatpush1.msra.mxu0 0.0
    %1800 = vmatprep.subr.mxu0 0.0
    %1801 = vmatpush1.msra.mxu0 0.0
    %1802 = vmatprep.subr.mxu0 0.0
    %1803 = vmatpush1.msra.mxu0 0.0
    %1804 = vmatprep.subr.mxu0 0.0
    %1805 = vmatpush1.msra.mxu0 0.0
    %1806 = vmatprep.subr.mxu0 0.0
    %1807 = vmatpush1.msra.mxu0 0.0
    %1808 = vmatprep.subr.mxu0 0.0
    %1809 = vmatpush1.msra.mxu0 0.0
    %1810 = vmatprep.subr.mxu0 0.0
    %1811 = vmatpush1.msra.mxu0 0.0
    %1812 = vmatprep.subr.mxu0 0.0
    %1813 = vmatpush1.msra.mxu0 0.0
    %1814 = vmatprep.subr.mxu0 0.0
    %1815 = vmatpush1.msra.mxu0 0.0
    %1816 = vmatprep.subr.mxu0 0.0
    %1817 = vmatpush1.msra.mxu0 0.0
    %1818 = vmatprep.subr.mxu0 0.0
    %1819 = vmatpush1.msra.mxu0 0.0
    %1820 = vmatprep.subr.mxu0 0.0
    %1821 = vmatpush1.msra.mxu0 0.0
    %1822 = vmatprep.subr.mxu0 0.0
    %1823 = vmatpush1.msra.mxu0 0.0
    %1824 = vmatprep.subr.mxu0 0.0
    %1825 = vmatpush1.msra.mxu0 0.0
    %1826 = vmatprep.subr.mxu0 0.0
    %1827 = vmatpush1.msra.mxu0 0.0
    %1828 = vmatprep.subr.mxu0 0.0
    %1829 = vmatpush1.msra.mxu0 0.0
    %1830 = vmatprep.subr.mxu0 0.0
    %1831 = vmatpush1.msra.mxu0 0.0
    %1832 = vmatprep.mubr.f32.mxu0 0.0
    %1833 = vmatmul.mubr.f32.gmra.mrb[0].mxu0 %v1766
    %v1834 = vpop.f32.mrb[0].mxu0
    %v1835 = vadd.f32 0.0, %v1834
    %v1836 = vpop.f32.mrb[0].mxu0
    %1837 = vdwg.mxu0
    %v1838 = vadd.f32 %v1760, %v1835
    %v1839 = vxor.u32 %v1838, 2147483648
    %v1840 = vmul.f32 %v1839, 1.442695
    %v1841 = vpow.pop %v1840
    %v1842 = vadd.f32 %v1841, 1.0
    %v1843 = vrcp.pop %v1842
    %v1844 = vmul.f32 1.0, %v1843
    %v1845 = vtanh.pop %v1838
    %v1846 = vmul.f32 %v1844, %v1511
    %1848 = vrot.lane.b32.xlu0 %v1845, 64
    %v1849 = vpop.permute.xlu0 %1848
    %v1851 = vmul.f32 %v1844, %v1849
    %1853 = vrot.lane.b32.xlu0 %v1851, 32
    %v1854 = vpop.permute.xlu0 %1853
    %v1856 = vadd.f32 %v1846, %v1854
    %v1857 = vtanh.pop %v1856
    %1859 = vrot.lane.b32.xlu0 %v1857, 64
    %v1860 = vpop.permute.xlu0 %1859
    %v1862 = vmul.f32 %v1844, %v1860
    %1863 = vmatprep.subr.mxu0 0.0
    %1864 = vmatpush1.msra.mxu0 %v113
    %1865 = vmatprep.subr.mxu0 0.0
    %1866 = vmatpush1.msra.mxu0 %v114
    %1867 = vmatprep.subr.mxu0 0.0
    %1868 = vmatpush1.msra.mxu0 %v115
    %1869 = vmatprep.subr.mxu0 0.0
    %1870 = vmatpush1.msra.mxu0 %v116
    %1871 = vmatprep.subr.mxu0 0.0
    %1872 = vmatpush1.msra.mxu0 0.0
    %1873 = vmatprep.subr.mxu0 0.0
    %1874 = vmatpush1.msra.mxu0 0.0
    %1875 = vmatprep.subr.mxu0 0.0
    %1876 = vmatpush1.msra.mxu0 0.0
    %1877 = vmatprep.subr.mxu0 0.0
    %1878 = vmatpush1.msra.mxu0 0.0
    %1879 = vmatprep.subr.mxu0 0.0
    %1880 = vmatpush1.msra.mxu0 0.0
    %1881 = vmatprep.subr.mxu0 0.0
    %1882 = vmatpush1.msra.mxu0 0.0
    %1883 = vmatprep.subr.mxu0 0.0
    %1884 = vmatpush1.msra.mxu0 0.0
    %1885 = vmatprep.subr.mxu0 0.0
    %1886 = vmatpush1.msra.mxu0 0.0
    %1887 = vmatprep.subr.mxu0 0.0
    %1888 = vmatpush1.msra.mxu0 0.0
    %1889 = vmatprep.subr.mxu0 0.0
    %1890 = vmatpush1.msra.mxu0 0.0
    %1891 = vmatprep.subr.mxu0 0.0
    %1892 = vmatpush1.msra.mxu0 0.0
    %1893 = vmatprep.subr.mxu0 0.0
    %1894 = vmatpush1.msra.mxu0 0.0
    %1895 = vmatprep.subr.mxu0 0.0
    %1896 = vmatpush1.msra.mxu0 0.0
    %1897 = vmatprep.subr.mxu0 0.0
    %1898 = vmatpush1.msra.mxu0 0.0
    %1899 = vmatprep.subr.mxu0 0.0
    %1900 = vmatpush1.msra.mxu0 0.0
    %1901 = vmatprep.subr.mxu0 0.0
    %1902 = vmatpush1.msra.mxu0 0.0
    %1903 = vmatprep.subr.mxu0 0.0
    %1904 = vmatpush1.msra.mxu0 0.0
    %1905 = vmatprep.subr.mxu0 0.0
    %1906 = vmatpush1.msra.mxu0 0.0
    %1907 = vmatprep.subr.mxu0 0.0
    %1908 = vmatpush1.msra.mxu0 0.0
    %1909 = vmatprep.subr.mxu0 0.0
    %1910 = vmatpush1.msra.mxu0 0.0
    %1911 = vmatprep.subr.mxu0 0.0
    %1912 = vmatpush1.msra.mxu0 0.0
    %1913 = vmatprep.subr.mxu0 0.0
    %1914 = vmatpush1.msra.mxu0 0.0
    %1915 = vmatprep.subr.mxu0 0.0
    %1916 = vmatpush1.msra.mxu0 0.0
    %1917 = vmatprep.subr.mxu0 0.0
    %1918 = vmatpush1.msra.mxu0 0.0
    %1919 = vmatprep.subr.mxu0 0.0
    %1920 = vmatpush1.msra.mxu0 0.0
    %1921 = vmatprep.subr.mxu0 0.0
    %1922 = vmatpush1.msra.mxu0 0.0
    %1923 = vmatprep.subr.mxu0 0.0
    %1924 = vmatpush1.msra.mxu0 0.0
    %1925 = vmatprep.subr.mxu0 0.0
    %1926 = vmatpush1.msra.mxu0 0.0
    %1927 = vmatprep.mubr.f32.mxu0 0.0
    %1928 = vmatmul.mubr.f32.gmra.mrb[0].mxu0 %v1766
    %v1929 = vpop.f32.mrb[0].mxu0
    %v1930 = vadd.f32 %v486, %v1929
    %v1931 = vpop.f32.mrb[0].mxu0
    %1932 = vdwg.mxu0
    %1934 = vrot.lane.b32.xlu0 %v1687, 32
    %v1935 = vpop.permute.xlu0 %1934
    %v1936 = vsel %vm208, %v1935, 0
    %1938 = vmatprep.subr.mxu0 0.0
    %1939 = vmatpush1.msra.mxu0 %v121
    %1940 = vmatprep.subr.mxu0 0.0
    %1941 = vmatpush1.msra.mxu0 %v122
    %1942 = vmatprep.subr.mxu0 0.0
    %1943 = vmatpush1.msra.mxu0 %v123
    %1944 = vmatprep.subr.mxu0 0.0
    %1945 = vmatpush1.msra.mxu0 %v124
    %1946 = vmatprep.subr.mxu0 0.0
    %1947 = vmatpush1.msra.mxu0 0.0
    %1948 = vmatprep.subr.mxu0 0.0
    %1949 = vmatpush1.msra.mxu0 0.0
    %1950 = vmatprep.subr.mxu0 0.0
    %1951 = vmatpush1.msra.mxu0 0.0
    %1952 = vmatprep.subr.mxu0 0.0
    %1953 = vmatpush1.msra.mxu0 0.0
    %1954 = vmatprep.subr.mxu0 0.0
    %1955 = vmatpush1.msra.mxu0 0.0
    %1956 = vmatprep.subr.mxu0 0.0
    %1957 = vmatpush1.msra.mxu0 0.0
    %1958 = vmatprep.subr.mxu0 0.0
    %1959 = vmatpush1.msra.mxu0 0.0
    %1960 = vmatprep.subr.mxu0 0.0
    %1961 = vmatpush1.msra.mxu0 0.0
    %1962 = vmatprep.subr.mxu0 0.0
    %1963 = vmatpush1.msra.mxu0 0.0
    %1964 = vmatprep.subr.mxu0 0.0
    %1965 = vmatpush1.msra.mxu0 0.0
    %1966 = vmatprep.subr.mxu0 0.0
    %1967 = vmatpush1.msra.mxu0 0.0
    %1968 = vmatprep.subr.mxu0 0.0
    %1969 = vmatpush1.msra.mxu0 0.0
    %1970 = vmatprep.subr.mxu0 0.0
    %1971 = vmatpush1.msra.mxu0 0.0
    %1972 = vmatprep.subr.mxu0 0.0
    %1973 = vmatpush1.msra.mxu0 0.0
    %1974 = vmatprep.subr.mxu0 0.0
    %1975 = vmatpush1.msra.mxu0 0.0
    %1976 = vmatprep.subr.mxu0 0.0
    %1977 = vmatpush1.msra.mxu0 0.0
    %1978 = vmatprep.subr.mxu0 0.0
    %1979 = vmatpush1.msra.mxu0 0.0
    %1980 = vmatprep.subr.mxu0 0.0
    %1981 = vmatpush1.msra.mxu0 0.0
    %1982 = vmatprep.subr.mxu0 0.0
    %1983 = vmatpush1.msra.mxu0 0.0
    %1984 = vmatprep.subr.mxu0 0.0
    %1985 = vmatpush1.msra.mxu0 0.0
    %1986 = vmatprep.subr.mxu0 0.0
    %1987 = vmatpush1.msra.mxu0 0.0
    %1988 = vmatprep.subr.mxu0 0.0
    %1989 = vmatpush1.msra.mxu0 0.0
    %1990 = vmatprep.subr.mxu0 0.0
    %1991 = vmatpush1.msra.mxu0 0.0
    %1992 = vmatprep.subr.mxu0 0.0
    %1993 = vmatpush1.msra.mxu0 0.0
    %1994 = vmatprep.subr.mxu0 0.0
    %1995 = vmatpush1.msra.mxu0 0.0
    %1996 = vmatprep.subr.mxu0 0.0
    %1997 = vmatpush1.msra.mxu0 0.0
    %1998 = vmatprep.subr.mxu0 0.0
    %1999 = vmatpush1.msra.mxu0 0.0
    %2000 = vmatprep.subr.mxu0 0.0
    %2001 = vmatpush1.msra.mxu0 0.0
    %2002 = vmatprep.mubr.f32.mxu0 0.0
    %2003 = vmatmul.mubr.f32.gmra.mrb[0].mxu0 %v1936
    %v2004 = vpop.f32.mrb[0].mxu0
    %v2005 = vadd.f32 0.0, %v2004
    %v2006 = vpop.f32.mrb[0].mxu0
    %2007 = vdwg.mxu0
    %v2008 = vadd.f32 %v1930, %v2005
    %v2009 = vxor.u32 %v2008, 2147483648
    %v2010 = vmul.f32 %v2009, 1.442695
    %v2011 = vpow.pop %v2010
    %v2012 = vadd.f32 %v2011, 1.0
    %v2013 = vrcp.pop %v2012
    %v2014 = vmul.f32 1.0, %v2013
    %v2015 = vtanh.pop %v2008
    %v2016 = vmul.f32 %v2014, %v1681
    %2018 = vrot.lane.b32.xlu0 %v2015, 64
    %v2019 = vpop.permute.xlu0 %2018
    %v2021 = vmul.f32 %v2014, %v2019
    %2023 = vrot.lane.b32.xlu0 %v2021, 32
    %v2024 = vpop.permute.xlu0 %2023
    %v2026 = vadd.f32 %v2016, %v2024
    %v2027 = vtanh.pop %v2026
    %2029 = vrot.lane.b32.xlu0 %v2027, 64
    %v2030 = vpop.permute.xlu0 %2029
    %v2032 = vmul.f32 %v2014, %v2030
    %s2033 = scalar_lea.vmem [#allocation2], 24
    %v2034 = vld [vmem:[%s2033] sm:$0xf]
    %v2036 = vsel %vm134, %v2034, 0
    %2038 = vmatprep.subr.mxu0 0.0
    %2039 = vmatpush1.msra.mxu0 %v111
    %2040 = vmatprep.subr.mxu0 0.0
    %2041 = vmatpush1.msra.mxu0 %v112
    %2042 = vmatprep.subr.mxu0 0.0
    %2043 = vmatpush1.msra.mxu0 0.0
    %2044 = vmatprep.subr.mxu0 0.0
    %2045 = vmatpush1.msra.mxu0 0.0
    %2046 = vmatprep.subr.mxu0 0.0
    %2047 = vmatpush1.msra.mxu0 0.0
    %2048 = vmatprep.subr.mxu0 0.0
    %2049 = vmatpush1.msra.mxu0 0.0
    %2050 = vmatprep.subr.mxu0 0.0
    %2051 = vmatpush1.msra.mxu0 0.0
    %2052 = vmatprep.subr.mxu0 0.0
    %2053 = vmatpush1.msra.mxu0 0.0
    %2054 = vmatprep.subr.mxu0 0.0
    %2055 = vmatpush1.msra.mxu0 0.0
    %2056 = vmatprep.subr.mxu0 0.0
    %2057 = vmatpush1.msra.mxu0 0.0
    %2058 = vmatprep.subr.mxu0 0.0
    %2059 = vmatpush1.msra.mxu0 0.0
    %2060 = vmatprep.subr.mxu0 0.0
    %2061 = vmatpush1.msra.mxu0 0.0
    %2062 = vmatprep.subr.mxu0 0.0
    %2063 = vmatpush1.msra.mxu0 0.0
    %2064 = vmatprep.subr.mxu0 0.0
    %2065 = vmatpush1.msra.mxu0 0.0
    %2066 = vmatprep.subr.mxu0 0.0
    %2067 = vmatpush1.msra.mxu0 0.0
    %2068 = vmatprep.subr.mxu0 0.0
    %2069 = vmatpush1.msra.mxu0 0.0
    %2070 = vmatprep.subr.mxu0 0.0
    %2071 = vmatpush1.msra.mxu0 0.0
    %2072 = vmatprep.subr.mxu0 0.0
    %2073 = vmatpush1.msra.mxu0 0.0
    %2074 = vmatprep.subr.mxu0 0.0
    %2075 = vmatpush1.msra.mxu0 0.0
    %2076 = vmatprep.subr.mxu0 0.0
    %2077 = vmatpush1.msra.mxu0 0.0
    %2078 = vmatprep.subr.mxu0 0.0
    %2079 = vmatpush1.msra.mxu0 0.0
    %2080 = vmatprep.subr.mxu0 0.0
    %2081 = vmatpush1.msra.mxu0 0.0
    %2082 = vmatprep.subr.mxu0 0.0
    %2083 = vmatpush1.msra.mxu0 0.0
    %2084 = vmatprep.subr.mxu0 0.0
    %2085 = vmatpush1.msra.mxu0 0.0
    %2086 = vmatprep.subr.mxu0 0.0
    %2087 = vmatpush1.msra.mxu0 0.0
    %2088 = vmatprep.subr.mxu0 0.0
    %2089 = vmatpush1.msra.mxu0 0.0
    %2090 = vmatprep.subr.mxu0 0.0
    %2091 = vmatpush1.msra.mxu0 0.0
    %2092 = vmatprep.subr.mxu0 0.0
    %2093 = vmatpush1.msra.mxu0 0.0
    %2094 = vmatprep.subr.mxu0 0.0
    %2095 = vmatpush1.msra.mxu0 0.0
    %2096 = vmatprep.subr.mxu0 0.0
    %2097 = vmatpush1.msra.mxu0 0.0
    %2098 = vmatprep.subr.mxu0 0.0
    %2099 = vmatpush1.msra.mxu0 0.0
    %2100 = vmatprep.subr.mxu0 0.0
    %2101 = vmatpush1.msra.mxu0 0.0
    %2102 = vmatprep.mubr.f32.mxu0 0.0
    %2103 = vmatmul.mubr.f32.gmra.mrb[0].mxu0 %v2036
    %v2104 = vpop.f32.mrb[0].mxu0
    %v2105 = vadd.f32 %v132, %v2104
    %v2106 = vpop.f32.mrb[0].mxu0
    %2107 = vdwg.mxu0
    %2109 = vrot.lane.b32.xlu0 %v1862, 32
    %v2110 = vpop.permute.xlu0 %2109
    %v2111 = vsel %vm208, %v2110, 0
    %2113 = vmatprep.subr.mxu0 0.0
    %2114 = vmatpush1.msra.mxu0 %v117
    %2115 = vmatprep.subr.mxu0 0.0
    %2116 = vmatpush1.msra.mxu0 %v118
    %2117 = vmatprep.subr.mxu0 0.0
    %2118 = vmatpush1.msra.mxu0 %v119
    %2119 = vmatprep.subr.mxu0 0.0
    %2120 = vmatpush1.msra.mxu0 %v120
    %2121 = vmatprep.subr.mxu0 0.0
    %2122 = vmatpush1.msra.mxu0 0.0
    %2123 = vmatprep.subr.mxu0 0.0
    %2124 = vmatpush1.msra.mxu0 0.0
    %2125 = vmatprep.subr.mxu0 0.0
    %2126 = vmatpush1.msra.mxu0 0.0
    %2127 = vmatprep.subr.mxu0 0.0
    %2128 = vmatpush1.msra.mxu0 0.0
    %2129 = vmatprep.subr.mxu0 0.0
    %2130 = vmatpush1.msra.mxu0 0.0
    %2131 = vmatprep.subr.mxu0 0.0
    %2132 = vmatpush1.msra.mxu0 0.0
    %2133 = vmatprep.subr.mxu0 0.0
    %2134 = vmatpush1.msra.mxu0 0.0
    %2135 = vmatprep.subr.mxu0 0.0
    %2136 = vmatpush1.msra.mxu0 0.0
    %2137 = vmatprep.subr.mxu0 0.0
    %2138 = vmatpush1.msra.mxu0 0.0
    %2139 = vmatprep.subr.mxu0 0.0
    %2140 = vmatpush1.msra.mxu0 0.0
    %2141 = vmatprep.subr.mxu0 0.0
    %2142 = vmatpush1.msra.mxu0 0.0
    %2143 = vmatprep.subr.mxu0 0.0
    %2144 = vmatpush1.msra.mxu0 0.0
    %2145 = vmatprep.subr.mxu0 0.0
    %2146 = vmatpush1.msra.mxu0 0.0
    %2147 = vmatprep.subr.mxu0 0.0
    %2148 = vmatpush1.msra.mxu0 0.0
    %2149 = vmatprep.subr.mxu0 0.0
    %2150 = vmatpush1.msra.mxu0 0.0
    %2151 = vmatprep.subr.mxu0 0.0
    %2152 = vmatpush1.msra.mxu0 0.0
    %2153 = vmatprep.subr.mxu0 0.0
    %2154 = vmatpush1.msra.mxu0 0.0
    %2155 = vmatprep.subr.mxu0 0.0
    %2156 = vmatpush1.msra.mxu0 0.0
    %2157 = vmatprep.subr.mxu0 0.0
    %2158 = vmatpush1.msra.mxu0 0.0
    %2159 = vmatprep.subr.mxu0 0.0
    %2160 = vmatpush1.msra.mxu0 0.0
    %2161 = vmatprep.subr.mxu0 0.0
    %2162 = vmatpush1.msra.mxu0 0.0
    %2163 = vmatprep.subr.mxu0 0.0
    %2164 = vmatpush1.msra.mxu0 0.0
    %2165 = vmatprep.subr.mxu0 0.0
    %2166 = vmatpush1.msra.mxu0 0.0
    %2167 = vmatprep.subr.mxu0 0.0
    %2168 = vmatpush1.msra.mxu0 0.0
    %2169 = vmatprep.subr.mxu0 0.0
    %2170 = vmatpush1.msra.mxu0 0.0
    %2171 = vmatprep.subr.mxu0 0.0
    %2172 = vmatpush1.msra.mxu0 0.0
    %2173 = vmatprep.subr.mxu0 0.0
    %2174 = vmatpush1.msra.mxu0 0.0
    %2175 = vmatprep.subr.mxu0 0.0
    %2176 = vmatpush1.msra.mxu0 0.0
    %2177 = vmatprep.mubr.f32.mxu0 0.0
    %2178 = vmatmul.mubr.f32.gmra.mrb[0].mxu0 %v2111
    %v2179 = vpop.f32.mrb[0].mxu0
    %v2180 = vadd.f32 0.0, %v2179
    %v2181 = vpop.f32.mrb[0].mxu0
    %2182 = vdwg.mxu0
    %v2183 = vadd.f32 %v2105, %v2180
    %v2184 = vxor.u32 %v2183, 2147483648
    %v2185 = vmul.f32 %v2184, 1.442695
    %v2186 = vpow.pop %v2185
    %v2187 = vadd.f32 %v2186, 1.0
    %v2188 = vrcp.pop %v2187
    %v2189 = vmul.f32 1.0, %v2188
    %v2190 = vtanh.pop %v2183
    %v2191 = vmul.f32 %v2189, %v1856
    %2193 = vrot.lane.b32.xlu0 %v2190, 64
    %v2194 = vpop.permute.xlu0 %2193
    %v2196 = vmul.f32 %v2189, %v2194
    %2198 = vrot.lane.b32.xlu0 %v2196, 32
    %v2199 = vpop.permute.xlu0 %2198
    %v2201 = vadd.f32 %v2191, %v2199
    %v2202 = vtanh.pop %v2201
    %2204 = vrot.lane.b32.xlu0 %v2202, 64
    %v2205 = vpop.permute.xlu0 %2204
    %v2207 = vmul.f32 %v2189, %v2205
    %2208 = vmatprep.subr.mxu0 0.0
    %2209 = vmatpush1.msra.mxu0 %v113
    %2210 = vmatprep.subr.mxu0 0.0
    %2211 = vmatpush1.msra.mxu0 %v114
    %2212 = vmatprep.subr.mxu0 0.0
    %2213 = vmatpush1.msra.mxu0 %v115
    %2214 = vmatprep.subr.mxu0 0.0
    %2215 = vmatpush1.msra.mxu0 %v116
    %2216 = vmatprep.subr.mxu0 0.0
    %2217 = vmatpush1.msra.mxu0 0.0
    %2218 = vmatprep.subr.mxu0 0.0
    %2219 = vmatpush1.msra.mxu0 0.0
    %2220 = vmatprep.subr.mxu0 0.0
    %2221 = vmatpush1.msra.mxu0 0.0
    %2222 = vmatprep.subr.mxu0 0.0
    %2223 = vmatpush1.msra.mxu0 0.0
    %2224 = vmatprep.subr.mxu0 0.0
    %2225 = vmatpush1.msra.mxu0 0.0
    %2226 = vmatprep.subr.mxu0 0.0
    %2227 = vmatpush1.msra.mxu0 0.0
    %2228 = vmatprep.subr.mxu0 0.0
    %2229 = vmatpush1.msra.mxu0 0.0
    %2230 = vmatprep.subr.mxu0 0.0
    %2231 = vmatpush1.msra.mxu0 0.0
    %2232 = vmatprep.subr.mxu0 0.0
    %2233 = vmatpush1.msra.mxu0 0.0
    %2234 = vmatprep.subr.mxu0 0.0
    %2235 = vmatpush1.msra.mxu0 0.0
    %2236 = vmatprep.subr.mxu0 0.0
    %2237 = vmatpush1.msra.mxu0 0.0
    %2238 = vmatprep.subr.mxu0 0.0
    %2239 = vmatpush1.msra.mxu0 0.0
    %2240 = vmatprep.subr.mxu0 0.0
    %2241 = vmatpush1.msra.mxu0 0.0
    %2242 = vmatprep.subr.mxu0 0.0
    %2243 = vmatpush1.msra.mxu0 0.0
    %2244 = vmatprep.subr.mxu0 0.0
    %2245 = vmatpush1.msra.mxu0 0.0
    %2246 = vmatprep.subr.mxu0 0.0
    %2247 = vmatpush1.msra.mxu0 0.0
    %2248 = vmatprep.subr.mxu0 0.0
    %2249 = vmatpush1.msra.mxu0 0.0
    %2250 = vmatprep.subr.mxu0 0.0
    %2251 = vmatpush1.msra.mxu0 0.0
    %2252 = vmatprep.subr.mxu0 0.0
    %2253 = vmatpush1.msra.mxu0 0.0
    %2254 = vmatprep.subr.mxu0 0.0
    %2255 = vmatpush1.msra.mxu0 0.0
    %2256 = vmatprep.subr.mxu0 0.0
    %2257 = vmatpush1.msra.mxu0 0.0
    %2258 = vmatprep.subr.mxu0 0.0
    %2259 = vmatpush1.msra.mxu0 0.0
    %2260 = vmatprep.subr.mxu0 0.0
    %2261 = vmatpush1.msra.mxu0 0.0
    %2262 = vmatprep.subr.mxu0 0.0
    %2263 = vmatpush1.msra.mxu0 0.0
    %2264 = vmatprep.subr.mxu0 0.0
    %2265 = vmatpush1.msra.mxu0 0.0
    %2266 = vmatprep.subr.mxu0 0.0
    %2267 = vmatpush1.msra.mxu0 0.0
    %2268 = vmatprep.subr.mxu0 0.0
    %2269 = vmatpush1.msra.mxu0 0.0
    %2270 = vmatprep.subr.mxu0 0.0
    %2271 = vmatpush1.msra.mxu0 0.0
    %2272 = vmatprep.mubr.f32.mxu0 0.0
    %2273 = vmatmul.mubr.f32.gmra.mrb[0].mxu0 %v2111
    %v2274 = vpop.f32.mrb[0].mxu0
    %v2275 = vadd.f32 %v486, %v2274
    %v2276 = vpop.f32.mrb[0].mxu0
    %2277 = vdwg.mxu0
    %2279 = vrot.lane.b32.xlu0 %v2032, 32
    %v2280 = vpop.permute.xlu0 %2279
    %v2281 = vsel %vm208, %v2280, 0
    %2283 = vmatprep.subr.mxu0 0.0
    %2284 = vmatpush1.msra.mxu0 %v121
    %2285 = vmatprep.subr.mxu0 0.0
    %2286 = vmatpush1.msra.mxu0 %v122
    %2287 = vmatprep.subr.mxu0 0.0
    %2288 = vmatpush1.msra.mxu0 %v123
    %2289 = vmatprep.subr.mxu0 0.0
    %2290 = vmatpush1.msra.mxu0 %v124
    %2291 = vmatprep.subr.mxu0 0.0
    %2292 = vmatpush1.msra.mxu0 0.0
    %2293 = vmatprep.subr.mxu0 0.0
    %2294 = vmatpush1.msra.mxu0 0.0
    %2295 = vmatprep.subr.mxu0 0.0
    %2296 = vmatpush1.msra.mxu0 0.0
    %2297 = vmatprep.subr.mxu0 0.0
    %2298 = vmatpush1.msra.mxu0 0.0
    %2299 = vmatprep.subr.mxu0 0.0
    %2300 = vmatpush1.msra.mxu0 0.0
    %2301 = vmatprep.subr.mxu0 0.0
    %2302 = vmatpush1.msra.mxu0 0.0
    %2303 = vmatprep.subr.mxu0 0.0
    %2304 = vmatpush1.msra.mxu0 0.0
    %2305 = vmatprep.subr.mxu0 0.0
    %2306 = vmatpush1.msra.mxu0 0.0
    %2307 = vmatprep.subr.mxu0 0.0
    %2308 = vmatpush1.msra.mxu0 0.0
    %2309 = vmatprep.subr.mxu0 0.0
    %2310 = vmatpush1.msra.mxu0 0.0
    %2311 = vmatprep.subr.mxu0 0.0
    %2312 = vmatpush1.msra.mxu0 0.0
    %2313 = vmatprep.subr.mxu0 0.0
    %2314 = vmatpush1.msra.mxu0 0.0
    %2315 = vmatprep.subr.mxu0 0.0
    %2316 = vmatpush1.msra.mxu0 0.0
    %2317 = vmatprep.subr.mxu0 0.0
    %2318 = vmatpush1.msra.mxu0 0.0
    %2319 = vmatprep.subr.mxu0 0.0
    %2320 = vmatpush1.msra.mxu0 0.0
    %2321 = vmatprep.subr.mxu0 0.0
    %2322 = vmatpush1.msra.mxu0 0.0
    %2323 = vmatprep.subr.mxu0 0.0
    %2324 = vmatpush1.msra.mxu0 0.0
    %2325 = vmatprep.subr.mxu0 0.0
    %2326 = vmatpush1.msra.mxu0 0.0
    %2327 = vmatprep.subr.mxu0 0.0
    %2328 = vmatpush1.msra.mxu0 0.0
    %2329 = vmatprep.subr.mxu0 0.0
    %2330 = vmatpush1.msra.mxu0 0.0
    %2331 = vmatprep.subr.mxu0 0.0
    %2332 = vmatpush1.msra.mxu0 0.0
    %2333 = vmatprep.subr.mxu0 0.0
    %2334 = vmatpush1.msra.mxu0 0.0
    %2335 = vmatprep.subr.mxu0 0.0
    %2336 = vmatpush1.msra.mxu0 0.0
    %2337 = vmatprep.subr.mxu0 0.0
    %2338 = vmatpush1.msra.mxu0 0.0
    %2339 = vmatprep.subr.mxu0 0.0
    %2340 = vmatpush1.msra.mxu0 0.0
    %2341 = vmatprep.subr.mxu0 0.0
    %2342 = vmatpush1.msra.mxu0 0.0
    %2343 = vmatprep.subr.mxu0 0.0
    %2344 = vmatpush1.msra.mxu0 0.0
    %2345 = vmatprep.subr.mxu0 0.0
    %2346 = vmatpush1.msra.mxu0 0.0
    %2347 = vmatprep.mubr.f32.mxu0 0.0
    %2348 = vmatmul.mubr.f32.gmra.mrb[0].mxu0 %v2281
    %v2349 = vpop.f32.mrb[0].mxu0
    %v2350 = vadd.f32 0.0, %v2349
    %v2351 = vpop.f32.mrb[0].mxu0
    %2352 = vdwg.mxu0
    %v2353 = vadd.f32 %v2275, %v2350
    %v2354 = vxor.u32 %v2353, 2147483648
    %v2355 = vmul.f32 %v2354, 1.442695
    %v2356 = vpow.pop %v2355
    %v2357 = vadd.f32 %v2356, 1.0
    %v2358 = vrcp.pop %v2357
    %v2359 = vmul.f32 1.0, %v2358
    %v2360 = vtanh.pop %v2353
    %v2361 = vmul.f32 %v2359, %v2026
    %2363 = vrot.lane.b32.xlu0 %v2360, 64
    %v2364 = vpop.permute.xlu0 %2363
    %v2366 = vmul.f32 %v2359, %v2364
    %2368 = vrot.lane.b32.xlu0 %v2366, 32
    %v2369 = vpop.permute.xlu0 %2368
    %v2371 = vadd.f32 %v2361, %v2369
    %v2372 = vtanh.pop %v2371
    %2374 = vrot.lane.b32.xlu0 %v2372, 64
    %v2375 = vpop.permute.xlu0 %2374
    %v2377 = vmul.f32 %v2359, %v2375
    %s2378 = scalar_lea.vmem [#allocation2], 28
    %v2379 = vld [vmem:[%s2378] sm:$0xf]
    %v2381 = vsel %vm134, %v2379, 0
    %2383 = vmatprep.subr.mxu0 0.0
    %2384 = vmatpush1.msra.mxu0 %v111
    %2385 = vmatprep.subr.mxu0 0.0
    %2386 = vmatpush1.msra.mxu0 %v112
    %2387 = vmatprep.subr.mxu0 0.0
    %2388 = vmatpush1.msra.mxu0 0.0
    %2389 = vmatprep.subr.mxu0 0.0
    %2390 = vmatpush1.msra.mxu0 0.0
    %2391 = vmatprep.subr.mxu0 0.0
    %2392 = vmatpush1.msra.mxu0 0.0
    %2393 = vmatprep.subr.mxu0 0.0
    %2394 = vmatpush1.msra.mxu0 0.0
    %2395 = vmatprep.subr.mxu0 0.0
    %2396 = vmatpush1.msra.mxu0 0.0
    %2397 = vmatprep.subr.mxu0 0.0
    %2398 = vmatpush1.msra.mxu0 0.0
    %2399 = vmatprep.subr.mxu0 0.0
    %2400 = vmatpush1.msra.mxu0 0.0
    %2401 = vmatprep.subr.mxu0 0.0
    %2402 = vmatpush1.msra.mxu0 0.0
    %2403 = vmatprep.subr.mxu0 0.0
    %2404 = vmatpush1.msra.mxu0 0.0
    %2405 = vmatprep.subr.mxu0 0.0
    %2406 = vmatpush1.msra.mxu0 0.0
    %2407 = vmatprep.subr.mxu0 0.0
    %2408 = vmatpush1.msra.mxu0 0.0
    %2409 = vmatprep.subr.mxu0 0.0
    %2410 = vmatpush1.msra.mxu0 0.0
    %2411 = vmatprep.subr.mxu0 0.0
    %2412 = vmatpush1.msra.mxu0 0.0
    %2413 = vmatprep.subr.mxu0 0.0
    %2414 = vmatpush1.msra.mxu0 0.0
    %2415 = vmatprep.subr.mxu0 0.0
    %2416 = vmatpush1.msra.mxu0 0.0
    %2417 = vmatprep.subr.mxu0 0.0
    %2418 = vmatpush1.msra.mxu0 0.0
    %2419 = vmatprep.subr.mxu0 0.0
    %2420 = vmatpush1.msra.mxu0 0.0
    %2421 = vmatprep.subr.mxu0 0.0
    %2422 = vmatpush1.msra.mxu0 0.0
    %2423 = vmatprep.subr.mxu0 0.0
    %2424 = vmatpush1.msra.mxu0 0.0
    %2425 = vmatprep.subr.mxu0 0.0
    %2426 = vmatpush1.msra.mxu0 0.0
    %2427 = vmatprep.subr.mxu0 0.0
    %2428 = vmatpush1.msra.mxu0 0.0
    %2429 = vmatprep.subr.mxu0 0.0
    %2430 = vmatpush1.msra.mxu0 0.0
    %2431 = vmatprep.subr.mxu0 0.0
    %2432 = vmatpush1.msra.mxu0 0.0
    %2433 = vmatprep.subr.mxu0 0.0
    %2434 = vmatpush1.msra.mxu0 0.0
    %2435 = vmatprep.subr.mxu0 0.0
    %2436 = vmatpush1.msra.mxu0 0.0
    %2437 = vmatprep.subr.mxu0 0.0
    %2438 = vmatpush1.msra.mxu0 0.0
    %2439 = vmatprep.subr.mxu0 0.0
    %2440 = vmatpush1.msra.mxu0 0.0
    %2441 = vmatprep.subr.mxu0 0.0
    %2442 = vmatpush1.msra.mxu0 0.0
    %2443 = vmatprep.subr.mxu0 0.0
    %2444 = vmatpush1.msra.mxu0 0.0
    %2445 = vmatprep.subr.mxu0 0.0
    %2446 = vmatpush1.msra.mxu0 0.0
    %2447 = vmatprep.mubr.f32.mxu0 0.0
    %2448 = vmatmul.mubr.f32.gmra.mrb[0].mxu0 %v2381
    %v2449 = vpop.f32.mrb[0].mxu0
    %v2450 = vadd.f32 %v132, %v2449
    %v2451 = vpop.f32.mrb[0].mxu0
    %2452 = vdwg.mxu0
    %2454 = vrot.lane.b32.xlu0 %v2207, 32
    %v2455 = vpop.permute.xlu0 %2454
    %v2456 = vsel %vm208, %v2455, 0
    %2458 = vmatprep.subr.mxu0 0.0
    %2459 = vmatpush1.msra.mxu0 %v117
    %2460 = vmatprep.subr.mxu0 0.0
    %2461 = vmatpush1.msra.mxu0 %v118
    %2462 = vmatprep.subr.mxu0 0.0
    %2463 = vmatpush1.msra.mxu0 %v119
    %2464 = vmatprep.subr.mxu0 0.0
    %2465 = vmatpush1.msra.mxu0 %v120
    %2466 = vmatprep.subr.mxu0 0.0
    %2467 = vmatpush1.msra.mxu0 0.0
    %2468 = vmatprep.subr.mxu0 0.0
    %2469 = vmatpush1.msra.mxu0 0.0
    %2470 = vmatprep.subr.mxu0 0.0
    %2471 = vmatpush1.msra.mxu0 0.0
    %2472 = vmatprep.subr.mxu0 0.0
    %2473 = vmatpush1.msra.mxu0 0.0
    %2474 = vmatprep.subr.mxu0 0.0
    %2475 = vmatpush1.msra.mxu0 0.0
    %2476 = vmatprep.subr.mxu0 0.0
    %2477 = vmatpush1.msra.mxu0 0.0
    %2478 = vmatprep.subr.mxu0 0.0
    %2479 = vmatpush1.msra.mxu0 0.0
    %2480 = vmatprep.subr.mxu0 0.0
    %2481 = vmatpush1.msra.mxu0 0.0
    %2482 = vmatprep.subr.mxu0 0.0
    %2483 = vmatpush1.msra.mxu0 0.0
    %2484 = vmatprep.subr.mxu0 0.0
    %2485 = vmatpush1.msra.mxu0 0.0
    %2486 = vmatprep.subr.mxu0 0.0
    %2487 = vmatpush1.msra.mxu0 0.0
    %2488 = vmatprep.subr.mxu0 0.0
    %2489 = vmatpush1.msra.mxu0 0.0
    %2490 = vmatprep.subr.mxu0 0.0
    %2491 = vmatpush1.msra.mxu0 0.0
    %2492 = vmatprep.subr.mxu0 0.0
    %2493 = vmatpush1.msra.mxu0 0.0
    %2494 = vmatprep.subr.mxu0 0.0
    %2495 = vmatpush1.msra.mxu0 0.0
    %2496 = vmatprep.subr.mxu0 0.0
    %2497 = vmatpush1.msra.mxu0 0.0
    %2498 = vmatprep.subr.mxu0 0.0
    %2499 = vmatpush1.msra.mxu0 0.0
    %2500 = vmatprep.subr.mxu0 0.0
    %2501 = vmatpush1.msra.mxu0 0.0
    %2502 = vmatprep.subr.mxu0 0.0
    %2503 = vmatpush1.msra.mxu0 0.0
    %2504 = vmatprep.subr.mxu0 0.0
    %2505 = vmatpush1.msra.mxu0 0.0
    %2506 = vmatprep.subr.mxu0 0.0
    %2507 = vmatpush1.msra.mxu0 0.0
    %2508 = vmatprep.subr.mxu0 0.0
    %2509 = vmatpush1.msra.mxu0 0.0
    %2510 = vmatprep.subr.mxu0 0.0
    %2511 = vmatpush1.msra.mxu0 0.0
    %2512 = vmatprep.subr.mxu0 0.0
    %2513 = vmatpush1.msra.mxu0 0.0
    %2514 = vmatprep.subr.mxu0 0.0
    %2515 = vmatpush1.msra.mxu0 0.0
    %2516 = vmatprep.subr.mxu0 0.0
    %2517 = vmatpush1.msra.mxu0 0.0
    %2518 = vmatprep.subr.mxu0 0.0
    %2519 = vmatpush1.msra.mxu0 0.0
    %2520 = vmatprep.subr.mxu0 0.0
    %2521 = vmatpush1.msra.mxu0 0.0
    %2522 = vmatprep.mubr.f32.mxu0 0.0
    %2523 = vmatmul.mubr.f32.gmra.mrb[0].mxu0 %v2456
    %v2524 = vpop.f32.mrb[0].mxu0
    %v2525 = vadd.f32 0.0, %v2524
    %v2526 = vpop.f32.mrb[0].mxu0
    %2527 = vdwg.mxu0
    %v2528 = vadd.f32 %v2450, %v2525
    %v2529 = vxor.u32 %v2528, 2147483648
    %v2530 = vmul.f32 %v2529, 1.442695
    %v2531 = vpow.pop %v2530
    %v2532 = vadd.f32 %v2531, 1.0
    %v2533 = vrcp.pop %v2532
    %v2534 = vmul.f32 1.0, %v2533
    %v2535 = vtanh.pop %v2528
    %v2536 = vmul.f32 %v2534, %v2201
    %2538 = vrot.lane.b32.xlu0 %v2535, 64
    %v2539 = vpop.permute.xlu0 %2538
    %v2541 = vmul.f32 %v2534, %v2539
    %2543 = vrot.lane.b32.xlu0 %v2541, 32
    %v2544 = vpop.permute.xlu0 %2543
    %v2546 = vadd.f32 %v2536, %v2544
    %v2547 = vtanh.pop %v2546
    %2549 = vrot.lane.b32.xlu0 %v2547, 64
    %v2550 = vpop.permute.xlu0 %2549
    %v2552 = vmul.f32 %v2534, %v2550
    %2553 = vmatprep.subr.mxu0 0.0
    %2554 = vmatpush1.msra.mxu0 %v113
    %2555 = vmatprep.subr.mxu0 0.0
    %2556 = vmatpush1.msra.mxu0 %v114
    %2557 = vmatprep.subr.mxu0 0.0
    %2558 = vmatpush1.msra.mxu0 %v115
    %2559 = vmatprep.subr.mxu0 0.0
    %2560 = vmatpush1.msra.mxu0 %v116
    %2561 = vmatprep.subr.mxu0 0.0
    %2562 = vmatpush1.msra.mxu0 0.0
    %2563 = vmatprep.subr.mxu0 0.0
    %2564 = vmatpush1.msra.mxu0 0.0
    %2565 = vmatprep.subr.mxu0 0.0
    %2566 = vmatpush1.msra.mxu0 0.0
    %2567 = vmatprep.subr.mxu0 0.0
    %2568 = vmatpush1.msra.mxu0 0.0
    %2569 = vmatprep.subr.mxu0 0.0
    %2570 = vmatpush1.msra.mxu0 0.0
    %2571 = vmatprep.subr.mxu0 0.0
    %2572 = vmatpush1.msra.mxu0 0.0
    %2573 = vmatprep.subr.mxu0 0.0
    %2574 = vmatpush1.msra.mxu0 0.0
    %2575 = vmatprep.subr.mxu0 0.0
    %2576 = vmatpush1.msra.mxu0 0.0
    %2577 = vmatprep.subr.mxu0 0.0
    %2578 = vmatpush1.msra.mxu0 0.0
    %2579 = vmatprep.subr.mxu0 0.0
    %2580 = vmatpush1.msra.mxu0 0.0
    %2581 = vmatprep.subr.mxu0 0.0
    %2582 = vmatpush1.msra.mxu0 0.0
    %2583 = vmatprep.subr.mxu0 0.0
    %2584 = vmatpush1.msra.mxu0 0.0
    %2585 = vmatprep.subr.mxu0 0.0
    %2586 = vmatpush1.msra.mxu0 0.0
    %2587 = vmatprep.subr.mxu0 0.0
    %2588 = vmatpush1.msra.mxu0 0.0
    %2589 = vmatprep.subr.mxu0 0.0
    %2590 = vmatpush1.msra.mxu0 0.0
    %2591 = vmatprep.subr.mxu0 0.0
    %2592 = vmatpush1.msra.mxu0 0.0
    %2593 = vmatprep.subr.mxu0 0.0
    %2594 = vmatpush1.msra.mxu0 0.0
    %2595 = vmatprep.subr.mxu0 0.0
    %2596 = vmatpush1.msra.mxu0 0.0
    %2597 = vmatprep.subr.mxu0 0.0
    %2598 = vmatpush1.msra.mxu0 0.0
    %2599 = vmatprep.subr.mxu0 0.0
    %2600 = vmatpush1.msra.mxu0 0.0
    %2601 = vmatprep.subr.mxu0 0.0
    %2602 = vmatpush1.msra.mxu0 0.0
    %2603 = vmatprep.subr.mxu0 0.0
    %2604 = vmatpush1.msra.mxu0 0.0
    %2605 = vmatprep.subr.mxu0 0.0
    %2606 = vmatpush1.msra.mxu0 0.0
    %2607 = vmatprep.subr.mxu0 0.0
    %2608 = vmatpush1.msra.mxu0 0.0
    %2609 = vmatprep.subr.mxu0 0.0
    %2610 = vmatpush1.msra.mxu0 0.0
    %2611 = vmatprep.subr.mxu0 0.0
    %2612 = vmatpush1.msra.mxu0 0.0
    %2613 = vmatprep.subr.mxu0 0.0
    %2614 = vmatpush1.msra.mxu0 0.0
    %2615 = vmatprep.subr.mxu0 0.0
    %2616 = vmatpush1.msra.mxu0 0.0
    %2617 = vmatprep.mubr.f32.mxu0 0.0
    %2618 = vmatmul.mubr.f32.gmra.mrb[0].mxu0 %v2456
    %v2619 = vpop.f32.mrb[0].mxu0
    %v2620 = vadd.f32 %v486, %v2619
    %v2621 = vpop.f32.mrb[0].mxu0
    %2622 = vdwg.mxu0
    %2624 = vrot.lane.b32.xlu0 %v2377, 32
    %v2625 = vpop.permute.xlu0 %2624
    %v2626 = vsel %vm208, %v2625, 0
    %2628 = vmatprep.subr.mxu0 0.0
    %2629 = vmatpush1.msra.mxu0 %v121
    %2630 = vmatprep.subr.mxu0 0.0
    %2631 = vmatpush1.msra.mxu0 %v122
    %2632 = vmatprep.subr.mxu0 0.0
    %2633 = vmatpush1.msra.mxu0 %v123
    %2634 = vmatprep.subr.mxu0 0.0
    %2635 = vmatpush1.msra.mxu0 %v124
    %2636 = vmatprep.subr.mxu0 0.0
    %2637 = vmatpush1.msra.mxu0 0.0
    %2638 = vmatprep.subr.mxu0 0.0
    %2639 = vmatpush1.msra.mxu0 0.0
    %2640 = vmatprep.subr.mxu0 0.0
    %2641 = vmatpush1.msra.mxu0 0.0
    %2642 = vmatprep.subr.mxu0 0.0
    %2643 = vmatpush1.msra.mxu0 0.0
    %2644 = vmatprep.subr.mxu0 0.0
    %2645 = vmatpush1.msra.mxu0 0.0
    %2646 = vmatprep.subr.mxu0 0.0
    %2647 = vmatpush1.msra.mxu0 0.0
    %2648 = vmatprep.subr.mxu0 0.0
    %2649 = vmatpush1.msra.mxu0 0.0
    %2650 = vmatprep.subr.mxu0 0.0
    %2651 = vmatpush1.msra.mxu0 0.0
    %2652 = vmatprep.subr.mxu0 0.0
    %2653 = vmatpush1.msra.mxu0 0.0
    %2654 = vmatprep.subr.mxu0 0.0
    %2655 = vmatpush1.msra.mxu0 0.0
    %2656 = vmatprep.subr.mxu0 0.0
    %2657 = vmatpush1.msra.mxu0 0.0
    %2658 = vmatprep.subr.mxu0 0.0
    %2659 = vmatpush1.msra.mxu0 0.0
    %2660 = vmatprep.subr.mxu0 0.0
    %2661 = vmatpush1.msra.mxu0 0.0
    %2662 = vmatprep.subr.mxu0 0.0
    %2663 = vmatpush1.msra.mxu0 0.0
    %2664 = vmatprep.subr.mxu0 0.0
    %2665 = vmatpush1.msra.mxu0 0.0
    %2666 = vmatprep.subr.mxu0 0.0
    %2667 = vmatpush1.msra.mxu0 0.0
    %2668 = vmatprep.subr.mxu0 0.0
    %2669 = vmatpush1.msra.mxu0 0.0
    %2670 = vmatprep.subr.mxu0 0.0
    %2671 = vmatpush1.msra.mxu0 0.0
    %2672 = vmatprep.subr.mxu0 0.0
    %2673 = vmatpush1.msra.mxu0 0.0
    %2674 = vmatprep.subr.mxu0 0.0
    %2675 = vmatpush1.msra.mxu0 0.0
    %2676 = vmatprep.subr.mxu0 0.0
    %2677 = vmatpush1.msra.mxu0 0.0
    %2678 = vmatprep.subr.mxu0 0.0
    %2679 = vmatpush1.msra.mxu0 0.0
    %2680 = vmatprep.subr.mxu0 0.0
    %2681 = vmatpush1.msra.mxu0 0.0
    %2682 = vmatprep.subr.mxu0 0.0
    %2683 = vmatpush1.msra.mxu0 0.0
    %2684 = vmatprep.subr.mxu0 0.0
    %2685 = vmatpush1.msra.mxu0 0.0
    %2686 = vmatprep.subr.mxu0 0.0
    %2687 = vmatpush1.msra.mxu0 0.0
    %2688 = vmatprep.subr.mxu0 0.0
    %2689 = vmatpush1.msra.mxu0 0.0
    %2690 = vmatprep.subr.mxu0 0.0
    %2691 = vmatpush1.msra.mxu0 0.0
    %2692 = vmatprep.mubr.f32.mxu0 0.0
    %2693 = vmatmul.mubr.f32.gmra.mrb[0].mxu0 %v2626
    %v2694 = vpop.f32.mrb[0].mxu0
    %v2695 = vadd.f32 0.0, %v2694
    %v2696 = vpop.f32.mrb[0].mxu0
    %2697 = vdwg.mxu0
    %v2698 = vadd.f32 %v2620, %v2695
    %v2699 = vxor.u32 %v2698, 2147483648
    %v2700 = vmul.f32 %v2699, 1.442695
    %v2701 = vpow.pop %v2700
    %v2702 = vadd.f32 %v2701, 1.0
    %v2703 = vrcp.pop %v2702
    %v2704 = vmul.f32 1.0, %v2703
    %v2705 = vtanh.pop %v2698
    %v2706 = vmul.f32 %v2704, %v2371
    %2708 = vrot.lane.b32.xlu0 %v2705, 64
    %v2709 = vpop.permute.xlu0 %2708
    %v2711 = vmul.f32 %v2704, %v2709
    %2713 = vrot.lane.b32.xlu0 %v2711, 32
    %v2714 = vpop.permute.xlu0 %2713
    %v2716 = vadd.f32 %v2706, %v2714
    %v2717 = vtanh.pop %v2716
    %2719 = vrot.lane.b32.xlu0 %v2717, 64
    %v2720 = vpop.permute.xlu0 %2719
    %v2722 = vmul.f32 %v2704, %v2720
    %2724 = vrot.lane.b32.xlu0 %v2552, 32
    %v2725 = vpop.permute.xlu0 %2724
    %v2726 = vsel %vm208, %v2725, 0
    %2728 = vmatprep.subr.mxu0 0.0
    %2729 = vmatpush1.msra.mxu0 %v113
    %2730 = vmatprep.subr.mxu0 0.0
    %2731 = vmatpush1.msra.mxu0 %v114
    %2732 = vmatprep.subr.mxu0 0.0
    %2733 = vmatpush1.msra.mxu0 %v115
    %2734 = vmatprep.subr.mxu0 0.0
    %2735 = vmatpush1.msra.mxu0 %v116
    %2736 = vmatprep.subr.mxu0 0.0
    %2737 = vmatpush1.msra.mxu0 0.0
    %2738 = vmatprep.subr.mxu0 0.0
    %2739 = vmatpush1.msra.mxu0 0.0
    %2740 = vmatprep.subr.mxu0 0.0
    %2741 = vmatpush1.msra.mxu0 0.0
    %2742 = vmatprep.subr.mxu0 0.0
    %2743 = vmatpush1.msra.mxu0 0.0
    %2744 = vmatprep.subr.mxu0 0.0
    %2745 = vmatpush1.msra.mxu0 0.0
    %2746 = vmatprep.subr.mxu0 0.0
    %2747 = vmatpush1.msra.mxu0 0.0
    %2748 = vmatprep.subr.mxu0 0.0
    %2749 = vmatpush1.msra.mxu0 0.0
    %2750 = vmatprep.subr.mxu0 0.0
    %2751 = vmatpush1.msra.mxu0 0.0
    %2752 = vmatprep.subr.mxu0 0.0
    %2753 = vmatpush1.msra.mxu0 0.0
    %2754 = vmatprep.subr.mxu0 0.0
    %2755 = vmatpush1.msra.mxu0 0.0
    %2756 = vmatprep.subr.mxu0 0.0
    %2757 = vmatpush1.msra.mxu0 0.0
    %2758 = vmatprep.subr.mxu0 0.0
    %2759 = vmatpush1.msra.mxu0 0.0
    %2760 = vmatprep.subr.mxu0 0.0
    %2761 = vmatpush1.msra.mxu0 0.0
    %2762 = vmatprep.subr.mxu0 0.0
    %2763 = vmatpush1.msra.mxu0 0.0
    %2764 = vmatprep.subr.mxu0 0.0
    %2765 = vmatpush1.msra.mxu0 0.0
    %2766 = vmatprep.subr.mxu0 0.0
    %2767 = vmatpush1.msra.mxu0 0.0
    %2768 = vmatprep.subr.mxu0 0.0
    %2769 = vmatpush1.msra.mxu0 0.0
    %2770 = vmatprep.subr.mxu0 0.0
    %2771 = vmatpush1.msra.mxu0 0.0
    %2772 = vmatprep.subr.mxu0 0.0
    %2773 = vmatpush1.msra.mxu0 0.0
    %2774 = vmatprep.subr.mxu0 0.0
    %2775 = vmatpush1.msra.mxu0 0.0
    %2776 = vmatprep.subr.mxu0 0.0
    %2777 = vmatpush1.msra.mxu0 0.0
    %2778 = vmatprep.subr.mxu0 0.0
    %2779 = vmatpush1.msra.mxu0 0.0
    %2780 = vmatprep.subr.mxu0 0.0
    %2781 = vmatpush1.msra.mxu0 0.0
    %2782 = vmatprep.subr.mxu0 0.0
    %2783 = vmatpush1.msra.mxu0 0.0
    %2784 = vmatprep.subr.mxu0 0.0
    %2785 = vmatpush1.msra.mxu0 0.0
    %2786 = vmatprep.subr.mxu0 0.0
    %2787 = vmatpush1.msra.mxu0 0.0
    %2788 = vmatprep.subr.mxu0 0.0
    %2789 = vmatpush1.msra.mxu0 0.0
    %2790 = vmatprep.subr.mxu0 0.0
    %2791 = vmatpush1.msra.mxu0 0.0
    %2792 = vmatprep.mubr.f32.mxu0 0.0
    %2793 = vmatmul.mubr.f32.gmra.mrb[0].mxu0 %v2726
    %v2794 = vpop.f32.mrb[0].mxu0
    %v2795 = vadd.f32 %v486, %v2794
    %v2796 = vpop.f32.mrb[0].mxu0
    %2797 = vdwg.mxu0
    %2799 = vrot.lane.b32.xlu0 %v2722, 32
    %v2800 = vpop.permute.xlu0 %2799
    %v2801 = vsel %vm208, %v2800, 0
    %2803 = vmatprep.subr.mxu0 0.0
    %2804 = vmatpush1.msra.mxu0 %v121
    %2805 = vmatprep.subr.mxu0 0.0
    %2806 = vmatpush1.msra.mxu0 %v122
    %2807 = vmatprep.subr.mxu0 0.0
    %2808 = vmatpush1.msra.mxu0 %v123
    %2809 = vmatprep.subr.mxu0 0.0
    %2810 = vmatpush1.msra.mxu0 %v124
    %2811 = vmatprep.subr.mxu0 0.0
    %2812 = vmatpush1.msra.mxu0 0.0
    %2813 = vmatprep.subr.mxu0 0.0
    %2814 = vmatpush1.msra.mxu0 0.0
    %2815 = vmatprep.subr.mxu0 0.0
    %2816 = vmatpush1.msra.mxu0 0.0
    %2817 = vmatprep.subr.mxu0 0.0
    %2818 = vmatpush1.msra.mxu0 0.0
    %2819 = vmatprep.subr.mxu0 0.0
    %2820 = vmatpush1.msra.mxu0 0.0
    %2821 = vmatprep.subr.mxu0 0.0
    %2822 = vmatpush1.msra.mxu0 0.0
    %2823 = vmatprep.subr.mxu0 0.0
    %2824 = vmatpush1.msra.mxu0 0.0
    %2825 = vmatprep.subr.mxu0 0.0
    %2826 = vmatpush1.msra.mxu0 0.0
    %2827 = vmatprep.subr.mxu0 0.0
    %2828 = vmatpush1.msra.mxu0 0.0
    %2829 = vmatprep.subr.mxu0 0.0
    %2830 = vmatpush1.msra.mxu0 0.0
    %2831 = vmatprep.subr.mxu0 0.0
    %2832 = vmatpush1.msra.mxu0 0.0
    %2833 = vmatprep.subr.mxu0 0.0
    %2834 = vmatpush1.msra.mxu0 0.0
    %2835 = vmatprep.subr.mxu0 0.0
    %2836 = vmatpush1.msra.mxu0 0.0
    %2837 = vmatprep.subr.mxu0 0.0
    %2838 = vmatpush1.msra.mxu0 0.0
    %2839 = vmatprep.subr.mxu0 0.0
    %2840 = vmatpush1.msra.mxu0 0.0
    %2841 = vmatprep.subr.mxu0 0.0
    %2842 = vmatpush1.msra.mxu0 0.0
    %2843 = vmatprep.subr.mxu0 0.0
    %2844 = vmatpush1.msra.mxu0 0.0
    %2845 = vmatprep.subr.mxu0 0.0
    %2846 = vmatpush1.msra.mxu0 0.0
    %2847 = vmatprep.subr.mxu0 0.0
    %2848 = vmatpush1.msra.mxu0 0.0
    %2849 = vmatprep.subr.mxu0 0.0
    %2850 = vmatpush1.msra.mxu0 0.0
    %2851 = vmatprep.subr.mxu0 0.0
    %2852 = vmatpush1.msra.mxu0 0.0
    %2853 = vmatprep.subr.mxu0 0.0
    %2854 = vmatpush1.msra.mxu0 0.0
    %2855 = vmatprep.subr.mxu0 0.0
    %2856 = vmatpush1.msra.mxu0 0.0
    %2857 = vmatprep.subr.mxu0 0.0
    %2858 = vmatpush1.msra.mxu0 0.0
    %2859 = vmatprep.subr.mxu0 0.0
    %2860 = vmatpush1.msra.mxu0 0.0
    %2861 = vmatprep.subr.mxu0 0.0
    %2862 = vmatpush1.msra.mxu0 0.0
    %2863 = vmatprep.subr.mxu0 0.0
    %2864 = vmatpush1.msra.mxu0 0.0
    %2865 = vmatprep.subr.mxu0 0.0
    %2866 = vmatpush1.msra.mxu0 0.0
    %2867 = vmatprep.mubr.f32.mxu0 0.0
    %2868 = vmatmul.mubr.f32.gmra.mrb[0].mxu0 %v2801
    %v2869 = vpop.f32.mrb[0].mxu0
    %v2870 = vadd.f32 0.0, %v2869
    %v2871 = vpop.f32.mrb[0].mxu0
    %2872 = vdwg.mxu0
    %v2873 = vadd.f32 %v2795, %v2870
    %v2874 = vxor.u32 %v2873, 2147483648
    %v2875 = vmul.f32 %v2874, 1.442695
    %v2876 = vpow.pop %v2875
    %v2877 = vadd.f32 %v2876, 1.0
    %v2878 = vrcp.pop %v2877
    %v2879 = vmul.f32 1.0, %v2878
    %v2880 = vtanh.pop %v2873
    %v2881 = vmul.f32 %v2879, %v2716
    %2883 = vrot.lane.b32.xlu0 %v2880, 64
    %v2884 = vpop.permute.xlu0 %2883
    %v2886 = vmul.f32 %v2879, %v2884
    %2888 = vrot.lane.b32.xlu0 %v2886, 32
    %v2889 = vpop.permute.xlu0 %2888
    %v2891 = vadd.f32 %v2881, %v2889
    %v2892 = vtanh.pop %v2891
    %2894 = vrot.lane.b32.xlu0 %v2892, 64
    %v2895 = vpop.permute.xlu0 %2894
    %v2897 = vmul.f32 %v2879, %v2895
    %v2898 = vld [vmem:[#allocation10] sm:$0xff]
    %v2899 = vld [vmem:[#allocation10 + $0x8] sm:$0xff]
    %v2900 = vld [vmem:[#allocation10 + $0x10] sm:$0xff]
    %v2901 = vld [vmem:[#allocation10 + $0x18] sm:$0xff]
    %2903 = vrot.lane.b32.xlu0 %v2897, 32
    %v2904 = vpop.permute.xlu0 %2903
    %v2905 = vsel %vm208, %v2904, 0
    %2907 = vmatprep.subr.mxu0 0.0
    %2908 = vmatpush1.msra.mxu0 %v2898
    %2909 = vmatprep.subr.mxu0 0.0
    %2910 = vmatpush1.msra.mxu0 %v2899
    %2911 = vmatprep.subr.mxu0 0.0
    %2912 = vmatpush1.msra.mxu0 %v2900
    %2913 = vmatprep.subr.mxu0 0.0
    %2914 = vmatpush1.msra.mxu0 %v2901
    %2915 = vmatprep.subr.mxu0 0.0
    %2916 = vmatpush1.msra.mxu0 0.0
    %2917 = vmatprep.subr.mxu0 0.0
    %2918 = vmatpush1.msra.mxu0 0.0
    %2919 = vmatprep.subr.mxu0 0.0
    %2920 = vmatpush1.msra.mxu0 0.0
    %2921 = vmatprep.subr.mxu0 0.0
    %2922 = vmatpush1.msra.mxu0 0.0
    %2923 = vmatprep.subr.mxu0 0.0
    %2924 = vmatpush1.msra.mxu0 0.0
    %2925 = vmatprep.subr.mxu0 0.0
    %2926 = vmatpush1.msra.mxu0 0.0
    %2927 = vmatprep.subr.mxu0 0.0
    %2928 = vmatpush1.msra.mxu0 0.0
    %2929 = vmatprep.subr.mxu0 0.0
    %2930 = vmatpush1.msra.mxu0 0.0
    %2931 = vmatprep.subr.mxu0 0.0
    %2932 = vmatpush1.msra.mxu0 0.0
    %2933 = vmatprep.subr.mxu0 0.0
    %2934 = vmatpush1.msra.mxu0 0.0
    %2935 = vmatprep.subr.mxu0 0.0
    %2936 = vmatpush1.msra.mxu0 0.0
    %2937 = vmatprep.subr.mxu0 0.0
    %2938 = vmatpush1.msra.mxu0 0.0
    %2939 = vmatprep.subr.mxu0 0.0
    %2940 = vmatpush1.msra.mxu0 0.0
    %2941 = vmatprep.subr.mxu0 0.0
    %2942 = vmatpush1.msra.mxu0 0.0
    %2943 = vmatprep.subr.mxu0 0.0
    %2944 = vmatpush1.msra.mxu0 0.0
    %2945 = vmatprep.subr.mxu0 0.0
    %2946 = vmatpush1.msra.mxu0 0.0
    %2947 = vmatprep.subr.mxu0 0.0
    %2948 = vmatpush1.msra.mxu0 0.0
    %2949 = vmatprep.subr.mxu0 0.0
    %2950 = vmatpush1.msra.mxu0 0.0
    %2951 = vmatprep.subr.mxu0 0.0
    %2952 = vmatpush1.msra.mxu0 0.0
    %2953 = vmatprep.subr.mxu0 0.0
    %2954 = vmatpush1.msra.mxu0 0.0
    %2955 = vmatprep.subr.mxu0 0.0
    %2956 = vmatpush1.msra.mxu0 0.0
    %2957 = vmatprep.subr.mxu0 0.0
    %2958 = vmatpush1.msra.mxu0 0.0
    %2959 = vmatprep.subr.mxu0 0.0
    %2960 = vmatpush1.msra.mxu0 0.0
    %2961 = vmatprep.subr.mxu0 0.0
    %2962 = vmatpush1.msra.mxu0 0.0
    %2963 = vmatprep.subr.mxu0 0.0
    %2964 = vmatpush1.msra.mxu0 0.0
    %2965 = vmatprep.subr.mxu0 0.0
    %2966 = vmatpush1.msra.mxu0 0.0
    %2967 = vmatprep.subr.mxu0 0.0
    %2968 = vmatpush1.msra.mxu0 0.0
    %2969 = vmatprep.subr.mxu0 0.0
    %2970 = vmatpush1.msra.mxu0 0.0
    %2971 = vmatprep.mubr.f32.mxu0 0.0
    %2972 = vmatmul.mubr.f32.gmra.mrb[0].mxu0 %v2905
    %v2973 = vpop.f32.mrb[0].mxu0
    %v2974 = vadd.f32 0.0, %v2973
    %v2975 = vpop.f32.mrb[0].mxu0
    %2976 = vdwg.mxu0
    %vm2977 = vcmask 125952
    %v2978 = vsel %vm2977, %v2974, -inf
    %2979 = vmax.xlane.f32.xlu0 %v2978
    %v2980 = vpop.xlane.xlu0 %2979
    %vm2981 = vcmask 257152
    %v2982 = vsel %vm2981, %v2974, -inf
    %2983 = vmax.xlane.f32.xlu0 %v2982
    %v2984 = vpop.xlane.xlu0 %2983
    %vm2985 = vcmask 388352
    %v2986 = vsel %vm2985, %v2974, -inf
    %2987 = vmax.xlane.f32.xlu0 %v2986
    %v2988 = vpop.xlane.xlu0 %2987
    %vm2989 = vcmask 519552
    %v2990 = vsel %vm2989, %v2974, -inf
    %2991 = vmax.xlane.f32.xlu0 %v2990
    %v2992 = vpop.xlane.xlu0 %2991
    %vm2993 = vcmask 650752
    %v2994 = vsel %vm2993, %v2974, -inf
    %2995 = vmax.xlane.f32.xlu0 %v2994
    %v2996 = vpop.xlane.xlu0 %2995
    %vm2997 = vcmask 781952
    %v2998 = vsel %vm2997, %v2974, -inf
    %2999 = vmax.xlane.f32.xlu0 %v2998
    %v3000 = vpop.xlane.xlu0 %2999
    %vm3001 = vcmask 913152
    %v3002 = vsel %vm3001, %v2974, -inf
    %3003 = vmax.xlane.f32.xlu0 %v3002
    %v3004 = vpop.xlane.xlu0 %3003
    %vm3005 = vcmask 1044352
    %v3006 = vsel %vm3005, %v2974, -inf
    %3007 = vmax.xlane.f32.xlu0 %v3006
    %v3008 = vpop.xlane.xlu0 %3007
    %v3009 = vsel %vm134, %v2980, %v2984
    %v3010 = vsel %vm208, %v3009, %v2988
    %vm3011 = vcmask 392192
    %v3012 = vsel %vm3011, %v3010, %v2992
    %vm3013 = vcmask 523264
    %v3014 = vsel %vm3013, %v3012, %v2996
    %vm3015 = vcmask 654336
    %v3016 = vsel %vm3015, %v3014, %v3000
    %vm3017 = vcmask 785408
    %v3018 = vsel %vm3017, %v3016, %v3004
    %vm3019 = vcmask 916480
    %v3020 = vsel %vm3019, %v3018, %v3008
    %v3021 = vsub.f32 %v2974, %v3020
    %v3022 = vmul.f32 %v3021, 1.442695
    %v3023 = vpow.pop %v3022
    %v3024 = vsel %vm2977, %v3023, 0.0
    %3025 = vadd.xlane.f32.xlu0 %v3024
    %v3026 = vpop.xlane.xlu0 %3025
    %3028 = vrot.lane.b32.xlu0 %v3023, 112
    %v3029 = vpop.permute.xlu0 %3028
    %v3031 = vsel %vm2977, %v3029, 0.0
    %3032 = vadd.xlane.f32.xlu0 %v3031
    %v3033 = vpop.xlane.xlu0 %3032
    %3034 = vrot.lane.b32.xlu0 %v3023, 96
    %v3035 = vpop.permute.xlu0 %3034
    %v3037 = vsel %vm2977, %v3035, 0.0
    %3038 = vadd.xlane.f32.xlu0 %v3037
    %v3039 = vpop.xlane.xlu0 %3038
    %3040 = vrot.lane.b32.xlu0 %v3023, 80
    %v3041 = vpop.permute.xlu0 %3040
    %v3043 = vsel %vm2977, %v3041, 0.0
    %3044 = vadd.xlane.f32.xlu0 %v3043
    %v3045 = vpop.xlane.xlu0 %3044
    %3046 = vrot.lane.b32.xlu0 %v3023, 64
    %v3047 = vpop.permute.xlu0 %3046
    %v3049 = vsel %vm2977, %v3047, 0.0
    %3050 = vadd.xlane.f32.xlu0 %v3049
    %v3051 = vpop.xlane.xlu0 %3050
    %3052 = vrot.lane.b32.xlu0 %v3023, 48
    %v3053 = vpop.permute.xlu0 %3052
    %v3055 = vsel %vm2977, %v3053, 0.0
    %3056 = vadd.xlane.f32.xlu0 %v3055
    %v3057 = vpop.xlane.xlu0 %3056
    %3058 = vrot.lane.b32.xlu0 %v3023, 32
    %v3059 = vpop.permute.xlu0 %3058
    %v3061 = vsel %vm2977, %v3059, 0.0
    %3062 = vadd.xlane.f32.xlu0 %v3061
    %v3063 = vpop.xlane.xlu0 %3062
    %3064 = vrot.lane.b32.xlu0 %v3023, 16
    %v3065 = vpop.permute.xlu0 %3064
    %v3067 = vsel %vm2977, %v3065, 0.0
    %3068 = vadd.xlane.f32.xlu0 %v3067
    %v3069 = vpop.xlane.xlu0 %3068
    %v3070 = vsel %vm134, %v3026, %v3033
    %v3071 = vsel %vm208, %v3070, %v3039
    %v3072 = vsel %vm3011, %v3071, %v3045
    %v3073 = vsel %vm3013, %v3072, %v3051
    %v3074 = vsel %vm3015, %v3073, %v3057
    %v3075 = vsel %vm3017, %v3074, %v3063
    %v3076 = vsel %vm3019, %v3075, %v3069
    %v3077 = vlog2.pop %v3076
    %v3078 = vmul.f32 %v3077, 0.6931472
    %v3079 = vsub.f32 %v3021, %v3078
    %3080 = vst [vmem:[%s8] sm:$0xf] %v3079
    // Predicated region
    $region58: #{oracle_forward.1} parent=1 // pred_check
      _
    $region59: #{oracle_forward.1} parent=1 // pred_check_branch
      %3082 = sbr.rel (0) target = $region61
    $region60: #{oracle_forward.1} parent=1 // pred_region
      _
    $region61: #{oracle_forward.1} parent=1 // pred_fallthru
      _
    // Predicated region
    $region62: #{oracle_forward.1} parent=1 // pred_check
      _
    $region63: #{oracle_forward.1} parent=1 // pred_check_branch
      %3084 = sbr.rel (0) target = $region65
    $region64: #{oracle_forward.1} parent=1 // pred_region
      _
    $region65: #{oracle_forward.1} parent=1 // pred_fallthru
      _
    %3085 = vsyncpa [#allocation3], 1
    %3086 = vsyncpa [#allocation5], 1
    %3087 = vsyncpa [#allocation8], 1
    %3088 = vsyncpa [#allocation11], 1

</llo_original>
